<compile_context>
chip_gen: v6e
topology: v6e:2x2x1
jax: 0.10.0
libtpu: 0.0.40
codegen_flags: <defaults>
</compile_context>

<pallas_src>
import jax
import jax.numpy as jnp
from jax.experimental import pallas as pl
from jax.experimental.pallas import tpu as pltpu

INPUT_SIZE = 8868
H1 = 128
H2 = 64
OUT = 2
OUT_PAD = 128  # lane-dense output block; real logits live in the first 2 lanes


def _round_up(n, m):
    return ((n + m - 1) // m) * m


def mlp_kernel(x_ref, w1_ref, b1_ref, w2_ref, b2_ref, w3_ref, b3_ref, o_ref):
    # fc1 + ReLU.  Cast x to the weight dtype (no-op when they already match).
    x = x_ref[...].astype(w1_ref.dtype)
    h1 = jnp.dot(x, w1_ref[...], preferred_element_type=jnp.float32)
    h1 = jnp.maximum(h1 + b1_ref[...], 0.0)
    # fc2 + ReLU
    h2 = jnp.dot(h1.astype(w2_ref.dtype), w2_ref[...],
                 preferred_element_type=jnp.float32)
    h2 = jnp.maximum(h2 + b2_ref[...], 0.0)
    # fc3 (logits, no activation) -- padded to OUT_PAD lanes
    logits = jnp.dot(h2.astype(w3_ref.dtype), w3_ref[...],
                     preferred_element_type=jnp.float32)
    o_ref[...] = (logits + b3_ref[...]).astype(o_ref.dtype)


def prepare_params(w1, b1, w2, b2, w3, b3, compute_dtype=jnp.float32):
    """One-time weight prep (cast + output-lane pad + bias reshape).

    Weights use the [in_features, out_features] layout.  Call once and reuse
    the returned tuple for every currency_classifier() call.
    """
    w1c = w1.astype(compute_dtype)
    w2c = w2.astype(compute_dtype)
    w3p = jnp.zeros((H2, OUT_PAD), compute_dtype).at[:, :OUT].set(
        w3.astype(compute_dtype))
    b1r = b1.reshape(1, H1).astype(jnp.float32)
    b2r = b2.reshape(1, H2).astype(jnp.float32)
    b3r = jnp.zeros((1, OUT_PAD), jnp.float32).at[:, :OUT].set(
        b3.astype(jnp.float32))
    return (w1c, b1r, w2c, b2r, w3p, b3r)


def _vmem_capacity_bytes():
    try:
        return int(pltpu.get_tpu_info().vmem_capacity_bytes)
    except Exception:
        return 64 << 20  # conservative fallback = v7x per-TC VMEM


def _pick_tiling(batch, x_itemsize, w_itemsize, bm_max):
    """Pick (bm_eff, vmem_limit) from the per-chip VMEM budget."""
    vmem_cap = _vmem_capacity_bytes()
    # v7x: 64 MiB VMEM per TensorCore -> 48 MiB scoped limit.
    # v5e / v6e: 128 MiB physical -> 64 MiB scoped limit.
    vmem_limit = (48 << 20) if vmem_cap <= (64 << 20) else (64 << 20)
    # Resident (double-buffered) weights + biases.
    fixed = 2 * (INPUT_SIZE * H1 + H1 * H2 + H2 * OUT_PAD
                 + H1 + H2 + OUT_PAD) * w_itemsize
    # Per batch-row cost: double-buffered x tile + double-buffered f32 output.
    per_row = 2 * (INPUT_SIZE * x_itemsize + OUT_PAD * 4)
    budget = vmem_limit - fixed - (4 << 20)  # headroom for kernel scratch
    bm_vmem = max(8, budget // per_row)
    bm_eff = int(min(bm_max, bm_vmem, _round_up(batch, 8)))
    bm_eff = max(8, (bm_eff // 8) * 8)
    # >= 2 grid steps when possible so "parallel" shards across v7x's 2 TCs.
    if pl.cdiv(batch, bm_eff) < 2 and batch >= 16:
        bm_eff = max(8, _round_up(pl.cdiv(batch, 2), 8))
    return bm_eff, vmem_limit


def currency_classifier(x, params, *, bm=1024):
    """x: [B, 8868] (float32 or bfloat16) -> [B, 2] float32 logits."""
    w1c, b1r, w2c, b2r, w3p, b3r = params
    B, F = x.shape
    assert F == INPUT_SIZE
    bm_eff, vmem_limit = _pick_tiling(
        B, jnp.dtype(x.dtype).itemsize, jnp.dtype(w1c.dtype).itemsize, bm)
    grid = (pl.cdiv(B, bm_eff),)

    out = pl.pallas_call(
        mlp_kernel,
        out_shape=jax.ShapeDtypeStruct((B, OUT_PAD), jnp.float32),
        grid_spec=pltpu.PrefetchScalarGridSpec(
            num_scalar_prefetch=0,
            grid=grid,
            in_specs=[
                # activations: tiled over batch, full (unpadded) feature dim
                pl.BlockSpec((bm_eff, INPUT_SIZE), lambda i: (i, 0)),
                # weights / biases: whole arrays, resident across grid steps
                pl.BlockSpec((INPUT_SIZE, H1), lambda i: (0, 0)),
                pl.BlockSpec((1, H1), lambda i: (0, 0)),
                pl.BlockSpec((H1, H2), lambda i: (0, 0)),
                pl.BlockSpec((1, H2), lambda i: (0, 0)),
                pl.BlockSpec((H2, OUT_PAD), lambda i: (0, 0)),
                pl.BlockSpec((1, OUT_PAD), lambda i: (0, 0)),
            ],
            out_specs=pl.BlockSpec((bm_eff, OUT_PAD), lambda i: (i, 0)),
        ),
        compiler_params=pltpu.CompilerParams(
            dimension_semantics=("parallel",),
            vmem_limit_bytes=vmem_limit,
        ),
    )(x, w1c, b1r, w2c, b2r, w3p, b3r)

    # Drop the padded output lanes.
    return out[:, :OUT]


def reference_f32(x, w1, b1, w2, b2, w3, b3):
    hi = jax.lax.Precision.HIGHEST
    h1 = jnp.maximum(jnp.dot(x, w1, precision=hi) + b1, 0.0)
    h2 = jnp.maximum(jnp.dot(h1, w2, precision=hi) + b2, 0.0)
    return jnp.dot(h2, w3, precision=hi) + b3


def reference_bf16(x, w1, b1, w2, b2, w3, b3):
    c = jnp.bfloat16
    h1 = jnp.dot(x.astype(c), w1.astype(c),
                 preferred_element_type=jnp.float32) + b1
    h1 = jnp.maximum(h1, 0.0)
    h2 = jnp.dot(h1.astype(c), w2.astype(c),
                 preferred_element_type=jnp.float32) + b2
    h2 = jnp.maximum(h2, 0.0)
    return jnp.dot(h2.astype(c), w3.astype(c),
                   preferred_element_type=jnp.float32) + b3


if __name__ == "__main__":
    key = jax.random.PRNGKey(0)
    kx, k1, k2, k3, kb1, kb2, kb3, kx2 = jax.random.split(key, 8)

    # Deterministic parameters (shapes match the PyTorch module, transposed).
    w1 = jax.random.normal(k1, (INPUT_SIZE, H1), jnp.float32) * (1.0 / INPUT_SIZE ** 0.5)
    b1 = jax.random.normal(kb1, (H1,), jnp.float32) * 0.01
    w2 = jax.random.normal(k2, (H1, H2), jnp.float32) * (1.0 / H1 ** 0.5)
    b2 = jax.random.normal(kb2, (H2,), jnp.float32) * 0.01
    w3 = jax.random.normal(k3, (H2, OUT), jnp.float32) * (1.0 / H2 ** 0.5)
    b3 = jax.random.normal(kb3, (OUT,), jnp.float32) * 0.01

    # Weight prep runs ONCE (review item: hoist/cache the param prep).
    params_f32 = prepare_params(w1, b1, w2, b2, w3, b3, jnp.float32)
    params_bf16 = prepare_params(w1, b1, w2, b2, w3, b3, jnp.bfloat16)

    # --- small batch, single grid step, f32 path (matches PyTorch numerics) ---
    B = 8
    x = jax.random.normal(kx, (B, INPUT_SIZE), jnp.float32)
    out = jax.block_until_ready(currency_classifier(x, params_f32))
    assert out.shape == (B, OUT)
    ref = reference_f32(x, w1, b1, w2, b2, w3, b3)
    assert jnp.allclose(out, ref, atol=5e-2, rtol=5e-2), "f32 path mismatch (B=8)"

    # --- non-divisible batch, multi-step grid (boundary masking, 2 TC shards) ---
    B2 = 40
    x2 = jax.random.normal(kx2, (B2, INPUT_SIZE), jnp.float32)
    out2 = jax.block_until_ready(currency_classifier(x2, params_f32))
    assert out2.shape == (B2, OUT)
    ref2 = reference_f32(x2, w1, b1, w2, b2, w3, b3)
    assert jnp.allclose(out2, ref2, atol=5e-2, rtol=5e-2), "f32 path mismatch (B=40)"

    # --- bf16 fast path (halves the dominant x HBM stream when x is bf16) ---
    x2_bf16 = x2.astype(jnp.bfloat16)
    out3 = jax.block_until_ready(currency_classifier(x2_bf16, params_bf16))
    assert out3.shape == (B2, OUT)
    ref3 = reference_bf16(x2_bf16, w1, b1, w2, b2, w3, b3)
    assert jnp.allclose(out3, ref3, atol=3e-2, rtol=3e-2), "bf16 path mismatch (B=40)"

    print("KERNEL_OK")
</pallas_src>

<mosaic_0001>
module attributes {stable_mosaic.version = 11 : i64} {
  func.func @mlp_kernel(%arg0: i32, %arg1: memref<8x8868xf32, #tpu.memory_space<vmem>>, %arg2: memref<8868x128xf32, #tpu.memory_space<vmem>>, %arg3: memref<1x128xf32, #tpu.memory_space<vmem>>, %arg4: memref<128x64xf32, #tpu.memory_space<vmem>>, %arg5: memref<1x64xf32, #tpu.memory_space<vmem>>, %arg6: memref<64x128xf32, #tpu.memory_space<vmem>>, %arg7: memref<1x128xf32, #tpu.memory_space<vmem>>, %arg8: memref<8x128xf32, #tpu.memory_space<vmem>>) attributes {dimension_semantics = [#tpu.dimension_semantics<parallel>], iteration_bounds = array<i64: 1>, scalar_prefetch = 0 : i64, scratch_operands = 0 : i64, tpu.core_type = #tpu.core_type<tc>, window_params = [{transform_indices = @transform_0, window_bounds = array<i64: 8, 8868>}, {pipeline_mode = #tpu.pipeline_mode<synchronous>, transform_indices = @transform_1, window_bounds = array<i64: 8868, 128>}, {pipeline_mode = #tpu.pipeline_mode<synchronous>, transform_indices = @transform_2, window_bounds = array<i64: 1, 128>}, {pipeline_mode = #tpu.pipeline_mode<synchronous>, transform_indices = @transform_3, window_bounds = array<i64: 128, 64>}, {pipeline_mode = #tpu.pipeline_mode<synchronous>, transform_indices = @transform_4, window_bounds = array<i64: 1, 64>}, {pipeline_mode = #tpu.pipeline_mode<synchronous>, transform_indices = @transform_5, window_bounds = array<i64: 64, 128>}, {pipeline_mode = #tpu.pipeline_mode<synchronous>, transform_indices = @transform_6, window_bounds = array<i64: 1, 128>}, {transform_indices = @transform_7, window_bounds = array<i64: 8, 128>}]} {
    %c0 = arith.constant 0 : index
    %c0_0 = arith.constant 0 : index
    %0 = vector.load %arg1[%c0, %c0_0] : memref<8x8868xf32, #tpu.memory_space<vmem>>, vector<8x8868xf32>
    %c0_1 = arith.constant 0 : index
    %c0_2 = arith.constant 0 : index
    %1 = vector.load %arg2[%c0_1, %c0_2] : memref<8868x128xf32, #tpu.memory_space<vmem>>, vector<8868x128xf32>
    %cst = arith.constant dense<0.000000e+00> : vector<8x128xf32>
    %2 = tpu.matmul %0, %1, %cst {dimension_numbers = #tpu.dot_dimension_numbers<[1], [0], [0], [1], [0, 0, 1, 1], [], []>} : vector<8x8868xf32>, vector<8868x128xf32>, vector<8x128xf32> -> vector<8x128xf32>
    %c0_3 = arith.constant 0 : index
    %c0_4 = arith.constant 0 : index
    %3 = vector.load %arg3[%c0_3, %c0_4] : memref<1x128xf32, #tpu.memory_space<vmem>>, vector<1x128xf32>
    %4 = vector.broadcast %3 : vector<1x128xf32> to vector<8x128xf32>
    %5 = arith.addf %2, %4 : vector<8x128xf32>
    %cst_5 = arith.constant 0.000000e+00 : f32
    %6 = vector.broadcast %cst_5 : f32 to vector<8x128xf32>
    %7 = arith.maximumf %5, %6 : vector<8x128xf32>
    %c0_6 = arith.constant 0 : index
    %c0_7 = arith.constant 0 : index
    %8 = vector.load %arg4[%c0_6, %c0_7] : memref<128x64xf32, #tpu.memory_space<vmem>>, vector<128x64xf32>
    %cst_8 = arith.constant dense<0.000000e+00> : vector<8x64xf32>
    %9 = tpu.matmul %7, %8, %cst_8 {dimension_numbers = #tpu.dot_dimension_numbers<[1], [0], [0], [1], [0, 0, 1, 1], [], []>} : vector<8x128xf32>, vector<128x64xf32>, vector<8x64xf32> -> vector<8x64xf32>
    %c0_9 = arith.constant 0 : index
    %c0_10 = arith.constant 0 : index
    %10 = vector.load %arg5[%c0_9, %c0_10] : memref<1x64xf32, #tpu.memory_space<vmem>>, vector<1x64xf32>
    %11 = vector.broadcast %10 : vector<1x64xf32> to vector<8x64xf32>
    %12 = arith.addf %9, %11 : vector<8x64xf32>
    %cst_11 = arith.constant 0.000000e+00 : f32
    %13 = vector.broadcast %cst_11 : f32 to vector<8x64xf32>
    %14 = arith.maximumf %12, %13 : vector<8x64xf32>
    %c0_12 = arith.constant 0 : index
    %c0_13 = arith.constant 0 : index
    %15 = vector.load %arg6[%c0_12, %c0_13] : memref<64x128xf32, #tpu.memory_space<vmem>>, vector<64x128xf32>
    %cst_14 = arith.constant dense<0.000000e+00> : vector<8x128xf32>
    %16 = tpu.matmul %14, %15, %cst_14 {dimension_numbers = #tpu.dot_dimension_numbers<[1], [0], [0], [1], [0, 0, 1, 1], [], []>} : vector<8x64xf32>, vector<64x128xf32>, vector<8x128xf32> -> vector<8x128xf32>
    %c0_15 = arith.constant 0 : index
    %c0_16 = arith.constant 0 : index
    %17 = vector.load %arg7[%c0_15, %c0_16] : memref<1x128xf32, #tpu.memory_space<vmem>>, vector<1x128xf32>
    %18 = vector.broadcast %17 : vector<1x128xf32> to vector<8x128xf32>
    %19 = arith.addf %16, %18 : vector<8x128xf32>
    %c0_17 = arith.constant 0 : index
    %c0_18 = arith.constant 0 : index
    %20 = vector.load %arg8[%c0_17, %c0_18] : memref<8x128xf32, #tpu.memory_space<vmem>>, vector<8x128xf32>
    tpu.vector_store %arg8[%c0_17, %c0_18], %19 {strides = array<i32>} : memref<8x128xf32, #tpu.memory_space<vmem>>, vector<8x128xf32>,
    return
  }
  func.func @transform_0(%arg0: i32) -> (i32, i32) {
    %c0_i32 = arith.constant 0 : i32
    %c0_i32_0 = arith.constant 0 : i32
    return %arg0, %c0_i32 : i32, i32
  }
  func.func @transform_1(%arg0: i32) -> (i32, i32) {
    %c0_i32 = arith.constant 0 : i32
    %c0_i32_0 = arith.constant 0 : i32
    %c0_i32_1 = arith.constant 0 : i32
    return %c0_i32, %c0_i32_0 : i32, i32
  }
  func.func @transform_2(%arg0: i32) -> (i32, i32) {
    %c0_i32 = arith.constant 0 : i32
    %c0_i32_0 = arith.constant 0 : i32
    %c0_i32_1 = arith.constant 0 : i32
    return %c0_i32, %c0_i32_0 : i32, i32
  }
  func.func @transform_3(%arg0: i32) -> (i32, i32) {
    %c0_i32 = arith.constant 0 : i32
    %c0_i32_0 = arith.constant 0 : i32
    %c0_i32_1 = arith.constant 0 : i32
    return %c0_i32, %c0_i32_0 : i32, i32
  }
  func.func @transform_4(%arg0: i32) -> (i32, i32) {
    %c0_i32 = arith.constant 0 : i32
    %c0_i32_0 = arith.constant 0 : i32
    %c0_i32_1 = arith.constant 0 : i32
    return %c0_i32, %c0_i32_0 : i32, i32
  }
  func.func @transform_5(%arg0: i32) -> (i32, i32) {
    %c0_i32 = arith.constant 0 : i32
    %c0_i32_0 = arith.constant 0 : i32
    %c0_i32_1 = arith.constant 0 : i32
    return %c0_i32, %c0_i32_0 : i32, i32
  }
  func.func @transform_6(%arg0: i32) -> (i32, i32) {
    %c0_i32 = arith.constant 0 : i32
    %c0_i32_0 = arith.constant 0 : i32
    %c0_i32_1 = arith.constant 0 : i32
    return %c0_i32, %c0_i32_0 : i32, i32
  }
  func.func @transform_7(%arg0: i32) -> (i32, i32) {
    %c0_i32 = arith.constant 0 : i32
    %c0_i32_0 = arith.constant 0 : i32
    return %arg0, %c0_i32 : i32, i32
  }
}

</mosaic_0001>

<llo_original>
// kernel: tpu_custom_call.1
$region0: #{tpu_custom_call.1}
  #allocation0 [shape = 'u32[]', space=smem, size = 0x4, offset = 0x4, fixed_abs, tag = 'smem constant byte address 0x4 - core index']
  #allocation1 [shape = 'u32[144,128]{1,0:T(1,128)}', space=vmem, size = 0x12000, scoped, tag = 'internal scratch']
  %s0 = inlined_call_operand.hbm [shape: f32[8,8868], index: 0, kind: input, shape index: {}]
  %s1 = inlined_call_operand.hbm [shape: f32[8868,128], index: 1, kind: input, shape index: {}]
  %s2 = inlined_call_operand.hbm [shape: f32[1,128], index: 2, kind: input, shape index: {}]
  %s3 = inlined_call_operand.vmem [shape: f32[128,64], index: 3, kind: input, shape index: {}]
  %s4 = inlined_call_operand.hbm [shape: f32[1,64], index: 4, kind: input, shape index: {}]
  %s5 = inlined_call_operand.hbm [shape: f32[64,128], index: 5, kind: input, shape index: {}]
  %s6 = inlined_call_operand.hbm [shape: f32[1,128], index: 6, kind: input, shape index: {}]
  %s7 = inlined_call_operand.hbm [shape: f32[8,128], index: 7, kind: output, shape index: {}]
  %s8 = sld [smem:[#allocation0]]
  $region62: #{tpu_custom_call.1} parent=0
    _
  %s10 = ssub.s32 1, %s8
  %s11 = scalar_select 0, %s10, %s8
  $region1: #{tpu_custom_call.1} parent=0
    #allocation2 [shape = 'u8[286720]{0}', space=vmem, size = 0x46000, scoped, tag = 'input window, operand 0, single buffered']
    #allocation3 [shape = 's32[1]{0}', space=sflag, size = 0x4, scoped, tag = 'scoped memory for tpu_custom_call.1']
    #allocation4 [shape = 's32[1]{0}', space=sflag, size = 0x4, scoped, tag = 'scoped memory for tpu_custom_call.1']
    #allocation5 [shape = 'u8[4542464]{0}', space=vmem, size = 0x455000, scoped, tag = 'input window, operand 1, single buffered']
    #allocation6 [shape = 's32[1]{0}', space=sflag, size = 0x4, scoped, tag = 'scoped memory for tpu_custom_call.1']
    #allocation7 [shape = 'u8[512]{0}', space=vmem, size = 0x400, scoped, tag = 'input window, operand 2, single buffered']
    #allocation8 [shape = 'u8[512]{0}', space=vmem, size = 0x400, scoped, tag = 'input window, operand 4, single buffered']
    #allocation9 [shape = 's32[1]{0}', space=sflag, size = 0x4, scoped, tag = 'scoped memory for tpu_custom_call.1']
    #allocation10 [shape = 'u8[32768]{0}', space=vmem, size = 0x8000, scoped, tag = 'input window, operand 5, single buffered']
    #allocation11 [shape = 'u8[512]{0}', space=vmem, size = 0x400, scoped, tag = 'input window, operand 6, single buffered']
    #allocation12 [shape = 's32[1]{0}', space=sflag, size = 0x4, scoped, tag = 'scoped memory for tpu_custom_call.1']
    #allocation13 [shape = 'u8[4096]{0}', space=vmem, size = 0x1000, scoped, tag = 'output window, operand 0, single buffered']
    %12 = vsyncpa [#allocation3], 0
    %13 = vsyncpa [#allocation6], 0
    %14 = vsyncpa [#allocation9], 0
    %15 = vsyncpa [#allocation12], 0
    %16 = vsyncpa [#allocation4], 0
    // Predicated region
    $region2: #{tpu_custom_call.1} parent=1 // pred_check
      _
    $region3: #{tpu_custom_call.1} parent=1 // pred_check_branch
      %18 = sbr.rel (0) target = $region5
    $region4: #{tpu_custom_call.1} parent=1 // pred_region
      %s20 = ssub.s32 8960, 8960
      %21 = vsyncadd [#allocation3], %s20
      %s23 = sshll.u32 [#allocation2], 4
      %s24 = int_to_ptr.vmem [resolvable:$true] %s23
      %26 = dma.hbm_to_vmem [thread:$0]  %s0, 8960, %s24, [#allocation3]
    $region5: #{tpu_custom_call.1} parent=1 // pred_fallthru
      _
    // Predicated region
    $region6: #{tpu_custom_call.1} parent=1 // pred_check
      _
    $region7: #{tpu_custom_call.1} parent=1 // pred_check_branch
      %28 = sbr.rel (0) target = $region9
    $region8: #{tpu_custom_call.1} parent=1 // pred_region
      %s30 = ssub.s32 141952, 141952
      %31 = vsyncadd [#allocation6], %s30
      %s32 = sshll.u32 [#allocation5], 4
      %s33 = int_to_ptr.vmem [resolvable:$true] %s32
      %38 = dma.hbm_to_vmem [thread:$0]  %s1, 141952, %s33, [#allocation6], 128, 128, 8
    $region9: #{tpu_custom_call.1} parent=1 // pred_fallthru
      _
    // Predicated region
    $region10: #{tpu_custom_call.1} parent=1 // pred_check
      _
    $region11: #{tpu_custom_call.1} parent=1 // pred_check_branch
      %40 = sbr.rel (0) target = $region13
    $region12: #{tpu_custom_call.1} parent=1 // pred_region
      %s42 = ssub.s32 16, 16
      %43 = vsyncadd [#allocation6], %s42
      %s45 = sshll.u32 [#allocation7], 4
      %s46 = int_to_ptr.vmem [resolvable:$true] %s45
      %48 = dma.hbm_to_vmem [thread:$0]  %s2, 16, %s46, [#allocation6]
    $region13: #{tpu_custom_call.1} parent=1 // pred_fallthru
      _
    // Predicated region
    $region14: #{tpu_custom_call.1} parent=1 // pred_check
      _
    $region15: #{tpu_custom_call.1} parent=1 // pred_check_branch
      %50 = sbr.rel (0) target = $region17
    $region16: #{tpu_custom_call.1} parent=1 // pred_region
      _
    $region17: #{tpu_custom_call.1} parent=1 // pred_fallthru
      _
    // Predicated region
    $region18: #{tpu_custom_call.1} parent=1 // pred_check
      _
    $region19: #{tpu_custom_call.1} parent=1 // pred_check_branch
      %52 = sbr.rel (0) target = $region21
    $region20: #{tpu_custom_call.1} parent=1 // pred_region
      %s54 = ssub.s32 16, 16
      %55 = vsyncadd [#allocation9], %s54
      %s57 = sshll.u32 [#allocation8], 4
      %s58 = int_to_ptr.vmem [resolvable:$true] %s57
      %60 = dma.hbm_to_vmem [thread:$0]  %s4, 16, %s58, [#allocation9]
    $region21: #{tpu_custom_call.1} parent=1 // pred_fallthru
      _
    // Predicated region
    $region22: #{tpu_custom_call.1} parent=1 // pred_check
      _
    $region23: #{tpu_custom_call.1} parent=1 // pred_check_branch
      %62 = sbr.rel (0) target = $region25
    $region24: #{tpu_custom_call.1} parent=1 // pred_region
      %s64 = ssub.s32 1024, 1024
      %65 = vsyncadd [#allocation9], %s64
      %s66 = sshll.u32 [#allocation10], 4
      %s67 = int_to_ptr.vmem [resolvable:$true] %s66
      %72 = dma.hbm_to_vmem [thread:$0]  %s5, 1024, %s67, [#allocation9], 128, 128, 8
    $region25: #{tpu_custom_call.1} parent=1 // pred_fallthru
      _
    // Predicated region
    $region26: #{tpu_custom_call.1} parent=1 // pred_check
      _
    $region27: #{tpu_custom_call.1} parent=1 // pred_check_branch
      %74 = sbr.rel (0) target = $region29
    $region28: #{tpu_custom_call.1} parent=1 // pred_region
      %s76 = ssub.s32 16, 16
      %77 = vsyncadd [#allocation12], %s76
      %s79 = sshll.u32 [#allocation11], 4
      %s80 = int_to_ptr.vmem [resolvable:$true] %s79
      %82 = dma.hbm_to_vmem [thread:$0]  %s6, 16, %s80, [#allocation12]
    $region29: #{tpu_custom_call.1} parent=1 // pred_fallthru
      _
    // Predicated region
    $region30: #{tpu_custom_call.1} parent=1 // pred_check
      _
    $region31: #{tpu_custom_call.1} parent=1 // pred_check_branch
      %84 = sbr.rel (0) target = $region33
    $region32: #{tpu_custom_call.1} parent=1 // pred_region
      %85 = dma.done [#allocation3], 8960
    $region33: #{tpu_custom_call.1} parent=1 // pred_fallthru
      _
    // Predicated region
    $region34: #{tpu_custom_call.1} parent=1 // pred_check
      _
    $region35: #{tpu_custom_call.1} parent=1 // pred_check_branch
      %87 = sbr.rel (0) target = $region37
    $region36: #{tpu_custom_call.1} parent=1 // pred_region
      %88 = dma.done [#allocation6], 141952
    $region37: #{tpu_custom_call.1} parent=1 // pred_fallthru
      _
    // Predicated region
    $region38: #{tpu_custom_call.1} parent=1 // pred_check
      _
    $region39: #{tpu_custom_call.1} parent=1 // pred_check_branch
      %90 = sbr.rel (0) target = $region41
    $region40: #{tpu_custom_call.1} parent=1 // pred_region
      %91 = dma.done [#allocation6], 16
    $region41: #{tpu_custom_call.1} parent=1 // pred_fallthru
      _
    // Predicated region
    $region42: #{tpu_custom_call.1} parent=1 // pred_check
      _
    $region43: #{tpu_custom_call.1} parent=1 // pred_check_branch
      %93 = sbr.rel (0) target = $region45
    $region44: #{tpu_custom_call.1} parent=1 // pred_region
      %94 = dma.done [#allocation9], 16
    $region45: #{tpu_custom_call.1} parent=1 // pred_fallthru
      _
    // Predicated region
    $region46: #{tpu_custom_call.1} parent=1 // pred_check
      _
    $region47: #{tpu_custom_call.1} parent=1 // pred_check_branch
      %96 = sbr.rel (0) target = $region49
    $region48: #{tpu_custom_call.1} parent=1 // pred_region
      %97 = dma.done [#allocation9], 1024
    $region49: #{tpu_custom_call.1} parent=1 // pred_fallthru
      _
    // Predicated region
    $region50: #{tpu_custom_call.1} parent=1 // pred_check
      _
    $region51: #{tpu_custom_call.1} parent=1 // pred_check_branch
      %99 = sbr.rel (0) target = $region53
    $region52: #{tpu_custom_call.1} parent=1 // pred_region
      %100 = dma.done [#allocation12], 16
    $region53: #{tpu_custom_call.1} parent=1 // pred_fallthru
      _
    %v101 = vld [vmem:[#allocation2] sm:$0xff]
    %v102 = vld [vmem:[#allocation2 + $0x8] sm:$0xff]
    %v103 = vld [vmem:[#allocation2 + $0x10] sm:$0xff]
    %v104 = vld [vmem:[#allocation2 + $0x18] sm:$0xff]
    %v105 = vld [vmem:[#allocation2 + $0x20] sm:$0xff]
    %v106 = vld [vmem:[#allocation2 + $0x28] sm:$0xff]
    %v107 = vld [vmem:[#allocation2 + $0x30] sm:$0xff]
    %v108 = vld [vmem:[#allocation2 + $0x38] sm:$0xff]
    %v109 = vld [vmem:[#allocation2 + $0x40] sm:$0xff]
    %v110 = vld [vmem:[#allocation2 + $0x48] sm:$0xff]
    %v111 = vld [vmem:[#allocation2 + $0x50] sm:$0xff]
    %v112 = vld [vmem:[#allocation2 + $0x58] sm:$0xff]
    %v113 = vld [vmem:[#allocation2 + $0x60] sm:$0xff]
    %v114 = vld [vmem:[#allocation2 + $0x68] sm:$0xff]
    %v115 = vld [vmem:[#allocation2 + $0x70] sm:$0xff]
    %v116 = vld [vmem:[#allocation2 + $0x78] sm:$0xff]
    %v117 = vld [vmem:[#allocation2 + $0x80] sm:$0xff]
    %v118 = vld [vmem:[#allocation2 + $0x88] sm:$0xff]
    %v119 = vld [vmem:[#allocation2 + $0x90] sm:$0xff]
    %v120 = vld [vmem:[#allocation2 + $0x98] sm:$0xff]
    %v121 = vld [vmem:[#allocation2 + $0xa0] sm:$0xff]
    %v122 = vld [vmem:[#allocation2 + $0xa8] sm:$0xff]
    %v123 = vld [vmem:[#allocation2 + $0xb0] sm:$0xff]
    %v124 = vld [vmem:[#allocation2 + $0xb8] sm:$0xff]
    %v125 = vld [vmem:[#allocation2 + $0xc0] sm:$0xff]
    %v126 = vld [vmem:[#allocation2 + $0xc8] sm:$0xff]
    %v127 = vld [vmem:[#allocation2 + $0xd0] sm:$0xff]
    %v128 = vld [vmem:[#allocation2 + $0xd8] sm:$0xff]
    %v129 = vld [vmem:[#allocation2 + $0xe0] sm:$0xff]
    %v130 = vld [vmem:[#allocation2 + $0xe8] sm:$0xff]
    %v131 = vld [vmem:[#allocation2 + $0xf0] sm:$0xff]
    %v132 = vld [vmem:[#allocation2 + $0xf8] sm:$0xff]
    %v133 = vld [vmem:[#allocation2 + $0x100] sm:$0xff]
    %v134 = vld [vmem:[#allocation2 + $0x108] sm:$0xff]
    %v135 = vld [vmem:[#allocation2 + $0x110] sm:$0xff]
    %v136 = vld [vmem:[#allocation2 + $0x118] sm:$0xff]
    %v137 = vld [vmem:[#allocation2 + $0x120] sm:$0xff]
    %v138 = vld [vmem:[#allocation2 + $0x128] sm:$0xff]
    %v139 = vld [vmem:[#allocation2 + $0x130] sm:$0xff]
    %v140 = vld [vmem:[#allocation2 + $0x138] sm:$0xff]
    %v141 = vld [vmem:[#allocation2 + $0x140] sm:$0xff]
    %v142 = vld [vmem:[#allocation2 + $0x148] sm:$0xff]
    %v143 = vld [vmem:[#allocation2 + $0x150] sm:$0xff]
    %v144 = vld [vmem:[#allocation2 + $0x158] sm:$0xff]
    %v145 = vld [vmem:[#allocation2 + $0x160] sm:$0xff]
    %v146 = vld [vmem:[#allocation2 + $0x168] sm:$0xff]
    %v147 = vld [vmem:[#allocation2 + $0x170] sm:$0xff]
    %v148 = vld [vmem:[#allocation2 + $0x178] sm:$0xff]
    %v149 = vld [vmem:[#allocation2 + $0x180] sm:$0xff]
    %v150 = vld [vmem:[#allocation2 + $0x188] sm:$0xff]
    %v151 = vld [vmem:[#allocation2 + $0x190] sm:$0xff]
    %v152 = vld [vmem:[#allocation2 + $0x198] sm:$0xff]
    %v153 = vld [vmem:[#allocation2 + $0x1a0] sm:$0xff]
    %v154 = vld [vmem:[#allocation2 + $0x1a8] sm:$0xff]
    %v155 = vld [vmem:[#allocation2 + $0x1b0] sm:$0xff]
    %v156 = vld [vmem:[#allocation2 + $0x1b8] sm:$0xff]
    %v157 = vld [vmem:[#allocation2 + $0x1c0] sm:$0xff]
    %v158 = vld [vmem:[#allocation2 + $0x1c8] sm:$0xff]
    %v159 = vld [vmem:[#allocation2 + $0x1d0] sm:$0xff]
    %v160 = vld [vmem:[#allocation2 + $0x1d8] sm:$0xff]
    %v161 = vld [vmem:[#allocation2 + $0x1e0] sm:$0xff]
    %v162 = vld [vmem:[#allocation2 + $0x1e8] sm:$0xff]
    %v163 = vld [vmem:[#allocation2 + $0x1f0] sm:$0xff]
    %v164 = vld [vmem:[#allocation2 + $0x1f8] sm:$0xff]
    %v165 = vld [vmem:[#allocation2 + $0x200] sm:$0xff]
    %v166 = vld [vmem:[#allocation2 + $0x208] sm:$0xff]
    %v167 = vld [vmem:[#allocation2 + $0x210] sm:$0xff]
    %v168 = vld [vmem:[#allocation2 + $0x218] sm:$0xff]
    %v169 = vld [vmem:[#allocation2 + $0x220] sm:$0xff]
    %v170 = vld [vmem:[#allocation2 + $0x228] sm:$0xff]
    %v171 = vld [vmem:[#allocation5] sm:$0xff]
    %v172 = vld [vmem:[#allocation5 + $0x8] sm:$0xff]
    %v173 = vld [vmem:[#allocation5 + $0x10] sm:$0xff]
    %v174 = vld [vmem:[#allocation5 + $0x18] sm:$0xff]
    %v175 = vld [vmem:[#allocation5 + $0x20] sm:$0xff]
    %v176 = vld [vmem:[#allocation5 + $0x28] sm:$0xff]
    %v177 = vld [vmem:[#allocation5 + $0x30] sm:$0xff]
    %v178 = vld [vmem:[#allocation5 + $0x38] sm:$0xff]
    %v179 = vld [vmem:[#allocation5 + $0x40] sm:$0xff]
    %v180 = vld [vmem:[#allocation5 + $0x48] sm:$0xff]
    %v181 = vld [vmem:[#allocation5 + $0x50] sm:$0xff]
    %v182 = vld [vmem:[#allocation5 + $0x58] sm:$0xff]
    %v183 = vld [vmem:[#allocation5 + $0x60] sm:$0xff]
    %v184 = vld [vmem:[#allocation5 + $0x68] sm:$0xff]
    %v185 = vld [vmem:[#allocation5 + $0x70] sm:$0xff]
    %v186 = vld [vmem:[#allocation5 + $0x78] sm:$0xff]
    %v187 = vld [vmem:[#allocation5 + $0x80] sm:$0xff]
    %v188 = vld [vmem:[#allocation5 + $0x88] sm:$0xff]
    %v189 = vld [vmem:[#allocation5 + $0x90] sm:$0xff]
    %v190 = vld [vmem:[#allocation5 + $0x98] sm:$0xff]
    %v191 = vld [vmem:[#allocation5 + $0xa0] sm:$0xff]
    %v192 = vld [vmem:[#allocation5 + $0xa8] sm:$0xff]
    %v193 = vld [vmem:[#allocation5 + $0xb0] sm:$0xff]
    %v194 = vld [vmem:[#allocation5 + $0xb8] sm:$0xff]
    %v195 = vld [vmem:[#allocation5 + $0xc0] sm:$0xff]
    %v196 = vld [vmem:[#allocation5 + $0xc8] sm:$0xff]
    %v197 = vld [vmem:[#allocation5 + $0xd0] sm:$0xff]
    %v198 = vld [vmem:[#allocation5 + $0xd8] sm:$0xff]
    %v199 = vld [vmem:[#allocation5 + $0xe0] sm:$0xff]
    %v200 = vld [vmem:[#allocation5 + $0xe8] sm:$0xff]
    %v201 = vld [vmem:[#allocation5 + $0xf0] sm:$0xff]
    %v202 = vld [vmem:[#allocation5 + $0xf8] sm:$0xff]
    %v203 = vld [vmem:[#allocation5 + $0x100] sm:$0xff]
    %v204 = vld [vmem:[#allocation5 + $0x108] sm:$0xff]
    %v205 = vld [vmem:[#allocation5 + $0x110] sm:$0xff]
    %v206 = vld [vmem:[#allocation5 + $0x118] sm:$0xff]
    %v207 = vld [vmem:[#allocation5 + $0x120] sm:$0xff]
    %v208 = vld [vmem:[#allocation5 + $0x128] sm:$0xff]
    %v209 = vld [vmem:[#allocation5 + $0x130] sm:$0xff]
    %v210 = vld [vmem:[#allocation5 + $0x138] sm:$0xff]
    %v211 = vld [vmem:[#allocation5 + $0x140] sm:$0xff]
    %v212 = vld [vmem:[#allocation5 + $0x148] sm:$0xff]
    %v213 = vld [vmem:[#allocation5 + $0x150] sm:$0xff]
    %v214 = vld [vmem:[#allocation5 + $0x158] sm:$0xff]
    %v215 = vld [vmem:[#allocation5 + $0x160] sm:$0xff]
    %v216 = vld [vmem:[#allocation5 + $0x168] sm:$0xff]
    %v217 = vld [vmem:[#allocation5 + $0x170] sm:$0xff]
    %v218 = vld [vmem:[#allocation5 + $0x178] sm:$0xff]
    %v219 = vld [vmem:[#allocation5 + $0x180] sm:$0xff]
    %v220 = vld [vmem:[#allocation5 + $0x188] sm:$0xff]
    %v221 = vld [vmem:[#allocation5 + $0x190] sm:$0xff]
    %v222 = vld [vmem:[#allocation5 + $0x198] sm:$0xff]
    %v223 = vld [vmem:[#allocation5 + $0x1a0] sm:$0xff]
    %v224 = vld [vmem:[#allocation5 + $0x1a8] sm:$0xff]
    %v225 = vld [vmem:[#allocation5 + $0x1b0] sm:$0xff]
    %v226 = vld [vmem:[#allocation5 + $0x1b8] sm:$0xff]
    %v227 = vld [vmem:[#allocation5 + $0x1c0] sm:$0xff]
    %v228 = vld [vmem:[#allocation5 + $0x1c8] sm:$0xff]
    %v229 = vld [vmem:[#allocation5 + $0x1d0] sm:$0xff]
    %v230 = vld [vmem:[#allocation5 + $0x1d8] sm:$0xff]
    %v231 = vld [vmem:[#allocation5 + $0x1e0] sm:$0xff]
    %v232 = vld [vmem:[#allocation5 + $0x1e8] sm:$0xff]
    %v233 = vld [vmem:[#allocation5 + $0x1f0] sm:$0xff]
    %v234 = vld [vmem:[#allocation5 + $0x1f8] sm:$0xff]
    %v235 = vld [vmem:[#allocation5 + $0x200] sm:$0xff]
    %v236 = vld [vmem:[#allocation5 + $0x208] sm:$0xff]
    %v237 = vld [vmem:[#allocation5 + $0x210] sm:$0xff]
    %v238 = vld [vmem:[#allocation5 + $0x218] sm:$0xff]
    %v239 = vld [vmem:[#allocation5 + $0x220] sm:$0xff]
    %v240 = vld [vmem:[#allocation5 + $0x228] sm:$0xff]
    %v241 = vld [vmem:[#allocation5 + $0x230] sm:$0xff]
    %v242 = vld [vmem:[#allocation5 + $0x238] sm:$0xff]
    %v243 = vld [vmem:[#allocation5 + $0x240] sm:$0xff]
    %v244 = vld [vmem:[#allocation5 + $0x248] sm:$0xff]
    %v245 = vld [vmem:[#allocation5 + $0x250] sm:$0xff]
    %v246 = vld [vmem:[#allocation5 + $0x258] sm:$0xff]
    %v247 = vld [vmem:[#allocation5 + $0x260] sm:$0xff]
    %v248 = vld [vmem:[#allocation5 + $0x268] sm:$0xff]
    %v249 = vld [vmem:[#allocation5 + $0x270] sm:$0xff]
    %v250 = vld [vmem:[#allocation5 + $0x278] sm:$0xff]
    %v251 = vld [vmem:[#allocation5 + $0x280] sm:$0xff]
    %v252 = vld [vmem:[#allocation5 + $0x288] sm:$0xff]
    %v253 = vld [vmem:[#allocation5 + $0x290] sm:$0xff]
    %v254 = vld [vmem:[#allocation5 + $0x298] sm:$0xff]
    %v255 = vld [vmem:[#allocation5 + $0x2a0] sm:$0xff]
    %v256 = vld [vmem:[#allocation5 + $0x2a8] sm:$0xff]
    %v257 = vld [vmem:[#allocation5 + $0x2b0] sm:$0xff]
    %v258 = vld [vmem:[#allocation5 + $0x2b8] sm:$0xff]
    %v259 = vld [vmem:[#allocation5 + $0x2c0] sm:$0xff]
    %v260 = vld [vmem:[#allocation5 + $0x2c8] sm:$0xff]
    %v261 = vld [vmem:[#allocation5 + $0x2d0] sm:$0xff]
    %v262 = vld [vmem:[#allocation5 + $0x2d8] sm:$0xff]
    %v263 = vld [vmem:[#allocation5 + $0x2e0] sm:$0xff]
    %v264 = vld [vmem:[#allocation5 + $0x2e8] sm:$0xff]
    %v265 = vld [vmem:[#allocation5 + $0x2f0] sm:$0xff]
    %v266 = vld [vmem:[#allocation5 + $0x2f8] sm:$0xff]
    %v267 = vld [vmem:[#allocation5 + $0x300] sm:$0xff]
    %v268 = vld [vmem:[#allocation5 + $0x308] sm:$0xff]
    %v269 = vld [vmem:[#allocation5 + $0x310] sm:$0xff]
    %v270 = vld [vmem:[#allocation5 + $0x318] sm:$0xff]
    %v271 = vld [vmem:[#allocation5 + $0x320] sm:$0xff]
    %v272 = vld [vmem:[#allocation5 + $0x328] sm:$0xff]
    %v273 = vld [vmem:[#allocation5 + $0x330] sm:$0xff]
    %v274 = vld [vmem:[#allocation5 + $0x338] sm:$0xff]
    %v275 = vld [vmem:[#allocation5 + $0x340] sm:$0xff]
    %v276 = vld [vmem:[#allocation5 + $0x348] sm:$0xff]
    %v277 = vld [vmem:[#allocation5 + $0x350] sm:$0xff]
    %v278 = vld [vmem:[#allocation5 + $0x358] sm:$0xff]
    %v279 = vld [vmem:[#allocation5 + $0x360] sm:$0xff]
    %v280 = vld [vmem:[#allocation5 + $0x368] sm:$0xff]
    %v281 = vld [vmem:[#allocation5 + $0x370] sm:$0xff]
    %v282 = vld [vmem:[#allocation5 + $0x378] sm:$0xff]
    %v283 = vld [vmem:[#allocation5 + $0x380] sm:$0xff]
    %v284 = vld [vmem:[#allocation5 + $0x388] sm:$0xff]
    %v285 = vld [vmem:[#allocation5 + $0x390] sm:$0xff]
    %v286 = vld [vmem:[#allocation5 + $0x398] sm:$0xff]
    %v287 = vld [vmem:[#allocation5 + $0x3a0] sm:$0xff]
    %v288 = vld [vmem:[#allocation5 + $0x3a8] sm:$0xff]
    %v289 = vld [vmem:[#allocation5 + $0x3b0] sm:$0xff]
    %v290 = vld [vmem:[#allocation5 + $0x3b8] sm:$0xff]
    %v291 = vld [vmem:[#allocation5 + $0x3c0] sm:$0xff]
    %v292 = vld [vmem:[#allocation5 + $0x3c8] sm:$0xff]
    %v293 = vld [vmem:[#allocation5 + $0x3d0] sm:$0xff]
    %v294 = vld [vmem:[#allocation5 + $0x3d8] sm:$0xff]
    %v295 = vld [vmem:[#allocation5 + $0x3e0] sm:$0xff]
    %v296 = vld [vmem:[#allocation5 + $0x3e8] sm:$0xff]
    %v297 = vld [vmem:[#allocation5 + $0x3f0] sm:$0xff]
    %v298 = vld [vmem:[#allocation5 + $0x3f8] sm:$0xff]
    %v299 = vld [vmem:[#allocation5 + $0x400] sm:$0xff]
    %v300 = vld [vmem:[#allocation5 + $0x408] sm:$0xff]
    %v301 = vld [vmem:[#allocation5 + $0x410] sm:$0xff]
    %v302 = vld [vmem:[#allocation5 + $0x418] sm:$0xff]
    %v303 = vld [vmem:[#allocation5 + $0x420] sm:$0xff]
    %v304 = vld [vmem:[#allocation5 + $0x428] sm:$0xff]
    %v305 = vld [vmem:[#allocation5 + $0x430] sm:$0xff]
    %v306 = vld [vmem:[#allocation5 + $0x438] sm:$0xff]
    %v307 = vld [vmem:[#allocation5 + $0x440] sm:$0xff]
    %v308 = vld [vmem:[#allocation5 + $0x448] sm:$0xff]
    %v309 = vld [vmem:[#allocation5 + $0x450] sm:$0xff]
    %v310 = vld [vmem:[#allocation5 + $0x458] sm:$0xff]
    %v311 = vld [vmem:[#allocation5 + $0x460] sm:$0xff]
    %v312 = vld [vmem:[#allocation5 + $0x468] sm:$0xff]
    %v313 = vld [vmem:[#allocation5 + $0x470] sm:$0xff]
    %v314 = vld [vmem:[#allocation5 + $0x478] sm:$0xff]
    %v315 = vld [vmem:[#allocation5 + $0x480] sm:$0xff]
    %v316 = vld [vmem:[#allocation5 + $0x488] sm:$0xff]
    %v317 = vld [vmem:[#allocation5 + $0x490] sm:$0xff]
    %v318 = vld [vmem:[#allocation5 + $0x498] sm:$0xff]
    %v319 = vld [vmem:[#allocation5 + $0x4a0] sm:$0xff]
    %v320 = vld [vmem:[#allocation5 + $0x4a8] sm:$0xff]
    %v321 = vld [vmem:[#allocation5 + $0x4b0] sm:$0xff]
    %v322 = vld [vmem:[#allocation5 + $0x4b8] sm:$0xff]
    %v323 = vld [vmem:[#allocation5 + $0x4c0] sm:$0xff]
    %v324 = vld [vmem:[#allocation5 + $0x4c8] sm:$0xff]
    %v325 = vld [vmem:[#allocation5 + $0x4d0] sm:$0xff]
    %v326 = vld [vmem:[#allocation5 + $0x4d8] sm:$0xff]
    %v327 = vld [vmem:[#allocation5 + $0x4e0] sm:$0xff]
    %v328 = vld [vmem:[#allocation5 + $0x4e8] sm:$0xff]
    %v329 = vld [vmem:[#allocation5 + $0x4f0] sm:$0xff]
    %v330 = vld [vmem:[#allocation5 + $0x4f8] sm:$0xff]
    %v331 = vld [vmem:[#allocation5 + $0x500] sm:$0xff]
    %v332 = vld [vmem:[#allocation5 + $0x508] sm:$0xff]
    %v333 = vld [vmem:[#allocation5 + $0x510] sm:$0xff]
    %v334 = vld [vmem:[#allocation5 + $0x518] sm:$0xff]
    %v335 = vld [vmem:[#allocation5 + $0x520] sm:$0xff]
    %v336 = vld [vmem:[#allocation5 + $0x528] sm:$0xff]
    %v337 = vld [vmem:[#allocation5 + $0x530] sm:$0xff]
    %v338 = vld [vmem:[#allocation5 + $0x538] sm:$0xff]
    %v339 = vld [vmem:[#allocation5 + $0x540] sm:$0xff]
    %v340 = vld [vmem:[#allocation5 + $0x548] sm:$0xff]
    %v341 = vld [vmem:[#allocation5 + $0x550] sm:$0xff]
    %v342 = vld [vmem:[#allocation5 + $0x558] sm:$0xff]
    %v343 = vld [vmem:[#allocation5 + $0x560] sm:$0xff]
    %v344 = vld [vmem:[#allocation5 + $0x568] sm:$0xff]
    %v345 = vld [vmem:[#allocation5 + $0x570] sm:$0xff]
    %v346 = vld [vmem:[#allocation5 + $0x578] sm:$0xff]
    %v347 = vld [vmem:[#allocation5 + $0x580] sm:$0xff]
    %v348 = vld [vmem:[#allocation5 + $0x588] sm:$0xff]
    %v349 = vld [vmem:[#allocation5 + $0x590] sm:$0xff]
    %v350 = vld [vmem:[#allocation5 + $0x598] sm:$0xff]
    %v351 = vld [vmem:[#allocation5 + $0x5a0] sm:$0xff]
    %v352 = vld [vmem:[#allocation5 + $0x5a8] sm:$0xff]
    %v353 = vld [vmem:[#allocation5 + $0x5b0] sm:$0xff]
    %v354 = vld [vmem:[#allocation5 + $0x5b8] sm:$0xff]
    %v355 = vld [vmem:[#allocation5 + $0x5c0] sm:$0xff]
    %v356 = vld [vmem:[#allocation5 + $0x5c8] sm:$0xff]
    %v357 = vld [vmem:[#allocation5 + $0x5d0] sm:$0xff]
    %v358 = vld [vmem:[#allocation5 + $0x5d8] sm:$0xff]
    %v359 = vld [vmem:[#allocation5 + $0x5e0] sm:$0xff]
    %v360 = vld [vmem:[#allocation5 + $0x5e8] sm:$0xff]
    %v361 = vld [vmem:[#allocation5 + $0x5f0] sm:$0xff]
    %v362 = vld [vmem:[#allocation5 + $0x5f8] sm:$0xff]
    %v363 = vld [vmem:[#allocation5 + $0x600] sm:$0xff]
    %v364 = vld [vmem:[#allocation5 + $0x608] sm:$0xff]
    %v365 = vld [vmem:[#allocation5 + $0x610] sm:$0xff]
    %v366 = vld [vmem:[#allocation5 + $0x618] sm:$0xff]
    %v367 = vld [vmem:[#allocation5 + $0x620] sm:$0xff]
    %v368 = vld [vmem:[#allocation5 + $0x628] sm:$0xff]
    %v369 = vld [vmem:[#allocation5 + $0x630] sm:$0xff]
    %v370 = vld [vmem:[#allocation5 + $0x638] sm:$0xff]
    %v371 = vld [vmem:[#allocation5 + $0x640] sm:$0xff]
    %v372 = vld [vmem:[#allocation5 + $0x648] sm:$0xff]
    %v373 = vld [vmem:[#allocation5 + $0x650] sm:$0xff]
    %v374 = vld [vmem:[#allocation5 + $0x658] sm:$0xff]
    %v375 = vld [vmem:[#allocation5 + $0x660] sm:$0xff]
    %v376 = vld [vmem:[#allocation5 + $0x668] sm:$0xff]
    %v377 = vld [vmem:[#allocation5 + $0x670] sm:$0xff]
    %v378 = vld [vmem:[#allocation5 + $0x678] sm:$0xff]
    %v379 = vld [vmem:[#allocation5 + $0x680] sm:$0xff]
    %v380 = vld [vmem:[#allocation5 + $0x688] sm:$0xff]
    %v381 = vld [vmem:[#allocation5 + $0x690] sm:$0xff]
    %v382 = vld [vmem:[#allocation5 + $0x698] sm:$0xff]
    %v383 = vld [vmem:[#allocation5 + $0x6a0] sm:$0xff]
    %v384 = vld [vmem:[#allocation5 + $0x6a8] sm:$0xff]
    %v385 = vld [vmem:[#allocation5 + $0x6b0] sm:$0xff]
    %v386 = vld [vmem:[#allocation5 + $0x6b8] sm:$0xff]
    %v387 = vld [vmem:[#allocation5 + $0x6c0] sm:$0xff]
    %v388 = vld [vmem:[#allocation5 + $0x6c8] sm:$0xff]
    %v389 = vld [vmem:[#allocation5 + $0x6d0] sm:$0xff]
    %v390 = vld [vmem:[#allocation5 + $0x6d8] sm:$0xff]
    %v391 = vld [vmem:[#allocation5 + $0x6e0] sm:$0xff]
    %v392 = vld [vmem:[#allocation5 + $0x6e8] sm:$0xff]
    %v393 = vld [vmem:[#allocation5 + $0x6f0] sm:$0xff]
    %v394 = vld [vmem:[#allocation5 + $0x6f8] sm:$0xff]
    %v395 = vld [vmem:[#allocation5 + $0x700] sm:$0xff]
    %v396 = vld [vmem:[#allocation5 + $0x708] sm:$0xff]
    %v397 = vld [vmem:[#allocation5 + $0x710] sm:$0xff]
    %v398 = vld [vmem:[#allocation5 + $0x718] sm:$0xff]
    %v399 = vld [vmem:[#allocation5 + $0x720] sm:$0xff]
    %v400 = vld [vmem:[#allocation5 + $0x728] sm:$0xff]
    %v401 = vld [vmem:[#allocation5 + $0x730] sm:$0xff]
    %v402 = vld [vmem:[#allocation5 + $0x738] sm:$0xff]
    %v403 = vld [vmem:[#allocation5 + $0x740] sm:$0xff]
    %v404 = vld [vmem:[#allocation5 + $0x748] sm:$0xff]
    %v405 = vld [vmem:[#allocation5 + $0x750] sm:$0xff]
    %v406 = vld [vmem:[#allocation5 + $0x758] sm:$0xff]
    %v407 = vld [vmem:[#allocation5 + $0x760] sm:$0xff]
    %v408 = vld [vmem:[#allocation5 + $0x768] sm:$0xff]
    %v409 = vld [vmem:[#allocation5 + $0x770] sm:$0xff]
    %v410 = vld [vmem:[#allocation5 + $0x778] sm:$0xff]
    %v411 = vld [vmem:[#allocation5 + $0x780] sm:$0xff]
    %v412 = vld [vmem:[#allocation5 + $0x788] sm:$0xff]
    %v413 = vld [vmem:[#allocation5 + $0x790] sm:$0xff]
    %v414 = vld [vmem:[#allocation5 + $0x798] sm:$0xff]
    %v415 = vld [vmem:[#allocation5 + $0x7a0] sm:$0xff]
    %v416 = vld [vmem:[#allocation5 + $0x7a8] sm:$0xff]
    %v417 = vld [vmem:[#allocation5 + $0x7b0] sm:$0xff]
    %v418 = vld [vmem:[#allocation5 + $0x7b8] sm:$0xff]
    %v419 = vld [vmem:[#allocation5 + $0x7c0] sm:$0xff]
    %v420 = vld [vmem:[#allocation5 + $0x7c8] sm:$0xff]
    %v421 = vld [vmem:[#allocation5 + $0x7d0] sm:$0xff]
    %v422 = vld [vmem:[#allocation5 + $0x7d8] sm:$0xff]
    %v423 = vld [vmem:[#allocation5 + $0x7e0] sm:$0xff]
    %v424 = vld [vmem:[#allocation5 + $0x7e8] sm:$0xff]
    %v425 = vld [vmem:[#allocation5 + $0x7f0] sm:$0xff]
    %v426 = vld [vmem:[#allocation5 + $0x7f8] sm:$0xff]
    %v427 = vld [vmem:[#allocation5 + $0x800] sm:$0xff]
    %v428 = vld [vmem:[#allocation5 + $0x808] sm:$0xff]
    %v429 = vld [vmem:[#allocation5 + $0x810] sm:$0xff]
    %v430 = vld [vmem:[#allocation5 + $0x818] sm:$0xff]
    %v431 = vld [vmem:[#allocation5 + $0x820] sm:$0xff]
    %v432 = vld [vmem:[#allocation5 + $0x828] sm:$0xff]
    %v433 = vld [vmem:[#allocation5 + $0x830] sm:$0xff]
    %v434 = vld [vmem:[#allocation5 + $0x838] sm:$0xff]
    %v435 = vld [vmem:[#allocation5 + $0x840] sm:$0xff]
    %v436 = vld [vmem:[#allocation5 + $0x848] sm:$0xff]
    %v437 = vld [vmem:[#allocation5 + $0x850] sm:$0xff]
    %v438 = vld [vmem:[#allocation5 + $0x858] sm:$0xff]
    %v439 = vld [vmem:[#allocation5 + $0x860] sm:$0xff]
    %v440 = vld [vmem:[#allocation5 + $0x868] sm:$0xff]
    %v441 = vld [vmem:[#allocation5 + $0x870] sm:$0xff]
    %v442 = vld [vmem:[#allocation5 + $0x878] sm:$0xff]
    %v443 = vld [vmem:[#allocation5 + $0x880] sm:$0xff]
    %v444 = vld [vmem:[#allocation5 + $0x888] sm:$0xff]
    %v445 = vld [vmem:[#allocation5 + $0x890] sm:$0xff]
    %v446 = vld [vmem:[#allocation5 + $0x898] sm:$0xff]
    %v447 = vld [vmem:[#allocation5 + $0x8a0] sm:$0xff]
    %v448 = vld [vmem:[#allocation5 + $0x8a8] sm:$0xff]
    %v449 = vld [vmem:[#allocation5 + $0x8b0] sm:$0xff]
    %v450 = vld [vmem:[#allocation5 + $0x8b8] sm:$0xff]
    %v451 = vld [vmem:[#allocation5 + $0x8c0] sm:$0xff]
    %v452 = vld [vmem:[#allocation5 + $0x8c8] sm:$0xff]
    %v453 = vld [vmem:[#allocation5 + $0x8d0] sm:$0xff]
    %v454 = vld [vmem:[#allocation5 + $0x8d8] sm:$0xff]
    %v455 = vld [vmem:[#allocation5 + $0x8e0] sm:$0xff]
    %v456 = vld [vmem:[#allocation5 + $0x8e8] sm:$0xff]
    %v457 = vld [vmem:[#allocation5 + $0x8f0] sm:$0xff]
    %v458 = vld [vmem:[#allocation5 + $0x8f8] sm:$0xff]
    %v459 = vld [vmem:[#allocation5 + $0x900] sm:$0xff]
    %v460 = vld [vmem:[#allocation5 + $0x908] sm:$0xff]
    %v461 = vld [vmem:[#allocation5 + $0x910] sm:$0xff]
    %v462 = vld [vmem:[#allocation5 + $0x918] sm:$0xff]
    %v463 = vld [vmem:[#allocation5 + $0x920] sm:$0xff]
    %v464 = vld [vmem:[#allocation5 + $0x928] sm:$0xff]
    %v465 = vld [vmem:[#allocation5 + $0x930] sm:$0xff]
    %v466 = vld [vmem:[#allocation5 + $0x938] sm:$0xff]
    %v467 = vld [vmem:[#allocation5 + $0x940] sm:$0xff]
    %v468 = vld [vmem:[#allocation5 + $0x948] sm:$0xff]
    %v469 = vld [vmem:[#allocation5 + $0x950] sm:$0xff]
    %v470 = vld [vmem:[#allocation5 + $0x958] sm:$0xff]
    %v471 = vld [vmem:[#allocation5 + $0x960] sm:$0xff]
    %v472 = vld [vmem:[#allocation5 + $0x968] sm:$0xff]
    %v473 = vld [vmem:[#allocation5 + $0x970] sm:$0xff]
    %v474 = vld [vmem:[#allocation5 + $0x978] sm:$0xff]
    %v475 = vld [vmem:[#allocation5 + $0x980] sm:$0xff]
    %v476 = vld [vmem:[#allocation5 + $0x988] sm:$0xff]
    %v477 = vld [vmem:[#allocation5 + $0x990] sm:$0xff]
    %v478 = vld [vmem:[#allocation5 + $0x998] sm:$0xff]
    %v479 = vld [vmem:[#allocation5 + $0x9a0] sm:$0xff]
    %v480 = vld [vmem:[#allocation5 + $0x9a8] sm:$0xff]
    %v481 = vld [vmem:[#allocation5 + $0x9b0] sm:$0xff]
    %v482 = vld [vmem:[#allocation5 + $0x9b8] sm:$0xff]
    %v483 = vld [vmem:[#allocation5 + $0x9c0] sm:$0xff]
    %v484 = vld [vmem:[#allocation5 + $0x9c8] sm:$0xff]
    %v485 = vld [vmem:[#allocation5 + $0x9d0] sm:$0xff]
    %v486 = vld [vmem:[#allocation5 + $0x9d8] sm:$0xff]
    %v487 = vld [vmem:[#allocation5 + $0x9e0] sm:$0xff]
    %v488 = vld [vmem:[#allocation5 + $0x9e8] sm:$0xff]
    %v489 = vld [vmem:[#allocation5 + $0x9f0] sm:$0xff]
    %v490 = vld [vmem:[#allocation5 + $0x9f8] sm:$0xff]
    %v491 = vld [vmem:[#allocation5 + $0xa00] sm:$0xff]
    %v492 = vld [vmem:[#allocation5 + $0xa08] sm:$0xff]
    %v493 = vld [vmem:[#allocation5 + $0xa10] sm:$0xff]
    %v494 = vld [vmem:[#allocation5 + $0xa18] sm:$0xff]
    %v495 = vld [vmem:[#allocation5 + $0xa20] sm:$0xff]
    %v496 = vld [vmem:[#allocation5 + $0xa28] sm:$0xff]
    %v497 = vld [vmem:[#allocation5 + $0xa30] sm:$0xff]
    %v498 = vld [vmem:[#allocation5 + $0xa38] sm:$0xff]
    %v499 = vld [vmem:[#allocation5 + $0xa40] sm:$0xff]
    %v500 = vld [vmem:[#allocation5 + $0xa48] sm:$0xff]
    %v501 = vld [vmem:[#allocation5 + $0xa50] sm:$0xff]
    %v502 = vld [vmem:[#allocation5 + $0xa58] sm:$0xff]
    %v503 = vld [vmem:[#allocation5 + $0xa60] sm:$0xff]
    %v504 = vld [vmem:[#allocation5 + $0xa68] sm:$0xff]
    %v505 = vld [vmem:[#allocation5 + $0xa70] sm:$0xff]
    %v506 = vld [vmem:[#allocation5 + $0xa78] sm:$0xff]
    %v507 = vld [vmem:[#allocation5 + $0xa80] sm:$0xff]
    %v508 = vld [vmem:[#allocation5 + $0xa88] sm:$0xff]
    %v509 = vld [vmem:[#allocation5 + $0xa90] sm:$0xff]
    %v510 = vld [vmem:[#allocation5 + $0xa98] sm:$0xff]
    %v511 = vld [vmem:[#allocation5 + $0xaa0] sm:$0xff]
    %v512 = vld [vmem:[#allocation5 + $0xaa8] sm:$0xff]
    %v513 = vld [vmem:[#allocation5 + $0xab0] sm:$0xff]
    %v514 = vld [vmem:[#allocation5 + $0xab8] sm:$0xff]
    %v515 = vld [vmem:[#allocation5 + $0xac0] sm:$0xff]
    %v516 = vld [vmem:[#allocation5 + $0xac8] sm:$0xff]
    %v517 = vld [vmem:[#allocation5 + $0xad0] sm:$0xff]
    %v518 = vld [vmem:[#allocation5 + $0xad8] sm:$0xff]
    %v519 = vld [vmem:[#allocation5 + $0xae0] sm:$0xff]
    %v520 = vld [vmem:[#allocation5 + $0xae8] sm:$0xff]
    %v521 = vld [vmem:[#allocation5 + $0xaf0] sm:$0xff]
    %v522 = vld [vmem:[#allocation5 + $0xaf8] sm:$0xff]
    %v523 = vld [vmem:[#allocation5 + $0xb00] sm:$0xff]
    %v524 = vld [vmem:[#allocation5 + $0xb08] sm:$0xff]
    %v525 = vld [vmem:[#allocation5 + $0xb10] sm:$0xff]
    %v526 = vld [vmem:[#allocation5 + $0xb18] sm:$0xff]
    %v527 = vld [vmem:[#allocation5 + $0xb20] sm:$0xff]
    %v528 = vld [vmem:[#allocation5 + $0xb28] sm:$0xff]
    %v529 = vld [vmem:[#allocation5 + $0xb30] sm:$0xff]
    %v530 = vld [vmem:[#allocation5 + $0xb38] sm:$0xff]
    %v531 = vld [vmem:[#allocation5 + $0xb40] sm:$0xff]
    %v532 = vld [vmem:[#allocation5 + $0xb48] sm:$0xff]
    %v533 = vld [vmem:[#allocation5 + $0xb50] sm:$0xff]
    %v534 = vld [vmem:[#allocation5 + $0xb58] sm:$0xff]
    %v535 = vld [vmem:[#allocation5 + $0xb60] sm:$0xff]
    %v536 = vld [vmem:[#allocation5 + $0xb68] sm:$0xff]
    %v537 = vld [vmem:[#allocation5 + $0xb70] sm:$0xff]
    %v538 = vld [vmem:[#allocation5 + $0xb78] sm:$0xff]
    %v539 = vld [vmem:[#allocation5 + $0xb80] sm:$0xff]
    %v540 = vld [vmem:[#allocation5 + $0xb88] sm:$0xff]
    %v541 = vld [vmem:[#allocation5 + $0xb90] sm:$0xff]
    %v542 = vld [vmem:[#allocation5 + $0xb98] sm:$0xff]
    %v543 = vld [vmem:[#allocation5 + $0xba0] sm:$0xff]
    %v544 = vld [vmem:[#allocation5 + $0xba8] sm:$0xff]
    %v545 = vld [vmem:[#allocation5 + $0xbb0] sm:$0xff]
    %v546 = vld [vmem:[#allocation5 + $0xbb8] sm:$0xff]
    %v547 = vld [vmem:[#allocation5 + $0xbc0] sm:$0xff]
    %v548 = vld [vmem:[#allocation5 + $0xbc8] sm:$0xff]
    %v549 = vld [vmem:[#allocation5 + $0xbd0] sm:$0xff]
    %v550 = vld [vmem:[#allocation5 + $0xbd8] sm:$0xff]
    %v551 = vld [vmem:[#allocation5 + $0xbe0] sm:$0xff]
    %v552 = vld [vmem:[#allocation5 + $0xbe8] sm:$0xff]
    %v553 = vld [vmem:[#allocation5 + $0xbf0] sm:$0xff]
    %v554 = vld [vmem:[#allocation5 + $0xbf8] sm:$0xff]
    %v555 = vld [vmem:[#allocation5 + $0xc00] sm:$0xff]
    %v556 = vld [vmem:[#allocation5 + $0xc08] sm:$0xff]
    %v557 = vld [vmem:[#allocation5 + $0xc10] sm:$0xff]
    %v558 = vld [vmem:[#allocation5 + $0xc18] sm:$0xff]
    %v559 = vld [vmem:[#allocation5 + $0xc20] sm:$0xff]
    %v560 = vld [vmem:[#allocation5 + $0xc28] sm:$0xff]
    %v561 = vld [vmem:[#allocation5 + $0xc30] sm:$0xff]
    %v562 = vld [vmem:[#allocation5 + $0xc38] sm:$0xff]
    %v563 = vld [vmem:[#allocation5 + $0xc40] sm:$0xff]
    %v564 = vld [vmem:[#allocation5 + $0xc48] sm:$0xff]
    %v565 = vld [vmem:[#allocation5 + $0xc50] sm:$0xff]
    %v566 = vld [vmem:[#allocation5 + $0xc58] sm:$0xff]
    %v567 = vld [vmem:[#allocation5 + $0xc60] sm:$0xff]
    %v568 = vld [vmem:[#allocation5 + $0xc68] sm:$0xff]
    %v569 = vld [vmem:[#allocation5 + $0xc70] sm:$0xff]
    %v570 = vld [vmem:[#allocation5 + $0xc78] sm:$0xff]
    %v571 = vld [vmem:[#allocation5 + $0xc80] sm:$0xff]
    %v572 = vld [vmem:[#allocation5 + $0xc88] sm:$0xff]
    %v573 = vld [vmem:[#allocation5 + $0xc90] sm:$0xff]
    %v574 = vld [vmem:[#allocation5 + $0xc98] sm:$0xff]
    %v575 = vld [vmem:[#allocation5 + $0xca0] sm:$0xff]
    %v576 = vld [vmem:[#allocation5 + $0xca8] sm:$0xff]
    %v577 = vld [vmem:[#allocation5 + $0xcb0] sm:$0xff]
    %v578 = vld [vmem:[#allocation5 + $0xcb8] sm:$0xff]
    %v579 = vld [vmem:[#allocation5 + $0xcc0] sm:$0xff]
    %v580 = vld [vmem:[#allocation5 + $0xcc8] sm:$0xff]
    %v581 = vld [vmem:[#allocation5 + $0xcd0] sm:$0xff]
    %v582 = vld [vmem:[#allocation5 + $0xcd8] sm:$0xff]
    %v583 = vld [vmem:[#allocation5 + $0xce0] sm:$0xff]
    %v584 = vld [vmem:[#allocation5 + $0xce8] sm:$0xff]
    %v585 = vld [vmem:[#allocation5 + $0xcf0] sm:$0xff]
    %v586 = vld [vmem:[#allocation5 + $0xcf8] sm:$0xff]
    %v587 = vld [vmem:[#allocation5 + $0xd00] sm:$0xff]
    %v588 = vld [vmem:[#allocation5 + $0xd08] sm:$0xff]
    %v589 = vld [vmem:[#allocation5 + $0xd10] sm:$0xff]
    %v590 = vld [vmem:[#allocation5 + $0xd18] sm:$0xff]
    %v591 = vld [vmem:[#allocation5 + $0xd20] sm:$0xff]
    %v592 = vld [vmem:[#allocation5 + $0xd28] sm:$0xff]
    %v593 = vld [vmem:[#allocation5 + $0xd30] sm:$0xff]
    %v594 = vld [vmem:[#allocation5 + $0xd38] sm:$0xff]
    %v595 = vld [vmem:[#allocation5 + $0xd40] sm:$0xff]
    %v596 = vld [vmem:[#allocation5 + $0xd48] sm:$0xff]
    %v597 = vld [vmem:[#allocation5 + $0xd50] sm:$0xff]
    %v598 = vld [vmem:[#allocation5 + $0xd58] sm:$0xff]
    %v599 = vld [vmem:[#allocation5 + $0xd60] sm:$0xff]
    %v600 = vld [vmem:[#allocation5 + $0xd68] sm:$0xff]
    %v601 = vld [vmem:[#allocation5 + $0xd70] sm:$0xff]
    %v602 = vld [vmem:[#allocation5 + $0xd78] sm:$0xff]
    %v603 = vld [vmem:[#allocation5 + $0xd80] sm:$0xff]
    %v604 = vld [vmem:[#allocation5 + $0xd88] sm:$0xff]
    %v605 = vld [vmem:[#allocation5 + $0xd90] sm:$0xff]
    %v606 = vld [vmem:[#allocation5 + $0xd98] sm:$0xff]
    %v607 = vld [vmem:[#allocation5 + $0xda0] sm:$0xff]
    %v608 = vld [vmem:[#allocation5 + $0xda8] sm:$0xff]
    %v609 = vld [vmem:[#allocation5 + $0xdb0] sm:$0xff]
    %v610 = vld [vmem:[#allocation5 + $0xdb8] sm:$0xff]
    %v611 = vld [vmem:[#allocation5 + $0xdc0] sm:$0xff]
    %v612 = vld [vmem:[#allocation5 + $0xdc8] sm:$0xff]
    %v613 = vld [vmem:[#allocation5 + $0xdd0] sm:$0xff]
    %v614 = vld [vmem:[#allocation5 + $0xdd8] sm:$0xff]
    %v615 = vld [vmem:[#allocation5 + $0xde0] sm:$0xff]
    %v616 = vld [vmem:[#allocation5 + $0xde8] sm:$0xff]
    %v617 = vld [vmem:[#allocation5 + $0xdf0] sm:$0xff]
    %v618 = vld [vmem:[#allocation5 + $0xdf8] sm:$0xff]
    %v619 = vld [vmem:[#allocation5 + $0xe00] sm:$0xff]
    %v620 = vld [vmem:[#allocation5 + $0xe08] sm:$0xff]
    %v621 = vld [vmem:[#allocation5 + $0xe10] sm:$0xff]
    %v622 = vld [vmem:[#allocation5 + $0xe18] sm:$0xff]
    %v623 = vld [vmem:[#allocation5 + $0xe20] sm:$0xff]
    %v624 = vld [vmem:[#allocation5 + $0xe28] sm:$0xff]
    %v625 = vld [vmem:[#allocation5 + $0xe30] sm:$0xff]
    %v626 = vld [vmem:[#allocation5 + $0xe38] sm:$0xff]
    %v627 = vld [vmem:[#allocation5 + $0xe40] sm:$0xff]
    %v628 = vld [vmem:[#allocation5 + $0xe48] sm:$0xff]
    %v629 = vld [vmem:[#allocation5 + $0xe50] sm:$0xff]
    %v630 = vld [vmem:[#allocation5 + $0xe58] sm:$0xff]
    %v631 = vld [vmem:[#allocation5 + $0xe60] sm:$0xff]
    %v632 = vld [vmem:[#allocation5 + $0xe68] sm:$0xff]
    %v633 = vld [vmem:[#allocation5 + $0xe70] sm:$0xff]
    %v634 = vld [vmem:[#allocation5 + $0xe78] sm:$0xff]
    %v635 = vld [vmem:[#allocation5 + $0xe80] sm:$0xff]
    %v636 = vld [vmem:[#allocation5 + $0xe88] sm:$0xff]
    %v637 = vld [vmem:[#allocation5 + $0xe90] sm:$0xff]
    %v638 = vld [vmem:[#allocation5 + $0xe98] sm:$0xff]
    %v639 = vld [vmem:[#allocation5 + $0xea0] sm:$0xff]
    %v640 = vld [vmem:[#allocation5 + $0xea8] sm:$0xff]
    %v641 = vld [vmem:[#allocation5 + $0xeb0] sm:$0xff]
    %v642 = vld [vmem:[#allocation5 + $0xeb8] sm:$0xff]
    %v643 = vld [vmem:[#allocation5 + $0xec0] sm:$0xff]
    %v644 = vld [vmem:[#allocation5 + $0xec8] sm:$0xff]
    %v645 = vld [vmem:[#allocation5 + $0xed0] sm:$0xff]
    %v646 = vld [vmem:[#allocation5 + $0xed8] sm:$0xff]
    %v647 = vld [vmem:[#allocation5 + $0xee0] sm:$0xff]
    %v648 = vld [vmem:[#allocation5 + $0xee8] sm:$0xff]
    %v649 = vld [vmem:[#allocation5 + $0xef0] sm:$0xff]
    %v650 = vld [vmem:[#allocation5 + $0xef8] sm:$0xff]
    %v651 = vld [vmem:[#allocation5 + $0xf00] sm:$0xff]
    %v652 = vld [vmem:[#allocation5 + $0xf08] sm:$0xff]
    %v653 = vld [vmem:[#allocation5 + $0xf10] sm:$0xff]
    %v654 = vld [vmem:[#allocation5 + $0xf18] sm:$0xff]
    %v655 = vld [vmem:[#allocation5 + $0xf20] sm:$0xff]
    %v656 = vld [vmem:[#allocation5 + $0xf28] sm:$0xff]
    %v657 = vld [vmem:[#allocation5 + $0xf30] sm:$0xff]
    %v658 = vld [vmem:[#allocation5 + $0xf38] sm:$0xff]
    %v659 = vld [vmem:[#allocation5 + $0xf40] sm:$0xff]
    %v660 = vld [vmem:[#allocation5 + $0xf48] sm:$0xff]
    %v661 = vld [vmem:[#allocation5 + $0xf50] sm:$0xff]
    %v662 = vld [vmem:[#allocation5 + $0xf58] sm:$0xff]
    %v663 = vld [vmem:[#allocation5 + $0xf60] sm:$0xff]
    %v664 = vld [vmem:[#allocation5 + $0xf68] sm:$0xff]
    %v665 = vld [vmem:[#allocation5 + $0xf70] sm:$0xff]
    %v666 = vld [vmem:[#allocation5 + $0xf78] sm:$0xff]
    %v667 = vld [vmem:[#allocation5 + $0xf80] sm:$0xff]
    %v668 = vld [vmem:[#allocation5 + $0xf88] sm:$0xff]
    %v669 = vld [vmem:[#allocation5 + $0xf90] sm:$0xff]
    %v670 = vld [vmem:[#allocation5 + $0xf98] sm:$0xff]
    %v671 = vld [vmem:[#allocation5 + $0xfa0] sm:$0xff]
    %v672 = vld [vmem:[#allocation5 + $0xfa8] sm:$0xff]
    %v673 = vld [vmem:[#allocation5 + $0xfb0] sm:$0xff]
    %v674 = vld [vmem:[#allocation5 + $0xfb8] sm:$0xff]
    %v675 = vld [vmem:[#allocation5 + $0xfc0] sm:$0xff]
    %v676 = vld [vmem:[#allocation5 + $0xfc8] sm:$0xff]
    %v677 = vld [vmem:[#allocation5 + $0xfd0] sm:$0xff]
    %v678 = vld [vmem:[#allocation5 + $0xfd8] sm:$0xff]
    %v679 = vld [vmem:[#allocation5 + $0xfe0] sm:$0xff]
    %v680 = vld [vmem:[#allocation5 + $0xfe8] sm:$0xff]
    %v681 = vld [vmem:[#allocation5 + $0xff0] sm:$0xff]
    %v682 = vld [vmem:[#allocation5 + $0xff8] sm:$0xff]
    %v683 = vld [vmem:[#allocation5 + $0x1000] sm:$0xff]
    %v684 = vld [vmem:[#allocation5 + $0x1008] sm:$0xff]
    %v685 = vld [vmem:[#allocation5 + $0x1010] sm:$0xff]
    %v686 = vld [vmem:[#allocation5 + $0x1018] sm:$0xff]
    %v687 = vld [vmem:[#allocation5 + $0x1020] sm:$0xff]
    %v688 = vld [vmem:[#allocation5 + $0x1028] sm:$0xff]
    %v689 = vld [vmem:[#allocation5 + $0x1030] sm:$0xff]
    %v690 = vld [vmem:[#allocation5 + $0x1038] sm:$0xff]
    %v691 = vld [vmem:[#allocation5 + $0x1040] sm:$0xff]
    %v692 = vld [vmem:[#allocation5 + $0x1048] sm:$0xff]
    %v693 = vld [vmem:[#allocation5 + $0x1050] sm:$0xff]
    %v694 = vld [vmem:[#allocation5 + $0x1058] sm:$0xff]
    %v695 = vld [vmem:[#allocation5 + $0x1060] sm:$0xff]
    %v696 = vld [vmem:[#allocation5 + $0x1068] sm:$0xff]
    %v697 = vld [vmem:[#allocation5 + $0x1070] sm:$0xff]
    %v698 = vld [vmem:[#allocation5 + $0x1078] sm:$0xff]
    %v699 = vld [vmem:[#allocation5 + $0x1080] sm:$0xff]
    %v700 = vld [vmem:[#allocation5 + $0x1088] sm:$0xff]
    %v701 = vld [vmem:[#allocation5 + $0x1090] sm:$0xff]
    %v702 = vld [vmem:[#allocation5 + $0x1098] sm:$0xff]
    %v703 = vld [vmem:[#allocation5 + $0x10a0] sm:$0xff]
    %v704 = vld [vmem:[#allocation5 + $0x10a8] sm:$0xff]
    %v705 = vld [vmem:[#allocation5 + $0x10b0] sm:$0xff]
    %v706 = vld [vmem:[#allocation5 + $0x10b8] sm:$0xff]
    %v707 = vld [vmem:[#allocation5 + $0x10c0] sm:$0xff]
    %v708 = vld [vmem:[#allocation5 + $0x10c8] sm:$0xff]
    %v709 = vld [vmem:[#allocation5 + $0x10d0] sm:$0xff]
    %v710 = vld [vmem:[#allocation5 + $0x10d8] sm:$0xff]
    %v711 = vld [vmem:[#allocation5 + $0x10e0] sm:$0xff]
    %v712 = vld [vmem:[#allocation5 + $0x10e8] sm:$0xff]
    %v713 = vld [vmem:[#allocation5 + $0x10f0] sm:$0xff]
    %v714 = vld [vmem:[#allocation5 + $0x10f8] sm:$0xff]
    %v715 = vld [vmem:[#allocation5 + $0x1100] sm:$0xff]
    %v716 = vld [vmem:[#allocation5 + $0x1108] sm:$0xff]
    %v717 = vld [vmem:[#allocation5 + $0x1110] sm:$0xff]
    %v718 = vld [vmem:[#allocation5 + $0x1118] sm:$0xff]
    %v719 = vld [vmem:[#allocation5 + $0x1120] sm:$0xff]
    %v720 = vld [vmem:[#allocation5 + $0x1128] sm:$0xff]
    %v721 = vld [vmem:[#allocation5 + $0x1130] sm:$0xff]
    %v722 = vld [vmem:[#allocation5 + $0x1138] sm:$0xff]
    %v723 = vld [vmem:[#allocation5 + $0x1140] sm:$0xff]
    %v724 = vld [vmem:[#allocation5 + $0x1148] sm:$0xff]
    %v725 = vld [vmem:[#allocation5 + $0x1150] sm:$0xff]
    %v726 = vld [vmem:[#allocation5 + $0x1158] sm:$0xff]
    %v727 = vld [vmem:[#allocation5 + $0x1160] sm:$0xff]
    %v728 = vld [vmem:[#allocation5 + $0x1168] sm:$0xff]
    %v729 = vld [vmem:[#allocation5 + $0x1170] sm:$0xff]
    %v730 = vld [vmem:[#allocation5 + $0x1178] sm:$0xff]
    %v731 = vld [vmem:[#allocation5 + $0x1180] sm:$0xff]
    %v732 = vld [vmem:[#allocation5 + $0x1188] sm:$0xff]
    %v733 = vld [vmem:[#allocation5 + $0x1190] sm:$0xff]
    %v734 = vld [vmem:[#allocation5 + $0x1198] sm:$0xff]
    %v735 = vld [vmem:[#allocation5 + $0x11a0] sm:$0xff]
    %v736 = vld [vmem:[#allocation5 + $0x11a8] sm:$0xff]
    %v737 = vld [vmem:[#allocation5 + $0x11b0] sm:$0xff]
    %v738 = vld [vmem:[#allocation5 + $0x11b8] sm:$0xff]
    %v739 = vld [vmem:[#allocation5 + $0x11c0] sm:$0xff]
    %v740 = vld [vmem:[#allocation5 + $0x11c8] sm:$0xff]
    %v741 = vld [vmem:[#allocation5 + $0x11d0] sm:$0xff]
    %v742 = vld [vmem:[#allocation5 + $0x11d8] sm:$0xff]
    %v743 = vld [vmem:[#allocation5 + $0x11e0] sm:$0xff]
    %v744 = vld [vmem:[#allocation5 + $0x11e8] sm:$0xff]
    %v745 = vld [vmem:[#allocation5 + $0x11f0] sm:$0xff]
    %v746 = vld [vmem:[#allocation5 + $0x11f8] sm:$0xff]
    %v747 = vld [vmem:[#allocation5 + $0x1200] sm:$0xff]
    %v748 = vld [vmem:[#allocation5 + $0x1208] sm:$0xff]
    %v749 = vld [vmem:[#allocation5 + $0x1210] sm:$0xff]
    %v750 = vld [vmem:[#allocation5 + $0x1218] sm:$0xff]
    %v751 = vld [vmem:[#allocation5 + $0x1220] sm:$0xff]
    %v752 = vld [vmem:[#allocation5 + $0x1228] sm:$0xff]
    %v753 = vld [vmem:[#allocation5 + $0x1230] sm:$0xff]
    %v754 = vld [vmem:[#allocation5 + $0x1238] sm:$0xff]
    %v755 = vld [vmem:[#allocation5 + $0x1240] sm:$0xff]
    %v756 = vld [vmem:[#allocation5 + $0x1248] sm:$0xff]
    %v757 = vld [vmem:[#allocation5 + $0x1250] sm:$0xff]
    %v758 = vld [vmem:[#allocation5 + $0x1258] sm:$0xff]
    %v759 = vld [vmem:[#allocation5 + $0x1260] sm:$0xff]
    %v760 = vld [vmem:[#allocation5 + $0x1268] sm:$0xff]
    %v761 = vld [vmem:[#allocation5 + $0x1270] sm:$0xff]
    %v762 = vld [vmem:[#allocation5 + $0x1278] sm:$0xff]
    %v763 = vld [vmem:[#allocation5 + $0x1280] sm:$0xff]
    %v764 = vld [vmem:[#allocation5 + $0x1288] sm:$0xff]
    %v765 = vld [vmem:[#allocation5 + $0x1290] sm:$0xff]
    %v766 = vld [vmem:[#allocation5 + $0x1298] sm:$0xff]
    %v767 = vld [vmem:[#allocation5 + $0x12a0] sm:$0xff]
    %v768 = vld [vmem:[#allocation5 + $0x12a8] sm:$0xff]
    %v769 = vld [vmem:[#allocation5 + $0x12b0] sm:$0xff]
    %v770 = vld [vmem:[#allocation5 + $0x12b8] sm:$0xff]
    %v771 = vld [vmem:[#allocation5 + $0x12c0] sm:$0xff]
    %v772 = vld [vmem:[#allocation5 + $0x12c8] sm:$0xff]
    %v773 = vld [vmem:[#allocation5 + $0x12d0] sm:$0xff]
    %v774 = vld [vmem:[#allocation5 + $0x12d8] sm:$0xff]
    %v775 = vld [vmem:[#allocation5 + $0x12e0] sm:$0xff]
    %v776 = vld [vmem:[#allocation5 + $0x12e8] sm:$0xff]
    %v777 = vld [vmem:[#allocation5 + $0x12f0] sm:$0xff]
    %v778 = vld [vmem:[#allocation5 + $0x12f8] sm:$0xff]
    %v779 = vld [vmem:[#allocation5 + $0x1300] sm:$0xff]
    %v780 = vld [vmem:[#allocation5 + $0x1308] sm:$0xff]
    %v781 = vld [vmem:[#allocation5 + $0x1310] sm:$0xff]
    %v782 = vld [vmem:[#allocation5 + $0x1318] sm:$0xff]
    %v783 = vld [vmem:[#allocation5 + $0x1320] sm:$0xff]
    %v784 = vld [vmem:[#allocation5 + $0x1328] sm:$0xff]
    %v785 = vld [vmem:[#allocation5 + $0x1330] sm:$0xff]
    %v786 = vld [vmem:[#allocation5 + $0x1338] sm:$0xff]
    %v787 = vld [vmem:[#allocation5 + $0x1340] sm:$0xff]
    %v788 = vld [vmem:[#allocation5 + $0x1348] sm:$0xff]
    %v789 = vld [vmem:[#allocation5 + $0x1350] sm:$0xff]
    %v790 = vld [vmem:[#allocation5 + $0x1358] sm:$0xff]
    %v791 = vld [vmem:[#allocation5 + $0x1360] sm:$0xff]
    %v792 = vld [vmem:[#allocation5 + $0x1368] sm:$0xff]
    %v793 = vld [vmem:[#allocation5 + $0x1370] sm:$0xff]
    %v794 = vld [vmem:[#allocation5 + $0x1378] sm:$0xff]
    %v795 = vld [vmem:[#allocation5 + $0x1380] sm:$0xff]
    %v796 = vld [vmem:[#allocation5 + $0x1388] sm:$0xff]
    %v797 = vld [vmem:[#allocation5 + $0x1390] sm:$0xff]
    %v798 = vld [vmem:[#allocation5 + $0x1398] sm:$0xff]
    %v799 = vld [vmem:[#allocation5 + $0x13a0] sm:$0xff]
    %v800 = vld [vmem:[#allocation5 + $0x13a8] sm:$0xff]
    %v801 = vld [vmem:[#allocation5 + $0x13b0] sm:$0xff]
    %v802 = vld [vmem:[#allocation5 + $0x13b8] sm:$0xff]
    %v803 = vld [vmem:[#allocation5 + $0x13c0] sm:$0xff]
    %v804 = vld [vmem:[#allocation5 + $0x13c8] sm:$0xff]
    %v805 = vld [vmem:[#allocation5 + $0x13d0] sm:$0xff]
    %v806 = vld [vmem:[#allocation5 + $0x13d8] sm:$0xff]
    %v807 = vld [vmem:[#allocation5 + $0x13e0] sm:$0xff]
    %v808 = vld [vmem:[#allocation5 + $0x13e8] sm:$0xff]
    %v809 = vld [vmem:[#allocation5 + $0x13f0] sm:$0xff]
    %v810 = vld [vmem:[#allocation5 + $0x13f8] sm:$0xff]
    %v811 = vld [vmem:[#allocation5 + $0x1400] sm:$0xff]
    %v812 = vld [vmem:[#allocation5 + $0x1408] sm:$0xff]
    %v813 = vld [vmem:[#allocation5 + $0x1410] sm:$0xff]
    %v814 = vld [vmem:[#allocation5 + $0x1418] sm:$0xff]
    %v815 = vld [vmem:[#allocation5 + $0x1420] sm:$0xff]
    %v816 = vld [vmem:[#allocation5 + $0x1428] sm:$0xff]
    %v817 = vld [vmem:[#allocation5 + $0x1430] sm:$0xff]
    %v818 = vld [vmem:[#allocation5 + $0x1438] sm:$0xff]
    %v819 = vld [vmem:[#allocation5 + $0x1440] sm:$0xff]
    %v820 = vld [vmem:[#allocation5 + $0x1448] sm:$0xff]
    %v821 = vld [vmem:[#allocation5 + $0x1450] sm:$0xff]
    %v822 = vld [vmem:[#allocation5 + $0x1458] sm:$0xff]
    %v823 = vld [vmem:[#allocation5 + $0x1460] sm:$0xff]
    %v824 = vld [vmem:[#allocation5 + $0x1468] sm:$0xff]
    %v825 = vld [vmem:[#allocation5 + $0x1470] sm:$0xff]
    %v826 = vld [vmem:[#allocation5 + $0x1478] sm:$0xff]
    %v827 = vld [vmem:[#allocation5 + $0x1480] sm:$0xff]
    %v828 = vld [vmem:[#allocation5 + $0x1488] sm:$0xff]
    %v829 = vld [vmem:[#allocation5 + $0x1490] sm:$0xff]
    %v830 = vld [vmem:[#allocation5 + $0x1498] sm:$0xff]
    %v831 = vld [vmem:[#allocation5 + $0x14a0] sm:$0xff]
    %v832 = vld [vmem:[#allocation5 + $0x14a8] sm:$0xff]
    %v833 = vld [vmem:[#allocation5 + $0x14b0] sm:$0xff]
    %v834 = vld [vmem:[#allocation5 + $0x14b8] sm:$0xff]
    %v835 = vld [vmem:[#allocation5 + $0x14c0] sm:$0xff]
    %v836 = vld [vmem:[#allocation5 + $0x14c8] sm:$0xff]
    %v837 = vld [vmem:[#allocation5 + $0x14d0] sm:$0xff]
    %v838 = vld [vmem:[#allocation5 + $0x14d8] sm:$0xff]
    %v839 = vld [vmem:[#allocation5 + $0x14e0] sm:$0xff]
    %v840 = vld [vmem:[#allocation5 + $0x14e8] sm:$0xff]
    %v841 = vld [vmem:[#allocation5 + $0x14f0] sm:$0xff]
    %v842 = vld [vmem:[#allocation5 + $0x14f8] sm:$0xff]
    %v843 = vld [vmem:[#allocation5 + $0x1500] sm:$0xff]
    %v844 = vld [vmem:[#allocation5 + $0x1508] sm:$0xff]
    %v845 = vld [vmem:[#allocation5 + $0x1510] sm:$0xff]
    %v846 = vld [vmem:[#allocation5 + $0x1518] sm:$0xff]
    %v847 = vld [vmem:[#allocation5 + $0x1520] sm:$0xff]
    %v848 = vld [vmem:[#allocation5 + $0x1528] sm:$0xff]
    %v849 = vld [vmem:[#allocation5 + $0x1530] sm:$0xff]
    %v850 = vld [vmem:[#allocation5 + $0x1538] sm:$0xff]
    %v851 = vld [vmem:[#allocation5 + $0x1540] sm:$0xff]
    %v852 = vld [vmem:[#allocation5 + $0x1548] sm:$0xff]
    %v853 = vld [vmem:[#allocation5 + $0x1550] sm:$0xff]
    %v854 = vld [vmem:[#allocation5 + $0x1558] sm:$0xff]
    %v855 = vld [vmem:[#allocation5 + $0x1560] sm:$0xff]
    %v856 = vld [vmem:[#allocation5 + $0x1568] sm:$0xff]
    %v857 = vld [vmem:[#allocation5 + $0x1570] sm:$0xff]
    %v858 = vld [vmem:[#allocation5 + $0x1578] sm:$0xff]
    %v859 = vld [vmem:[#allocation5 + $0x1580] sm:$0xff]
    %v860 = vld [vmem:[#allocation5 + $0x1588] sm:$0xff]
    %v861 = vld [vmem:[#allocation5 + $0x1590] sm:$0xff]
    %v862 = vld [vmem:[#allocation5 + $0x1598] sm:$0xff]
    %v863 = vld [vmem:[#allocation5 + $0x15a0] sm:$0xff]
    %v864 = vld [vmem:[#allocation5 + $0x15a8] sm:$0xff]
    %v865 = vld [vmem:[#allocation5 + $0x15b0] sm:$0xff]
    %v866 = vld [vmem:[#allocation5 + $0x15b8] sm:$0xff]
    %v867 = vld [vmem:[#allocation5 + $0x15c0] sm:$0xff]
    %v868 = vld [vmem:[#allocation5 + $0x15c8] sm:$0xff]
    %v869 = vld [vmem:[#allocation5 + $0x15d0] sm:$0xff]
    %v870 = vld [vmem:[#allocation5 + $0x15d8] sm:$0xff]
    %v871 = vld [vmem:[#allocation5 + $0x15e0] sm:$0xff]
    %v872 = vld [vmem:[#allocation5 + $0x15e8] sm:$0xff]
    %v873 = vld [vmem:[#allocation5 + $0x15f0] sm:$0xff]
    %v874 = vld [vmem:[#allocation5 + $0x15f8] sm:$0xff]
    %v875 = vld [vmem:[#allocation5 + $0x1600] sm:$0xff]
    %v876 = vld [vmem:[#allocation5 + $0x1608] sm:$0xff]
    %v877 = vld [vmem:[#allocation5 + $0x1610] sm:$0xff]
    %v878 = vld [vmem:[#allocation5 + $0x1618] sm:$0xff]
    %v879 = vld [vmem:[#allocation5 + $0x1620] sm:$0xff]
    %v880 = vld [vmem:[#allocation5 + $0x1628] sm:$0xff]
    %v881 = vld [vmem:[#allocation5 + $0x1630] sm:$0xff]
    %v882 = vld [vmem:[#allocation5 + $0x1638] sm:$0xff]
    %v883 = vld [vmem:[#allocation5 + $0x1640] sm:$0xff]
    %v884 = vld [vmem:[#allocation5 + $0x1648] sm:$0xff]
    %v885 = vld [vmem:[#allocation5 + $0x1650] sm:$0xff]
    %v886 = vld [vmem:[#allocation5 + $0x1658] sm:$0xff]
    %v887 = vld [vmem:[#allocation5 + $0x1660] sm:$0xff]
    %v888 = vld [vmem:[#allocation5 + $0x1668] sm:$0xff]
    %v889 = vld [vmem:[#allocation5 + $0x1670] sm:$0xff]
    %v890 = vld [vmem:[#allocation5 + $0x1678] sm:$0xff]
    %v891 = vld [vmem:[#allocation5 + $0x1680] sm:$0xff]
    %v892 = vld [vmem:[#allocation5 + $0x1688] sm:$0xff]
    %v893 = vld [vmem:[#allocation5 + $0x1690] sm:$0xff]
    %v894 = vld [vmem:[#allocation5 + $0x1698] sm:$0xff]
    %v895 = vld [vmem:[#allocation5 + $0x16a0] sm:$0xff]
    %v896 = vld [vmem:[#allocation5 + $0x16a8] sm:$0xff]
    %v897 = vld [vmem:[#allocation5 + $0x16b0] sm:$0xff]
    %v898 = vld [vmem:[#allocation5 + $0x16b8] sm:$0xff]
    %v899 = vld [vmem:[#allocation5 + $0x16c0] sm:$0xff]
    %v900 = vld [vmem:[#allocation5 + $0x16c8] sm:$0xff]
    %v901 = vld [vmem:[#allocation5 + $0x16d0] sm:$0xff]
    %v902 = vld [vmem:[#allocation5 + $0x16d8] sm:$0xff]
    %v903 = vld [vmem:[#allocation5 + $0x16e0] sm:$0xff]
    %v904 = vld [vmem:[#allocation5 + $0x16e8] sm:$0xff]
    %v905 = vld [vmem:[#allocation5 + $0x16f0] sm:$0xff]
    %v906 = vld [vmem:[#allocation5 + $0x16f8] sm:$0xff]
    %v907 = vld [vmem:[#allocation5 + $0x1700] sm:$0xff]
    %v908 = vld [vmem:[#allocation5 + $0x1708] sm:$0xff]
    %v909 = vld [vmem:[#allocation5 + $0x1710] sm:$0xff]
    %v910 = vld [vmem:[#allocation5 + $0x1718] sm:$0xff]
    %v911 = vld [vmem:[#allocation5 + $0x1720] sm:$0xff]
    %v912 = vld [vmem:[#allocation5 + $0x1728] sm:$0xff]
    %v913 = vld [vmem:[#allocation5 + $0x1730] sm:$0xff]
    %v914 = vld [vmem:[#allocation5 + $0x1738] sm:$0xff]
    %v915 = vld [vmem:[#allocation5 + $0x1740] sm:$0xff]
    %v916 = vld [vmem:[#allocation5 + $0x1748] sm:$0xff]
    %v917 = vld [vmem:[#allocation5 + $0x1750] sm:$0xff]
    %v918 = vld [vmem:[#allocation5 + $0x1758] sm:$0xff]
    %v919 = vld [vmem:[#allocation5 + $0x1760] sm:$0xff]
    %v920 = vld [vmem:[#allocation5 + $0x1768] sm:$0xff]
    %v921 = vld [vmem:[#allocation5 + $0x1770] sm:$0xff]
    %v922 = vld [vmem:[#allocation5 + $0x1778] sm:$0xff]
    %v923 = vld [vmem:[#allocation5 + $0x1780] sm:$0xff]
    %v924 = vld [vmem:[#allocation5 + $0x1788] sm:$0xff]
    %v925 = vld [vmem:[#allocation5 + $0x1790] sm:$0xff]
    %v926 = vld [vmem:[#allocation5 + $0x1798] sm:$0xff]
    %v927 = vld [vmem:[#allocation5 + $0x17a0] sm:$0xff]
    %v928 = vld [vmem:[#allocation5 + $0x17a8] sm:$0xff]
    %v929 = vld [vmem:[#allocation5 + $0x17b0] sm:$0xff]
    %v930 = vld [vmem:[#allocation5 + $0x17b8] sm:$0xff]
    %v931 = vld [vmem:[#allocation5 + $0x17c0] sm:$0xff]
    %v932 = vld [vmem:[#allocation5 + $0x17c8] sm:$0xff]
    %v933 = vld [vmem:[#allocation5 + $0x17d0] sm:$0xff]
    %v934 = vld [vmem:[#allocation5 + $0x17d8] sm:$0xff]
    %v935 = vld [vmem:[#allocation5 + $0x17e0] sm:$0xff]
    %v936 = vld [vmem:[#allocation5 + $0x17e8] sm:$0xff]
    %v937 = vld [vmem:[#allocation5 + $0x17f0] sm:$0xff]
    %v938 = vld [vmem:[#allocation5 + $0x17f8] sm:$0xff]
    %v939 = vld [vmem:[#allocation5 + $0x1800] sm:$0xff]
    %v940 = vld [vmem:[#allocation5 + $0x1808] sm:$0xff]
    %v941 = vld [vmem:[#allocation5 + $0x1810] sm:$0xff]
    %v942 = vld [vmem:[#allocation5 + $0x1818] sm:$0xff]
    %v943 = vld [vmem:[#allocation5 + $0x1820] sm:$0xff]
    %v944 = vld [vmem:[#allocation5 + $0x1828] sm:$0xff]
    %v945 = vld [vmem:[#allocation5 + $0x1830] sm:$0xff]
    %v946 = vld [vmem:[#allocation5 + $0x1838] sm:$0xff]
    %v947 = vld [vmem:[#allocation5 + $0x1840] sm:$0xff]
    %v948 = vld [vmem:[#allocation5 + $0x1848] sm:$0xff]
    %v949 = vld [vmem:[#allocation5 + $0x1850] sm:$0xff]
    %v950 = vld [vmem:[#allocation5 + $0x1858] sm:$0xff]
    %v951 = vld [vmem:[#allocation5 + $0x1860] sm:$0xff]
    %v952 = vld [vmem:[#allocation5 + $0x1868] sm:$0xff]
    %v953 = vld [vmem:[#allocation5 + $0x1870] sm:$0xff]
    %v954 = vld [vmem:[#allocation5 + $0x1878] sm:$0xff]
    %v955 = vld [vmem:[#allocation5 + $0x1880] sm:$0xff]
    %v956 = vld [vmem:[#allocation5 + $0x1888] sm:$0xff]
    %v957 = vld [vmem:[#allocation5 + $0x1890] sm:$0xff]
    %v958 = vld [vmem:[#allocation5 + $0x1898] sm:$0xff]
    %v959 = vld [vmem:[#allocation5 + $0x18a0] sm:$0xff]
    %v960 = vld [vmem:[#allocation5 + $0x18a8] sm:$0xff]
    %v961 = vld [vmem:[#allocation5 + $0x18b0] sm:$0xff]
    %v962 = vld [vmem:[#allocation5 + $0x18b8] sm:$0xff]
    %v963 = vld [vmem:[#allocation5 + $0x18c0] sm:$0xff]
    %v964 = vld [vmem:[#allocation5 + $0x18c8] sm:$0xff]
    %v965 = vld [vmem:[#allocation5 + $0x18d0] sm:$0xff]
    %v966 = vld [vmem:[#allocation5 + $0x18d8] sm:$0xff]
    %v967 = vld [vmem:[#allocation5 + $0x18e0] sm:$0xff]
    %v968 = vld [vmem:[#allocation5 + $0x18e8] sm:$0xff]
    %v969 = vld [vmem:[#allocation5 + $0x18f0] sm:$0xff]
    %v970 = vld [vmem:[#allocation5 + $0x18f8] sm:$0xff]
    %v971 = vld [vmem:[#allocation5 + $0x1900] sm:$0xff]
    %v972 = vld [vmem:[#allocation5 + $0x1908] sm:$0xff]
    %v973 = vld [vmem:[#allocation5 + $0x1910] sm:$0xff]
    %v974 = vld [vmem:[#allocation5 + $0x1918] sm:$0xff]
    %v975 = vld [vmem:[#allocation5 + $0x1920] sm:$0xff]
    %v976 = vld [vmem:[#allocation5 + $0x1928] sm:$0xff]
    %v977 = vld [vmem:[#allocation5 + $0x1930] sm:$0xff]
    %v978 = vld [vmem:[#allocation5 + $0x1938] sm:$0xff]
    %v979 = vld [vmem:[#allocation5 + $0x1940] sm:$0xff]
    %v980 = vld [vmem:[#allocation5 + $0x1948] sm:$0xff]
    %v981 = vld [vmem:[#allocation5 + $0x1950] sm:$0xff]
    %v982 = vld [vmem:[#allocation5 + $0x1958] sm:$0xff]
    %v983 = vld [vmem:[#allocation5 + $0x1960] sm:$0xff]
    %v984 = vld [vmem:[#allocation5 + $0x1968] sm:$0xff]
    %v985 = vld [vmem:[#allocation5 + $0x1970] sm:$0xff]
    %v986 = vld [vmem:[#allocation5 + $0x1978] sm:$0xff]
    %v987 = vld [vmem:[#allocation5 + $0x1980] sm:$0xff]
    %v988 = vld [vmem:[#allocation5 + $0x1988] sm:$0xff]
    %v989 = vld [vmem:[#allocation5 + $0x1990] sm:$0xff]
    %v990 = vld [vmem:[#allocation5 + $0x1998] sm:$0xff]
    %v991 = vld [vmem:[#allocation5 + $0x19a0] sm:$0xff]
    %v992 = vld [vmem:[#allocation5 + $0x19a8] sm:$0xff]
    %v993 = vld [vmem:[#allocation5 + $0x19b0] sm:$0xff]
    %v994 = vld [vmem:[#allocation5 + $0x19b8] sm:$0xff]
    %v995 = vld [vmem:[#allocation5 + $0x19c0] sm:$0xff]
    %v996 = vld [vmem:[#allocation5 + $0x19c8] sm:$0xff]
    %v997 = vld [vmem:[#allocation5 + $0x19d0] sm:$0xff]
    %v998 = vld [vmem:[#allocation5 + $0x19d8] sm:$0xff]
    %v999 = vld [vmem:[#allocation5 + $0x19e0] sm:$0xff]
    %v1000 = vld [vmem:[#allocation5 + $0x19e8] sm:$0xff]
    %v1001 = vld [vmem:[#allocation5 + $0x19f0] sm:$0xff]
    %v1002 = vld [vmem:[#allocation5 + $0x19f8] sm:$0xff]
    %v1003 = vld [vmem:[#allocation5 + $0x1a00] sm:$0xff]
    %v1004 = vld [vmem:[#allocation5 + $0x1a08] sm:$0xff]
    %v1005 = vld [vmem:[#allocation5 + $0x1a10] sm:$0xff]
    %v1006 = vld [vmem:[#allocation5 + $0x1a18] sm:$0xff]
    %v1007 = vld [vmem:[#allocation5 + $0x1a20] sm:$0xff]
    %v1008 = vld [vmem:[#allocation5 + $0x1a28] sm:$0xff]
    %v1009 = vld [vmem:[#allocation5 + $0x1a30] sm:$0xff]
    %v1010 = vld [vmem:[#allocation5 + $0x1a38] sm:$0xff]
    %v1011 = vld [vmem:[#allocation5 + $0x1a40] sm:$0xff]
    %v1012 = vld [vmem:[#allocation5 + $0x1a48] sm:$0xff]
    %v1013 = vld [vmem:[#allocation5 + $0x1a50] sm:$0xff]
    %v1014 = vld [vmem:[#allocation5 + $0x1a58] sm:$0xff]
    %v1015 = vld [vmem:[#allocation5 + $0x1a60] sm:$0xff]
    %v1016 = vld [vmem:[#allocation5 + $0x1a68] sm:$0xff]
    %v1017 = vld [vmem:[#allocation5 + $0x1a70] sm:$0xff]
    %v1018 = vld [vmem:[#allocation5 + $0x1a78] sm:$0xff]
    %v1019 = vld [vmem:[#allocation5 + $0x1a80] sm:$0xff]
    %v1020 = vld [vmem:[#allocation5 + $0x1a88] sm:$0xff]
    %v1021 = vld [vmem:[#allocation5 + $0x1a90] sm:$0xff]
    %v1022 = vld [vmem:[#allocation5 + $0x1a98] sm:$0xff]
    %v1023 = vld [vmem:[#allocation5 + $0x1aa0] sm:$0xff]
    %v1024 = vld [vmem:[#allocation5 + $0x1aa8] sm:$0xff]
    %v1025 = vld [vmem:[#allocation5 + $0x1ab0] sm:$0xff]
    %v1026 = vld [vmem:[#allocation5 + $0x1ab8] sm:$0xff]
    %v1027 = vld [vmem:[#allocation5 + $0x1ac0] sm:$0xff]
    %v1028 = vld [vmem:[#allocation5 + $0x1ac8] sm:$0xff]
    %v1029 = vld [vmem:[#allocation5 + $0x1ad0] sm:$0xff]
    %v1030 = vld [vmem:[#allocation5 + $0x1ad8] sm:$0xff]
    %v1031 = vld [vmem:[#allocation5 + $0x1ae0] sm:$0xff]
    %v1032 = vld [vmem:[#allocation5 + $0x1ae8] sm:$0xff]
    %v1033 = vld [vmem:[#allocation5 + $0x1af0] sm:$0xff]
    %v1034 = vld [vmem:[#allocation5 + $0x1af8] sm:$0xff]
    %v1035 = vld [vmem:[#allocation5 + $0x1b00] sm:$0xff]
    %v1036 = vld [vmem:[#allocation5 + $0x1b08] sm:$0xff]
    %v1037 = vld [vmem:[#allocation5 + $0x1b10] sm:$0xff]
    %v1038 = vld [vmem:[#allocation5 + $0x1b18] sm:$0xff]
    %v1039 = vld [vmem:[#allocation5 + $0x1b20] sm:$0xff]
    %v1040 = vld [vmem:[#allocation5 + $0x1b28] sm:$0xff]
    %v1041 = vld [vmem:[#allocation5 + $0x1b30] sm:$0xff]
    %v1042 = vld [vmem:[#allocation5 + $0x1b38] sm:$0xff]
    %v1043 = vld [vmem:[#allocation5 + $0x1b40] sm:$0xff]
    %v1044 = vld [vmem:[#allocation5 + $0x1b48] sm:$0xff]
    %v1045 = vld [vmem:[#allocation5 + $0x1b50] sm:$0xff]
    %v1046 = vld [vmem:[#allocation5 + $0x1b58] sm:$0xff]
    %v1047 = vld [vmem:[#allocation5 + $0x1b60] sm:$0xff]
    %v1048 = vld [vmem:[#allocation5 + $0x1b68] sm:$0xff]
    %v1049 = vld [vmem:[#allocation5 + $0x1b70] sm:$0xff]
    %v1050 = vld [vmem:[#allocation5 + $0x1b78] sm:$0xff]
    %v1051 = vld [vmem:[#allocation5 + $0x1b80] sm:$0xff]
    %v1052 = vld [vmem:[#allocation5 + $0x1b88] sm:$0xff]
    %v1053 = vld [vmem:[#allocation5 + $0x1b90] sm:$0xff]
    %v1054 = vld [vmem:[#allocation5 + $0x1b98] sm:$0xff]
    %v1055 = vld [vmem:[#allocation5 + $0x1ba0] sm:$0xff]
    %v1056 = vld [vmem:[#allocation5 + $0x1ba8] sm:$0xff]
    %v1057 = vld [vmem:[#allocation5 + $0x1bb0] sm:$0xff]
    %v1058 = vld [vmem:[#allocation5 + $0x1bb8] sm:$0xff]
    %v1059 = vld [vmem:[#allocation5 + $0x1bc0] sm:$0xff]
    %v1060 = vld [vmem:[#allocation5 + $0x1bc8] sm:$0xff]
    %v1061 = vld [vmem:[#allocation5 + $0x1bd0] sm:$0xff]
    %v1062 = vld [vmem:[#allocation5 + $0x1bd8] sm:$0xff]
    %v1063 = vld [vmem:[#allocation5 + $0x1be0] sm:$0xff]
    %v1064 = vld [vmem:[#allocation5 + $0x1be8] sm:$0xff]
    %v1065 = vld [vmem:[#allocation5 + $0x1bf0] sm:$0xff]
    %v1066 = vld [vmem:[#allocation5 + $0x1bf8] sm:$0xff]
    %v1067 = vld [vmem:[#allocation5 + $0x1c00] sm:$0xff]
    %v1068 = vld [vmem:[#allocation5 + $0x1c08] sm:$0xff]
    %v1069 = vld [vmem:[#allocation5 + $0x1c10] sm:$0xff]
    %v1070 = vld [vmem:[#allocation5 + $0x1c18] sm:$0xff]
    %v1071 = vld [vmem:[#allocation5 + $0x1c20] sm:$0xff]
    %v1072 = vld [vmem:[#allocation5 + $0x1c28] sm:$0xff]
    %v1073 = vld [vmem:[#allocation5 + $0x1c30] sm:$0xff]
    %v1074 = vld [vmem:[#allocation5 + $0x1c38] sm:$0xff]
    %v1075 = vld [vmem:[#allocation5 + $0x1c40] sm:$0xff]
    %v1076 = vld [vmem:[#allocation5 + $0x1c48] sm:$0xff]
    %v1077 = vld [vmem:[#allocation5 + $0x1c50] sm:$0xff]
    %v1078 = vld [vmem:[#allocation5 + $0x1c58] sm:$0xff]
    %v1079 = vld [vmem:[#allocation5 + $0x1c60] sm:$0xff]
    %v1080 = vld [vmem:[#allocation5 + $0x1c68] sm:$0xff]
    %v1081 = vld [vmem:[#allocation5 + $0x1c70] sm:$0xff]
    %v1082 = vld [vmem:[#allocation5 + $0x1c78] sm:$0xff]
    %v1083 = vld [vmem:[#allocation5 + $0x1c80] sm:$0xff]
    %v1084 = vld [vmem:[#allocation5 + $0x1c88] sm:$0xff]
    %v1085 = vld [vmem:[#allocation5 + $0x1c90] sm:$0xff]
    %v1086 = vld [vmem:[#allocation5 + $0x1c98] sm:$0xff]
    %v1087 = vld [vmem:[#allocation5 + $0x1ca0] sm:$0xff]
    %v1088 = vld [vmem:[#allocation5 + $0x1ca8] sm:$0xff]
    %v1089 = vld [vmem:[#allocation5 + $0x1cb0] sm:$0xff]
    %v1090 = vld [vmem:[#allocation5 + $0x1cb8] sm:$0xff]
    %v1091 = vld [vmem:[#allocation5 + $0x1cc0] sm:$0xff]
    %v1092 = vld [vmem:[#allocation5 + $0x1cc8] sm:$0xff]
    %v1093 = vld [vmem:[#allocation5 + $0x1cd0] sm:$0xff]
    %v1094 = vld [vmem:[#allocation5 + $0x1cd8] sm:$0xff]
    %v1095 = vld [vmem:[#allocation5 + $0x1ce0] sm:$0xff]
    %v1096 = vld [vmem:[#allocation5 + $0x1ce8] sm:$0xff]
    %v1097 = vld [vmem:[#allocation5 + $0x1cf0] sm:$0xff]
    %v1098 = vld [vmem:[#allocation5 + $0x1cf8] sm:$0xff]
    %v1099 = vld [vmem:[#allocation5 + $0x1d00] sm:$0xff]
    %v1100 = vld [vmem:[#allocation5 + $0x1d08] sm:$0xff]
    %v1101 = vld [vmem:[#allocation5 + $0x1d10] sm:$0xff]
    %v1102 = vld [vmem:[#allocation5 + $0x1d18] sm:$0xff]
    %v1103 = vld [vmem:[#allocation5 + $0x1d20] sm:$0xff]
    %v1104 = vld [vmem:[#allocation5 + $0x1d28] sm:$0xff]
    %v1105 = vld [vmem:[#allocation5 + $0x1d30] sm:$0xff]
    %v1106 = vld [vmem:[#allocation5 + $0x1d38] sm:$0xff]
    %v1107 = vld [vmem:[#allocation5 + $0x1d40] sm:$0xff]
    %v1108 = vld [vmem:[#allocation5 + $0x1d48] sm:$0xff]
    %v1109 = vld [vmem:[#allocation5 + $0x1d50] sm:$0xff]
    %v1110 = vld [vmem:[#allocation5 + $0x1d58] sm:$0xff]
    %v1111 = vld [vmem:[#allocation5 + $0x1d60] sm:$0xff]
    %v1112 = vld [vmem:[#allocation5 + $0x1d68] sm:$0xff]
    %v1113 = vld [vmem:[#allocation5 + $0x1d70] sm:$0xff]
    %v1114 = vld [vmem:[#allocation5 + $0x1d78] sm:$0xff]
    %v1115 = vld [vmem:[#allocation5 + $0x1d80] sm:$0xff]
    %v1116 = vld [vmem:[#allocation5 + $0x1d88] sm:$0xff]
    %v1117 = vld [vmem:[#allocation5 + $0x1d90] sm:$0xff]
    %v1118 = vld [vmem:[#allocation5 + $0x1d98] sm:$0xff]
    %v1119 = vld [vmem:[#allocation5 + $0x1da0] sm:$0xff]
    %v1120 = vld [vmem:[#allocation5 + $0x1da8] sm:$0xff]
    %v1121 = vld [vmem:[#allocation5 + $0x1db0] sm:$0xff]
    %v1122 = vld [vmem:[#allocation5 + $0x1db8] sm:$0xff]
    %v1123 = vld [vmem:[#allocation5 + $0x1dc0] sm:$0xff]
    %v1124 = vld [vmem:[#allocation5 + $0x1dc8] sm:$0xff]
    %v1125 = vld [vmem:[#allocation5 + $0x1dd0] sm:$0xff]
    %v1126 = vld [vmem:[#allocation5 + $0x1dd8] sm:$0xff]
    %v1127 = vld [vmem:[#allocation5 + $0x1de0] sm:$0xff]
    %v1128 = vld [vmem:[#allocation5 + $0x1de8] sm:$0xff]
    %v1129 = vld [vmem:[#allocation5 + $0x1df0] sm:$0xff]
    %v1130 = vld [vmem:[#allocation5 + $0x1df8] sm:$0xff]
    %v1131 = vld [vmem:[#allocation5 + $0x1e00] sm:$0xff]
    %v1132 = vld [vmem:[#allocation5 + $0x1e08] sm:$0xff]
    %v1133 = vld [vmem:[#allocation5 + $0x1e10] sm:$0xff]
    %v1134 = vld [vmem:[#allocation5 + $0x1e18] sm:$0xff]
    %v1135 = vld [vmem:[#allocation5 + $0x1e20] sm:$0xff]
    %v1136 = vld [vmem:[#allocation5 + $0x1e28] sm:$0xff]
    %v1137 = vld [vmem:[#allocation5 + $0x1e30] sm:$0xff]
    %v1138 = vld [vmem:[#allocation5 + $0x1e38] sm:$0xff]
    %v1139 = vld [vmem:[#allocation5 + $0x1e40] sm:$0xff]
    %v1140 = vld [vmem:[#allocation5 + $0x1e48] sm:$0xff]
    %v1141 = vld [vmem:[#allocation5 + $0x1e50] sm:$0xff]
    %v1142 = vld [vmem:[#allocation5 + $0x1e58] sm:$0xff]
    %v1143 = vld [vmem:[#allocation5 + $0x1e60] sm:$0xff]
    %v1144 = vld [vmem:[#allocation5 + $0x1e68] sm:$0xff]
    %v1145 = vld [vmem:[#allocation5 + $0x1e70] sm:$0xff]
    %v1146 = vld [vmem:[#allocation5 + $0x1e78] sm:$0xff]
    %v1147 = vld [vmem:[#allocation5 + $0x1e80] sm:$0xff]
    %v1148 = vld [vmem:[#allocation5 + $0x1e88] sm:$0xff]
    %v1149 = vld [vmem:[#allocation5 + $0x1e90] sm:$0xff]
    %v1150 = vld [vmem:[#allocation5 + $0x1e98] sm:$0xff]
    %v1151 = vld [vmem:[#allocation5 + $0x1ea0] sm:$0xff]
    %v1152 = vld [vmem:[#allocation5 + $0x1ea8] sm:$0xff]
    %v1153 = vld [vmem:[#allocation5 + $0x1eb0] sm:$0xff]
    %v1154 = vld [vmem:[#allocation5 + $0x1eb8] sm:$0xff]
    %v1155 = vld [vmem:[#allocation5 + $0x1ec0] sm:$0xff]
    %v1156 = vld [vmem:[#allocation5 + $0x1ec8] sm:$0xff]
    %v1157 = vld [vmem:[#allocation5 + $0x1ed0] sm:$0xff]
    %v1158 = vld [vmem:[#allocation5 + $0x1ed8] sm:$0xff]
    %v1159 = vld [vmem:[#allocation5 + $0x1ee0] sm:$0xff]
    %v1160 = vld [vmem:[#allocation5 + $0x1ee8] sm:$0xff]
    %v1161 = vld [vmem:[#allocation5 + $0x1ef0] sm:$0xff]
    %v1162 = vld [vmem:[#allocation5 + $0x1ef8] sm:$0xff]
    %v1163 = vld [vmem:[#allocation5 + $0x1f00] sm:$0xff]
    %v1164 = vld [vmem:[#allocation5 + $0x1f08] sm:$0xff]
    %v1165 = vld [vmem:[#allocation5 + $0x1f10] sm:$0xff]
    %v1166 = vld [vmem:[#allocation5 + $0x1f18] sm:$0xff]
    %v1167 = vld [vmem:[#allocation5 + $0x1f20] sm:$0xff]
    %v1168 = vld [vmem:[#allocation5 + $0x1f28] sm:$0xff]
    %v1169 = vld [vmem:[#allocation5 + $0x1f30] sm:$0xff]
    %v1170 = vld [vmem:[#allocation5 + $0x1f38] sm:$0xff]
    %v1171 = vld [vmem:[#allocation5 + $0x1f40] sm:$0xff]
    %v1172 = vld [vmem:[#allocation5 + $0x1f48] sm:$0xff]
    %v1173 = vld [vmem:[#allocation5 + $0x1f50] sm:$0xff]
    %v1174 = vld [vmem:[#allocation5 + $0x1f58] sm:$0xff]
    %v1175 = vld [vmem:[#allocation5 + $0x1f60] sm:$0xff]
    %v1176 = vld [vmem:[#allocation5 + $0x1f68] sm:$0xff]
    %v1177 = vld [vmem:[#allocation5 + $0x1f70] sm:$0xff]
    %v1178 = vld [vmem:[#allocation5 + $0x1f78] sm:$0xff]
    %v1179 = vld [vmem:[#allocation5 + $0x1f80] sm:$0xff]
    %v1180 = vld [vmem:[#allocation5 + $0x1f88] sm:$0xff]
    %v1181 = vld [vmem:[#allocation5 + $0x1f90] sm:$0xff]
    %v1182 = vld [vmem:[#allocation5 + $0x1f98] sm:$0xff]
    %v1183 = vld [vmem:[#allocation5 + $0x1fa0] sm:$0xff]
    %v1184 = vld [vmem:[#allocation5 + $0x1fa8] sm:$0xff]
    %v1185 = vld [vmem:[#allocation5 + $0x1fb0] sm:$0xff]
    %v1186 = vld [vmem:[#allocation5 + $0x1fb8] sm:$0xff]
    %v1187 = vld [vmem:[#allocation5 + $0x1fc0] sm:$0xff]
    %v1188 = vld [vmem:[#allocation5 + $0x1fc8] sm:$0xff]
    %v1189 = vld [vmem:[#allocation5 + $0x1fd0] sm:$0xff]
    %v1190 = vld [vmem:[#allocation5 + $0x1fd8] sm:$0xff]
    %v1191 = vld [vmem:[#allocation5 + $0x1fe0] sm:$0xff]
    %v1192 = vld [vmem:[#allocation5 + $0x1fe8] sm:$0xff]
    %v1193 = vld [vmem:[#allocation5 + $0x1ff0] sm:$0xff]
    %v1194 = vld [vmem:[#allocation5 + $0x1ff8] sm:$0xff]
    %v1195 = vld [vmem:[#allocation5 + $0x2000] sm:$0xff]
    %v1196 = vld [vmem:[#allocation5 + $0x2008] sm:$0xff]
    %v1197 = vld [vmem:[#allocation5 + $0x2010] sm:$0xff]
    %v1198 = vld [vmem:[#allocation5 + $0x2018] sm:$0xff]
    %v1199 = vld [vmem:[#allocation5 + $0x2020] sm:$0xff]
    %v1200 = vld [vmem:[#allocation5 + $0x2028] sm:$0xff]
    %v1201 = vld [vmem:[#allocation5 + $0x2030] sm:$0xff]
    %v1202 = vld [vmem:[#allocation5 + $0x2038] sm:$0xff]
    %v1203 = vld [vmem:[#allocation5 + $0x2040] sm:$0xff]
    %v1204 = vld [vmem:[#allocation5 + $0x2048] sm:$0xff]
    %v1205 = vld [vmem:[#allocation5 + $0x2050] sm:$0xff]
    %v1206 = vld [vmem:[#allocation5 + $0x2058] sm:$0xff]
    %v1207 = vld [vmem:[#allocation5 + $0x2060] sm:$0xff]
    %v1208 = vld [vmem:[#allocation5 + $0x2068] sm:$0xff]
    %v1209 = vld [vmem:[#allocation5 + $0x2070] sm:$0xff]
    %v1210 = vld [vmem:[#allocation5 + $0x2078] sm:$0xff]
    %v1211 = vld [vmem:[#allocation5 + $0x2080] sm:$0xff]
    %v1212 = vld [vmem:[#allocation5 + $0x2088] sm:$0xff]
    %v1213 = vld [vmem:[#allocation5 + $0x2090] sm:$0xff]
    %v1214 = vld [vmem:[#allocation5 + $0x2098] sm:$0xff]
    %v1215 = vld [vmem:[#allocation5 + $0x20a0] sm:$0xff]
    %v1216 = vld [vmem:[#allocation5 + $0x20a8] sm:$0xff]
    %v1217 = vld [vmem:[#allocation5 + $0x20b0] sm:$0xff]
    %v1218 = vld [vmem:[#allocation5 + $0x20b8] sm:$0xff]
    %v1219 = vld [vmem:[#allocation5 + $0x20c0] sm:$0xff]
    %v1220 = vld [vmem:[#allocation5 + $0x20c8] sm:$0xff]
    %v1221 = vld [vmem:[#allocation5 + $0x20d0] sm:$0xff]
    %v1222 = vld [vmem:[#allocation5 + $0x20d8] sm:$0xff]
    %v1223 = vld [vmem:[#allocation5 + $0x20e0] sm:$0xff]
    %v1224 = vld [vmem:[#allocation5 + $0x20e8] sm:$0xff]
    %v1225 = vld [vmem:[#allocation5 + $0x20f0] sm:$0xff]
    %v1226 = vld [vmem:[#allocation5 + $0x20f8] sm:$0xff]
    %v1227 = vld [vmem:[#allocation5 + $0x2100] sm:$0xff]
    %v1228 = vld [vmem:[#allocation5 + $0x2108] sm:$0xff]
    %v1229 = vld [vmem:[#allocation5 + $0x2110] sm:$0xff]
    %v1230 = vld [vmem:[#allocation5 + $0x2118] sm:$0xff]
    %v1231 = vld [vmem:[#allocation5 + $0x2120] sm:$0xff]
    %v1232 = vld [vmem:[#allocation5 + $0x2128] sm:$0xff]
    %v1233 = vld [vmem:[#allocation5 + $0x2130] sm:$0xff]
    %v1234 = vld [vmem:[#allocation5 + $0x2138] sm:$0xff]
    %v1235 = vld [vmem:[#allocation5 + $0x2140] sm:$0xff]
    %v1236 = vld [vmem:[#allocation5 + $0x2148] sm:$0xff]
    %v1237 = vld [vmem:[#allocation5 + $0x2150] sm:$0xff]
    %v1238 = vld [vmem:[#allocation5 + $0x2158] sm:$0xff]
    %v1239 = vld [vmem:[#allocation5 + $0x2160] sm:$0xff]
    %v1240 = vld [vmem:[#allocation5 + $0x2168] sm:$0xff]
    %v1241 = vld [vmem:[#allocation5 + $0x2170] sm:$0xff]
    %v1242 = vld [vmem:[#allocation5 + $0x2178] sm:$0xff]
    %v1243 = vld [vmem:[#allocation5 + $0x2180] sm:$0xff]
    %v1244 = vld [vmem:[#allocation5 + $0x2188] sm:$0xff]
    %v1245 = vld [vmem:[#allocation5 + $0x2190] sm:$0xff]
    %v1246 = vld [vmem:[#allocation5 + $0x2198] sm:$0xff]
    %v1247 = vld [vmem:[#allocation5 + $0x21a0] sm:$0xff]
    %v1248 = vld [vmem:[#allocation5 + $0x21a8] sm:$0xff]
    %v1249 = vld [vmem:[#allocation5 + $0x21b0] sm:$0xff]
    %v1250 = vld [vmem:[#allocation5 + $0x21b8] sm:$0xff]
    %v1251 = vld [vmem:[#allocation5 + $0x21c0] sm:$0xff]
    %v1252 = vld [vmem:[#allocation5 + $0x21c8] sm:$0xff]
    %v1253 = vld [vmem:[#allocation5 + $0x21d0] sm:$0xff]
    %v1254 = vld [vmem:[#allocation5 + $0x21d8] sm:$0xff]
    %v1255 = vld [vmem:[#allocation5 + $0x21e0] sm:$0xff]
    %v1256 = vld [vmem:[#allocation5 + $0x21e8] sm:$0xff]
    %v1257 = vld [vmem:[#allocation5 + $0x21f0] sm:$0xff]
    %v1258 = vld [vmem:[#allocation5 + $0x21f8] sm:$0xff]
    %v1259 = vld [vmem:[#allocation5 + $0x2200] sm:$0xff]
    %v1260 = vld [vmem:[#allocation5 + $0x2208] sm:$0xff]
    %v1261 = vld [vmem:[#allocation5 + $0x2210] sm:$0xff]
    %v1262 = vld [vmem:[#allocation5 + $0x2218] sm:$0xff]
    %v1263 = vld [vmem:[#allocation5 + $0x2220] sm:$0xff]
    %v1264 = vld [vmem:[#allocation5 + $0x2228] sm:$0xff]
    %v1265 = vld [vmem:[#allocation5 + $0x2230] sm:$0xff]
    %v1266 = vld [vmem:[#allocation5 + $0x2238] sm:$0xff]
    %v1267 = vld [vmem:[#allocation5 + $0x2240] sm:$0xff]
    %v1268 = vld [vmem:[#allocation5 + $0x2248] sm:$0xff]
    %v1269 = vld [vmem:[#allocation5 + $0x2250] sm:$0xff]
    %v1270 = vld [vmem:[#allocation5 + $0x2258] sm:$0xff]
    %v1271 = vld [vmem:[#allocation5 + $0x2260] sm:$0xff]
    %v1272 = vld [vmem:[#allocation5 + $0x2268] sm:$0xff]
    %v1273 = vld [vmem:[#allocation5 + $0x2270] sm:$0xff]
    %v1274 = vld [vmem:[#allocation5 + $0x2278] sm:$0xff]
    %v1275 = vld [vmem:[#allocation5 + $0x2280] sm:$0xff]
    %v1276 = vld [vmem:[#allocation5 + $0x2288] sm:$0xff]
    %v1277 = vld [vmem:[#allocation5 + $0x2290] sm:$0xff]
    %v1278 = vld [vmem:[#allocation5 + $0x2298] sm:$0xff]
    %v1279 = vld [vmem:[#allocation5 + $0x22a0] sm:$0xf]
    %v1280 = vld [vmem:[#allocation7] sm:$0x1]
    %v1282 = vlaneseq
    %v1283 = vshrl.u32 %v1282, 7
    %v1284 = vsub.s32 0, %v1283
    %v1285 = vrot.slane %v1280, %v1284
    %vm1287 = vcmask 293888
    %v1289 = vsel %vm1287, %v170, 0
    %vm1291 = vcmask 1043456
    %v1293 = vsel %vm1291, %v1279, 0
    %1295 = vmatprep.subr.mxu0 0.0
    %1296 = vmatpush1.msra.mxu0 %v186
    %1297 = vmatprep.subr.mxu0 0.0
    %1298 = vmatpush1.msra.mxu0 %v185
    %1299 = vmatprep.subr.mxu0 0.0
    %1300 = vmatpush1.msra.mxu0 %v184
    %1301 = vmatprep.subr.mxu0 0.0
    %1302 = vmatpush1.msra.mxu0 %v183
    %1303 = vmatprep.subr.mxu0 0.0
    %1304 = vmatpush1.msra.mxu0 %v182
    %1305 = vmatprep.subr.mxu0 0.0
    %1306 = vmatpush1.msra.mxu0 %v181
    %1307 = vmatprep.subr.mxu0 0.0
    %1308 = vmatpush1.msra.mxu0 %v180
    %1309 = vmatprep.subr.mxu0 0.0
    %1310 = vmatpush1.msra.mxu0 %v179
    %1311 = vmatprep.subr.mxu0 0.0
    %1312 = vmatpush1.msra.mxu0 %v178
    %1313 = vmatprep.subr.mxu0 0.0
    %1314 = vmatpush1.msra.mxu0 %v177
    %1315 = vmatprep.subr.mxu0 0.0
    %1316 = vmatpush1.msra.mxu0 %v176
    %1317 = vmatprep.subr.mxu0 0.0
    %1318 = vmatpush1.msra.mxu0 %v175
    %1319 = vmatprep.subr.mxu0 0.0
    %1320 = vmatpush1.msra.mxu0 %v174
    %1321 = vmatprep.subr.mxu0 0.0
    %1322 = vmatpush1.msra.mxu0 %v173
    %1323 = vmatprep.subr.mxu0 0.0
    %1324 = vmatpush1.msra.mxu0 %v172
    %1325 = vmatprep.subr.mxu0 0.0
    %1326 = vmatpush1.msra.mxu0 %v171
    %1327 = vmatprep.subr.mxu0 0.0
    %1328 = vmatpush2.msra.mxu0 %v202
    %1329 = vmatprep.subr.mxu0 0.0
    %1330 = vmatpush2.msra.mxu0 %v201
    %1331 = vmatprep.subr.mxu0 0.0
    %1332 = vmatpush2.msra.mxu0 %v200
    %1333 = vmatprep.subr.mxu0 0.0
    %1334 = vmatpush2.msra.mxu0 %v199
    %1335 = vmatprep.subr.mxu0 0.0
    %1336 = vmatpush2.msra.mxu0 %v198
    %1337 = vmatprep.subr.mxu0 0.0
    %1338 = vmatpush2.msra.mxu0 %v197
    %1339 = vmatprep.subr.mxu0 0.0
    %1340 = vmatpush2.msra.mxu0 %v196
    %1341 = vmatprep.subr.mxu0 0.0
    %1342 = vmatpush2.msra.mxu0 %v195
    %1343 = vmatprep.subr.mxu0 0.0
    %1344 = vmatpush2.msra.mxu0 %v194
    %1345 = vmatprep.subr.mxu0 0.0
    %1346 = vmatpush2.msra.mxu0 %v193
    %1347 = vmatprep.subr.mxu0 0.0
    %1348 = vmatpush2.msra.mxu0 %v192
    %1349 = vmatprep.subr.mxu0 0.0
    %1350 = vmatpush2.msra.mxu0 %v191
    %1351 = vmatprep.subr.mxu0 0.0
    %1352 = vmatpush2.msra.mxu0 %v190
    %1353 = vmatprep.subr.mxu0 0.0
    %1354 = vmatpush2.msra.mxu0 %v189
    %1355 = vmatprep.subr.mxu0 0.0
    %1356 = vmatpush2.msra.mxu0 %v188
    %1357 = vmatprep.subr.mxu0 0.0
    %1358 = vmatpush2.msra.mxu0 %v187
    %1359 = vmatprep.mubr.f32.mxu0 %v102
    %1360 = vmatmul.mubr.f32.gmra.mxu0 %v101
    %v1361 = vpop.f32.mrf.mxu0
    %v1362 = vadd.f32 %v1285, %v1361
    %v1363 = vpop.f32.mrf.mxu0
    %1364 = vdwg.mxu0
    %1365 = vmatprep.subr.mxu0 0.0
    %1366 = vmatpush1.msra.mxu0 %v218
    %1367 = vmatprep.subr.mxu0 0.0
    %1368 = vmatpush1.msra.mxu0 %v217
    %1369 = vmatprep.subr.mxu0 0.0
    %1370 = vmatpush1.msra.mxu0 %v216
    %1371 = vmatprep.subr.mxu0 0.0
    %1372 = vmatpush1.msra.mxu0 %v215
    %1373 = vmatprep.subr.mxu0 0.0
    %1374 = vmatpush1.msra.mxu0 %v214
    %1375 = vmatprep.subr.mxu0 0.0
    %1376 = vmatpush1.msra.mxu0 %v213
    %1377 = vmatprep.subr.mxu0 0.0
    %1378 = vmatpush1.msra.mxu0 %v212
    %1379 = vmatprep.subr.mxu0 0.0
    %1380 = vmatpush1.msra.mxu0 %v211
    %1381 = vmatprep.subr.mxu0 0.0
    %1382 = vmatpush1.msra.mxu0 %v210
    %1383 = vmatprep.subr.mxu0 0.0
    %1384 = vmatpush1.msra.mxu0 %v209
    %1385 = vmatprep.subr.mxu0 0.0
    %1386 = vmatpush1.msra.mxu0 %v208
    %1387 = vmatprep.subr.mxu0 0.0
    %1388 = vmatpush1.msra.mxu0 %v207
    %1389 = vmatprep.subr.mxu0 0.0
    %1390 = vmatpush1.msra.mxu0 %v206
    %1391 = vmatprep.subr.mxu0 0.0
    %1392 = vmatpush1.msra.mxu0 %v205
    %1393 = vmatprep.subr.mxu0 0.0
    %1394 = vmatpush1.msra.mxu0 %v204
    %1395 = vmatprep.subr.mxu0 0.0
    %1396 = vmatpush1.msra.mxu0 %v203
    %1397 = vmatprep.subr.mxu0 0.0
    %1398 = vmatpush2.msra.mxu0 %v234
    %1399 = vmatprep.subr.mxu0 0.0
    %1400 = vmatpush2.msra.mxu0 %v233
    %1401 = vmatprep.subr.mxu0 0.0
    %1402 = vmatpush2.msra.mxu0 %v232
    %1403 = vmatprep.subr.mxu0 0.0
    %1404 = vmatpush2.msra.mxu0 %v231
    %1405 = vmatprep.subr.mxu0 0.0
    %1406 = vmatpush2.msra.mxu0 %v230
    %1407 = vmatprep.subr.mxu0 0.0
    %1408 = vmatpush2.msra.mxu0 %v229
    %1409 = vmatprep.subr.mxu0 0.0
    %1410 = vmatpush2.msra.mxu0 %v228
    %1411 = vmatprep.subr.mxu0 0.0
    %1412 = vmatpush2.msra.mxu0 %v227
    %1413 = vmatprep.subr.mxu0 0.0
    %1414 = vmatpush2.msra.mxu0 %v226
    %1415 = vmatprep.subr.mxu0 0.0
    %1416 = vmatpush2.msra.mxu0 %v225
    %1417 = vmatprep.subr.mxu0 0.0
    %1418 = vmatpush2.msra.mxu0 %v224
    %1419 = vmatprep.subr.mxu0 0.0
    %1420 = vmatpush2.msra.mxu0 %v223
    %1421 = vmatprep.subr.mxu0 0.0
    %1422 = vmatpush2.msra.mxu0 %v222
    %1423 = vmatprep.subr.mxu0 0.0
    %1424 = vmatpush2.msra.mxu0 %v221
    %1425 = vmatprep.subr.mxu0 0.0
    %1426 = vmatpush2.msra.mxu0 %v220
    %1427 = vmatprep.subr.mxu0 0.0
    %1428 = vmatpush2.msra.mxu0 %v219
    %1429 = vmatprep.mubr.f32.mxu0 %v104
    %1430 = vmatmul.mubr.f32.gmra.mxu0 %v103
    %v1431 = vpop.f32.mrf.mxu0
    %v1432 = vadd.f32 %v1362, %v1431
    %v1433 = vpop.f32.mrf.mxu0
    %1434 = vdwg.mxu0
    %1435 = vmatprep.subr.mxu0 0.0
    %1436 = vmatpush1.msra.mxu0 %v250
    %1437 = vmatprep.subr.mxu0 0.0
    %1438 = vmatpush1.msra.mxu0 %v249
    %1439 = vmatprep.subr.mxu0 0.0
    %1440 = vmatpush1.msra.mxu0 %v248
    %1441 = vmatprep.subr.mxu0 0.0
    %1442 = vmatpush1.msra.mxu0 %v247
    %1443 = vmatprep.subr.mxu0 0.0
    %1444 = vmatpush1.msra.mxu0 %v246
    %1445 = vmatprep.subr.mxu0 0.0
    %1446 = vmatpush1.msra.mxu0 %v245
    %1447 = vmatprep.subr.mxu0 0.0
    %1448 = vmatpush1.msra.mxu0 %v244
    %1449 = vmatprep.subr.mxu0 0.0
    %1450 = vmatpush1.msra.mxu0 %v243
    %1451 = vmatprep.subr.mxu0 0.0
    %1452 = vmatpush1.msra.mxu0 %v242
    %1453 = vmatprep.subr.mxu0 0.0
    %1454 = vmatpush1.msra.mxu0 %v241
    %1455 = vmatprep.subr.mxu0 0.0
    %1456 = vmatpush1.msra.mxu0 %v240
    %1457 = vmatprep.subr.mxu0 0.0
    %1458 = vmatpush1.msra.mxu0 %v239
    %1459 = vmatprep.subr.mxu0 0.0
    %1460 = vmatpush1.msra.mxu0 %v238
    %1461 = vmatprep.subr.mxu0 0.0
    %1462 = vmatpush1.msra.mxu0 %v237
    %1463 = vmatprep.subr.mxu0 0.0
    %1464 = vmatpush1.msra.mxu0 %v236
    %1465 = vmatprep.subr.mxu0 0.0
    %1466 = vmatpush1.msra.mxu0 %v235
    %1467 = vmatprep.subr.mxu0 0.0
    %1468 = vmatpush2.msra.mxu0 %v266
    %1469 = vmatprep.subr.mxu0 0.0
    %1470 = vmatpush2.msra.mxu0 %v265
    %1471 = vmatprep.subr.mxu0 0.0
    %1472 = vmatpush2.msra.mxu0 %v264
    %1473 = vmatprep.subr.mxu0 0.0
    %1474 = vmatpush2.msra.mxu0 %v263
    %1475 = vmatprep.subr.mxu0 0.0
    %1476 = vmatpush2.msra.mxu0 %v262
    %1477 = vmatprep.subr.mxu0 0.0
    %1478 = vmatpush2.msra.mxu0 %v261
    %1479 = vmatprep.subr.mxu0 0.0
    %1480 = vmatpush2.msra.mxu0 %v260
    %1481 = vmatprep.subr.mxu0 0.0
    %1482 = vmatpush2.msra.mxu0 %v259
    %1483 = vmatprep.subr.mxu0 0.0
    %1484 = vmatpush2.msra.mxu0 %v258
    %1485 = vmatprep.subr.mxu0 0.0
    %1486 = vmatpush2.msra.mxu0 %v257
    %1487 = vmatprep.subr.mxu0 0.0
    %1488 = vmatpush2.msra.mxu0 %v256
    %1489 = vmatprep.subr.mxu0 0.0
    %1490 = vmatpush2.msra.mxu0 %v255
    %1491 = vmatprep.subr.mxu0 0.0
    %1492 = vmatpush2.msra.mxu0 %v254
    %1493 = vmatprep.subr.mxu0 0.0
    %1494 = vmatpush2.msra.mxu0 %v253
    %1495 = vmatprep.subr.mxu0 0.0
    %1496 = vmatpush2.msra.mxu0 %v252
    %1497 = vmatprep.subr.mxu0 0.0
    %1498 = vmatpush2.msra.mxu0 %v251
    %1499 = vmatprep.mubr.f32.mxu0 %v106
    %1500 = vmatmul.mubr.f32.gmra.mxu0 %v105
    %v1501 = vpop.f32.mrf.mxu0
    %v1502 = vadd.f32 %v1432, %v1501
    %v1503 = vpop.f32.mrf.mxu0
    %1504 = vdwg.mxu0
    %1505 = vmatprep.subr.mxu0 0.0
    %1506 = vmatpush1.msra.mxu0 %v282
    %1507 = vmatprep.subr.mxu0 0.0
    %1508 = vmatpush1.msra.mxu0 %v281
    %1509 = vmatprep.subr.mxu0 0.0
    %1510 = vmatpush1.msra.mxu0 %v280
    %1511 = vmatprep.subr.mxu0 0.0
    %1512 = vmatpush1.msra.mxu0 %v279
    %1513 = vmatprep.subr.mxu0 0.0
    %1514 = vmatpush1.msra.mxu0 %v278
    %1515 = vmatprep.subr.mxu0 0.0
    %1516 = vmatpush1.msra.mxu0 %v277
    %1517 = vmatprep.subr.mxu0 0.0
    %1518 = vmatpush1.msra.mxu0 %v276
    %1519 = vmatprep.subr.mxu0 0.0
    %1520 = vmatpush1.msra.mxu0 %v275
    %1521 = vmatprep.subr.mxu0 0.0
    %1522 = vmatpush1.msra.mxu0 %v274
    %1523 = vmatprep.subr.mxu0 0.0
    %1524 = vmatpush1.msra.mxu0 %v273
    %1525 = vmatprep.subr.mxu0 0.0
    %1526 = vmatpush1.msra.mxu0 %v272
    %1527 = vmatprep.subr.mxu0 0.0
    %1528 = vmatpush1.msra.mxu0 %v271
    %1529 = vmatprep.subr.mxu0 0.0
    %1530 = vmatpush1.msra.mxu0 %v270
    %1531 = vmatprep.subr.mxu0 0.0
    %1532 = vmatpush1.msra.mxu0 %v269
    %1533 = vmatprep.subr.mxu0 0.0
    %1534 = vmatpush1.msra.mxu0 %v268
    %1535 = vmatprep.subr.mxu0 0.0
    %1536 = vmatpush1.msra.mxu0 %v267
    %1537 = vmatprep.subr.mxu0 0.0
    %1538 = vmatpush2.msra.mxu0 %v298
    %1539 = vmatprep.subr.mxu0 0.0
    %1540 = vmatpush2.msra.mxu0 %v297
    %1541 = vmatprep.subr.mxu0 0.0
    %1542 = vmatpush2.msra.mxu0 %v296
    %1543 = vmatprep.subr.mxu0 0.0
    %1544 = vmatpush2.msra.mxu0 %v295
    %1545 = vmatprep.subr.mxu0 0.0
    %1546 = vmatpush2.msra.mxu0 %v294
    %1547 = vmatprep.subr.mxu0 0.0
    %1548 = vmatpush2.msra.mxu0 %v293
    %1549 = vmatprep.subr.mxu0 0.0
    %1550 = vmatpush2.msra.mxu0 %v292
    %1551 = vmatprep.subr.mxu0 0.0
    %1552 = vmatpush2.msra.mxu0 %v291
    %1553 = vmatprep.subr.mxu0 0.0
    %1554 = vmatpush2.msra.mxu0 %v290
    %1555 = vmatprep.subr.mxu0 0.0
    %1556 = vmatpush2.msra.mxu0 %v289
    %1557 = vmatprep.subr.mxu0 0.0
    %1558 = vmatpush2.msra.mxu0 %v288
    %1559 = vmatprep.subr.mxu0 0.0
    %1560 = vmatpush2.msra.mxu0 %v287
    %1561 = vmatprep.subr.mxu0 0.0
    %1562 = vmatpush2.msra.mxu0 %v286
    %1563 = vmatprep.subr.mxu0 0.0
    %1564 = vmatpush2.msra.mxu0 %v285
    %1565 = vmatprep.subr.mxu0 0.0
    %1566 = vmatpush2.msra.mxu0 %v284
    %1567 = vmatprep.subr.mxu0 0.0
    %1568 = vmatpush2.msra.mxu0 %v283
    %1569 = vmatprep.mubr.f32.mxu0 %v108
    %1570 = vmatmul.mubr.f32.gmra.mxu0 %v107
    %v1571 = vpop.f32.mrf.mxu0
    %v1572 = vadd.f32 %v1502, %v1571
    %v1573 = vpop.f32.mrf.mxu0
    %1574 = vdwg.mxu0
    %1575 = vmatprep.subr.mxu0 0.0
    %1576 = vmatpush1.msra.mxu0 %v314
    %1577 = vmatprep.subr.mxu0 0.0
    %1578 = vmatpush1.msra.mxu0 %v313
    %1579 = vmatprep.subr.mxu0 0.0
    %1580 = vmatpush1.msra.mxu0 %v312
    %1581 = vmatprep.subr.mxu0 0.0
    %1582 = vmatpush1.msra.mxu0 %v311
    %1583 = vmatprep.subr.mxu0 0.0
    %1584 = vmatpush1.msra.mxu0 %v310
    %1585 = vmatprep.subr.mxu0 0.0
    %1586 = vmatpush1.msra.mxu0 %v309
    %1587 = vmatprep.subr.mxu0 0.0
    %1588 = vmatpush1.msra.mxu0 %v308
    %1589 = vmatprep.subr.mxu0 0.0
    %1590 = vmatpush1.msra.mxu0 %v307
    %1591 = vmatprep.subr.mxu0 0.0
    %1592 = vmatpush1.msra.mxu0 %v306
    %1593 = vmatprep.subr.mxu0 0.0
    %1594 = vmatpush1.msra.mxu0 %v305
    %1595 = vmatprep.subr.mxu0 0.0
    %1596 = vmatpush1.msra.mxu0 %v304
    %1597 = vmatprep.subr.mxu0 0.0
    %1598 = vmatpush1.msra.mxu0 %v303
    %1599 = vmatprep.subr.mxu0 0.0
    %1600 = vmatpush1.msra.mxu0 %v302
    %1601 = vmatprep.subr.mxu0 0.0
    %1602 = vmatpush1.msra.mxu0 %v301
    %1603 = vmatprep.subr.mxu0 0.0
    %1604 = vmatpush1.msra.mxu0 %v300
    %1605 = vmatprep.subr.mxu0 0.0
    %1606 = vmatpush1.msra.mxu0 %v299
    %1607 = vmatprep.subr.mxu0 0.0
    %1608 = vmatpush2.msra.mxu0 %v330
    %1609 = vmatprep.subr.mxu0 0.0
    %1610 = vmatpush2.msra.mxu0 %v329
    %1611 = vmatprep.subr.mxu0 0.0
    %1612 = vmatpush2.msra.mxu0 %v328
    %1613 = vmatprep.subr.mxu0 0.0
    %1614 = vmatpush2.msra.mxu0 %v327
    %1615 = vmatprep.subr.mxu0 0.0
    %1616 = vmatpush2.msra.mxu0 %v326
    %1617 = vmatprep.subr.mxu0 0.0
    %1618 = vmatpush2.msra.mxu0 %v325
    %1619 = vmatprep.subr.mxu0 0.0
    %1620 = vmatpush2.msra.mxu0 %v324
    %1621 = vmatprep.subr.mxu0 0.0
    %1622 = vmatpush2.msra.mxu0 %v323
    %1623 = vmatprep.subr.mxu0 0.0
    %1624 = vmatpush2.msra.mxu0 %v322
    %1625 = vmatprep.subr.mxu0 0.0
    %1626 = vmatpush2.msra.mxu0 %v321
    %1627 = vmatprep.subr.mxu0 0.0
    %1628 = vmatpush2.msra.mxu0 %v320
    %1629 = vmatprep.subr.mxu0 0.0
    %1630 = vmatpush2.msra.mxu0 %v319
    %1631 = vmatprep.subr.mxu0 0.0
    %1632 = vmatpush2.msra.mxu0 %v318
    %1633 = vmatprep.subr.mxu0 0.0
    %1634 = vmatpush2.msra.mxu0 %v317
    %1635 = vmatprep.subr.mxu0 0.0
    %1636 = vmatpush2.msra.mxu0 %v316
    %1637 = vmatprep.subr.mxu0 0.0
    %1638 = vmatpush2.msra.mxu0 %v315
    %1639 = vmatprep.mubr.f32.mxu0 %v110
    %1640 = vmatmul.mubr.f32.gmra.mxu0 %v109
    %v1641 = vpop.f32.mrf.mxu0
    %v1642 = vadd.f32 %v1572, %v1641
    %v1643 = vpop.f32.mrf.mxu0
    %1644 = vdwg.mxu0
    %1645 = vmatprep.subr.mxu0 0.0
    %1646 = vmatpush1.msra.mxu0 %v346
    %1647 = vmatprep.subr.mxu0 0.0
    %1648 = vmatpush1.msra.mxu0 %v345
    %1649 = vmatprep.subr.mxu0 0.0
    %1650 = vmatpush1.msra.mxu0 %v344
    %1651 = vmatprep.subr.mxu0 0.0
    %1652 = vmatpush1.msra.mxu0 %v343
    %1653 = vmatprep.subr.mxu0 0.0
    %1654 = vmatpush1.msra.mxu0 %v342
    %1655 = vmatprep.subr.mxu0 0.0
    %1656 = vmatpush1.msra.mxu0 %v341
    %1657 = vmatprep.subr.mxu0 0.0
    %1658 = vmatpush1.msra.mxu0 %v340
    %1659 = vmatprep.subr.mxu0 0.0
    %1660 = vmatpush1.msra.mxu0 %v339
    %1661 = vmatprep.subr.mxu0 0.0
    %1662 = vmatpush1.msra.mxu0 %v338
    %1663 = vmatprep.subr.mxu0 0.0
    %1664 = vmatpush1.msra.mxu0 %v337
    %1665 = vmatprep.subr.mxu0 0.0
    %1666 = vmatpush1.msra.mxu0 %v336
    %1667 = vmatprep.subr.mxu0 0.0
    %1668 = vmatpush1.msra.mxu0 %v335
    %1669 = vmatprep.subr.mxu0 0.0
    %1670 = vmatpush1.msra.mxu0 %v334
    %1671 = vmatprep.subr.mxu0 0.0
    %1672 = vmatpush1.msra.mxu0 %v333
    %1673 = vmatprep.subr.mxu0 0.0
    %1674 = vmatpush1.msra.mxu0 %v332
    %1675 = vmatprep.subr.mxu0 0.0
    %1676 = vmatpush1.msra.mxu0 %v331
    %1677 = vmatprep.subr.mxu0 0.0
    %1678 = vmatpush2.msra.mxu0 %v362
    %1679 = vmatprep.subr.mxu0 0.0
    %1680 = vmatpush2.msra.mxu0 %v361
    %1681 = vmatprep.subr.mxu0 0.0
    %1682 = vmatpush2.msra.mxu0 %v360
    %1683 = vmatprep.subr.mxu0 0.0
    %1684 = vmatpush2.msra.mxu0 %v359
    %1685 = vmatprep.subr.mxu0 0.0
    %1686 = vmatpush2.msra.mxu0 %v358
    %1687 = vmatprep.subr.mxu0 0.0
    %1688 = vmatpush2.msra.mxu0 %v357
    %1689 = vmatprep.subr.mxu0 0.0
    %1690 = vmatpush2.msra.mxu0 %v356
    %1691 = vmatprep.subr.mxu0 0.0
    %1692 = vmatpush2.msra.mxu0 %v355
    %1693 = vmatprep.subr.mxu0 0.0
    %1694 = vmatpush2.msra.mxu0 %v354
    %1695 = vmatprep.subr.mxu0 0.0
    %1696 = vmatpush2.msra.mxu0 %v353
    %1697 = vmatprep.subr.mxu0 0.0
    %1698 = vmatpush2.msra.mxu0 %v352
    %1699 = vmatprep.subr.mxu0 0.0
    %1700 = vmatpush2.msra.mxu0 %v351
    %1701 = vmatprep.subr.mxu0 0.0
    %1702 = vmatpush2.msra.mxu0 %v350
    %1703 = vmatprep.subr.mxu0 0.0
    %1704 = vmatpush2.msra.mxu0 %v349
    %1705 = vmatprep.subr.mxu0 0.0
    %1706 = vmatpush2.msra.mxu0 %v348
    %1707 = vmatprep.subr.mxu0 0.0
    %1708 = vmatpush2.msra.mxu0 %v347
    %1709 = vmatprep.mubr.f32.mxu0 %v112
    %1710 = vmatmul.mubr.f32.gmra.mxu0 %v111
    %v1711 = vpop.f32.mrf.mxu0
    %v1712 = vadd.f32 %v1642, %v1711
    %v1713 = vpop.f32.mrf.mxu0
    %1714 = vdwg.mxu0
    %1715 = vmatprep.subr.mxu0 0.0
    %1716 = vmatpush1.msra.mxu0 %v378
    %1717 = vmatprep.subr.mxu0 0.0
    %1718 = vmatpush1.msra.mxu0 %v377
    %1719 = vmatprep.subr.mxu0 0.0
    %1720 = vmatpush1.msra.mxu0 %v376
    %1721 = vmatprep.subr.mxu0 0.0
    %1722 = vmatpush1.msra.mxu0 %v375
    %1723 = vmatprep.subr.mxu0 0.0
    %1724 = vmatpush1.msra.mxu0 %v374
    %1725 = vmatprep.subr.mxu0 0.0
    %1726 = vmatpush1.msra.mxu0 %v373
    %1727 = vmatprep.subr.mxu0 0.0
    %1728 = vmatpush1.msra.mxu0 %v372
    %1729 = vmatprep.subr.mxu0 0.0
    %1730 = vmatpush1.msra.mxu0 %v371
    %1731 = vmatprep.subr.mxu0 0.0
    %1732 = vmatpush1.msra.mxu0 %v370
    %1733 = vmatprep.subr.mxu0 0.0
    %1734 = vmatpush1.msra.mxu0 %v369
    %1735 = vmatprep.subr.mxu0 0.0
    %1736 = vmatpush1.msra.mxu0 %v368
    %1737 = vmatprep.subr.mxu0 0.0
    %1738 = vmatpush1.msra.mxu0 %v367
    %1739 = vmatprep.subr.mxu0 0.0
    %1740 = vmatpush1.msra.mxu0 %v366
    %1741 = vmatprep.subr.mxu0 0.0
    %1742 = vmatpush1.msra.mxu0 %v365
    %1743 = vmatprep.subr.mxu0 0.0
    %1744 = vmatpush1.msra.mxu0 %v364
    %1745 = vmatprep.subr.mxu0 0.0
    %1746 = vmatpush1.msra.mxu0 %v363
    %1747 = vmatprep.subr.mxu0 0.0
    %1748 = vmatpush2.msra.mxu0 %v394
    %1749 = vmatprep.subr.mxu0 0.0
    %1750 = vmatpush2.msra.mxu0 %v393
    %1751 = vmatprep.subr.mxu0 0.0
    %1752 = vmatpush2.msra.mxu0 %v392
    %1753 = vmatprep.subr.mxu0 0.0
    %1754 = vmatpush2.msra.mxu0 %v391
    %1755 = vmatprep.subr.mxu0 0.0
    %1756 = vmatpush2.msra.mxu0 %v390
    %1757 = vmatprep.subr.mxu0 0.0
    %1758 = vmatpush2.msra.mxu0 %v389
    %1759 = vmatprep.subr.mxu0 0.0
    %1760 = vmatpush2.msra.mxu0 %v388
    %1761 = vmatprep.subr.mxu0 0.0
    %1762 = vmatpush2.msra.mxu0 %v387
    %1763 = vmatprep.subr.mxu0 0.0
    %1764 = vmatpush2.msra.mxu0 %v386
    %1765 = vmatprep.subr.mxu0 0.0
    %1766 = vmatpush2.msra.mxu0 %v385
    %1767 = vmatprep.subr.mxu0 0.0
    %1768 = vmatpush2.msra.mxu0 %v384
    %1769 = vmatprep.subr.mxu0 0.0
    %1770 = vmatpush2.msra.mxu0 %v383
    %1771 = vmatprep.subr.mxu0 0.0
    %1772 = vmatpush2.msra.mxu0 %v382
    %1773 = vmatprep.subr.mxu0 0.0
    %1774 = vmatpush2.msra.mxu0 %v381
    %1775 = vmatprep.subr.mxu0 0.0
    %1776 = vmatpush2.msra.mxu0 %v380
    %1777 = vmatprep.subr.mxu0 0.0
    %1778 = vmatpush2.msra.mxu0 %v379
    %1779 = vmatprep.mubr.f32.mxu0 %v114
    %1780 = vmatmul.mubr.f32.gmra.mxu0 %v113
    %v1781 = vpop.f32.mrf.mxu0
    %v1782 = vadd.f32 %v1712, %v1781
    %v1783 = vpop.f32.mrf.mxu0
    %1784 = vdwg.mxu0
    %1785 = vmatprep.subr.mxu0 0.0
    %1786 = vmatpush1.msra.mxu0 %v410
    %1787 = vmatprep.subr.mxu0 0.0
    %1788 = vmatpush1.msra.mxu0 %v409
    %1789 = vmatprep.subr.mxu0 0.0
    %1790 = vmatpush1.msra.mxu0 %v408
    %1791 = vmatprep.subr.mxu0 0.0
    %1792 = vmatpush1.msra.mxu0 %v407
    %1793 = vmatprep.subr.mxu0 0.0
    %1794 = vmatpush1.msra.mxu0 %v406
    %1795 = vmatprep.subr.mxu0 0.0
    %1796 = vmatpush1.msra.mxu0 %v405
    %1797 = vmatprep.subr.mxu0 0.0
    %1798 = vmatpush1.msra.mxu0 %v404
    %1799 = vmatprep.subr.mxu0 0.0
    %1800 = vmatpush1.msra.mxu0 %v403
    %1801 = vmatprep.subr.mxu0 0.0
    %1802 = vmatpush1.msra.mxu0 %v402
    %1803 = vmatprep.subr.mxu0 0.0
    %1804 = vmatpush1.msra.mxu0 %v401
    %1805 = vmatprep.subr.mxu0 0.0
    %1806 = vmatpush1.msra.mxu0 %v400
    %1807 = vmatprep.subr.mxu0 0.0
    %1808 = vmatpush1.msra.mxu0 %v399
    %1809 = vmatprep.subr.mxu0 0.0
    %1810 = vmatpush1.msra.mxu0 %v398
    %1811 = vmatprep.subr.mxu0 0.0
    %1812 = vmatpush1.msra.mxu0 %v397
    %1813 = vmatprep.subr.mxu0 0.0
    %1814 = vmatpush1.msra.mxu0 %v396
    %1815 = vmatprep.subr.mxu0 0.0
    %1816 = vmatpush1.msra.mxu0 %v395
    %1817 = vmatprep.subr.mxu0 0.0
    %1818 = vmatpush2.msra.mxu0 %v426
    %1819 = vmatprep.subr.mxu0 0.0
    %1820 = vmatpush2.msra.mxu0 %v425
    %1821 = vmatprep.subr.mxu0 0.0
    %1822 = vmatpush2.msra.mxu0 %v424
    %1823 = vmatprep.subr.mxu0 0.0
    %1824 = vmatpush2.msra.mxu0 %v423
    %1825 = vmatprep.subr.mxu0 0.0
    %1826 = vmatpush2.msra.mxu0 %v422
    %1827 = vmatprep.subr.mxu0 0.0
    %1828 = vmatpush2.msra.mxu0 %v421
    %1829 = vmatprep.subr.mxu0 0.0
    %1830 = vmatpush2.msra.mxu0 %v420
    %1831 = vmatprep.subr.mxu0 0.0
    %1832 = vmatpush2.msra.mxu0 %v419
    %1833 = vmatprep.subr.mxu0 0.0
    %1834 = vmatpush2.msra.mxu0 %v418
    %1835 = vmatprep.subr.mxu0 0.0
    %1836 = vmatpush2.msra.mxu0 %v417
    %1837 = vmatprep.subr.mxu0 0.0
    %1838 = vmatpush2.msra.mxu0 %v416
    %1839 = vmatprep.subr.mxu0 0.0
    %1840 = vmatpush2.msra.mxu0 %v415
    %1841 = vmatprep.subr.mxu0 0.0
    %1842 = vmatpush2.msra.mxu0 %v414
    %1843 = vmatprep.subr.mxu0 0.0
    %1844 = vmatpush2.msra.mxu0 %v413
    %1845 = vmatprep.subr.mxu0 0.0
    %1846 = vmatpush2.msra.mxu0 %v412
    %1847 = vmatprep.subr.mxu0 0.0
    %1848 = vmatpush2.msra.mxu0 %v411
    %1849 = vmatprep.mubr.f32.mxu0 %v116
    %1850 = vmatmul.mubr.f32.gmra.mxu0 %v115
    %v1851 = vpop.f32.mrf.mxu0
    %v1852 = vadd.f32 %v1782, %v1851
    %v1853 = vpop.f32.mrf.mxu0
    %1854 = vdwg.mxu0
    %1855 = vmatprep.subr.mxu0 0.0
    %1856 = vmatpush1.msra.mxu0 %v442
    %1857 = vmatprep.subr.mxu0 0.0
    %1858 = vmatpush1.msra.mxu0 %v441
    %1859 = vmatprep.subr.mxu0 0.0
    %1860 = vmatpush1.msra.mxu0 %v440
    %1861 = vmatprep.subr.mxu0 0.0
    %1862 = vmatpush1.msra.mxu0 %v439
    %1863 = vmatprep.subr.mxu0 0.0
    %1864 = vmatpush1.msra.mxu0 %v438
    %1865 = vmatprep.subr.mxu0 0.0
    %1866 = vmatpush1.msra.mxu0 %v437
    %1867 = vmatprep.subr.mxu0 0.0
    %1868 = vmatpush1.msra.mxu0 %v436
    %1869 = vmatprep.subr.mxu0 0.0
    %1870 = vmatpush1.msra.mxu0 %v435
    %1871 = vmatprep.subr.mxu0 0.0
    %1872 = vmatpush1.msra.mxu0 %v434
    %1873 = vmatprep.subr.mxu0 0.0
    %1874 = vmatpush1.msra.mxu0 %v433
    %1875 = vmatprep.subr.mxu0 0.0
    %1876 = vmatpush1.msra.mxu0 %v432
    %1877 = vmatprep.subr.mxu0 0.0
    %1878 = vmatpush1.msra.mxu0 %v431
    %1879 = vmatprep.subr.mxu0 0.0
    %1880 = vmatpush1.msra.mxu0 %v430
    %1881 = vmatprep.subr.mxu0 0.0
    %1882 = vmatpush1.msra.mxu0 %v429
    %1883 = vmatprep.subr.mxu0 0.0
    %1884 = vmatpush1.msra.mxu0 %v428
    %1885 = vmatprep.subr.mxu0 0.0
    %1886 = vmatpush1.msra.mxu0 %v427
    %1887 = vmatprep.subr.mxu0 0.0
    %1888 = vmatpush2.msra.mxu0 %v458
    %1889 = vmatprep.subr.mxu0 0.0
    %1890 = vmatpush2.msra.mxu0 %v457
    %1891 = vmatprep.subr.mxu0 0.0
    %1892 = vmatpush2.msra.mxu0 %v456
    %1893 = vmatprep.subr.mxu0 0.0
    %1894 = vmatpush2.msra.mxu0 %v455
    %1895 = vmatprep.subr.mxu0 0.0
    %1896 = vmatpush2.msra.mxu0 %v454
    %1897 = vmatprep.subr.mxu0 0.0
    %1898 = vmatpush2.msra.mxu0 %v453
    %1899 = vmatprep.subr.mxu0 0.0
    %1900 = vmatpush2.msra.mxu0 %v452
    %1901 = vmatprep.subr.mxu0 0.0
    %1902 = vmatpush2.msra.mxu0 %v451
    %1903 = vmatprep.subr.mxu0 0.0
    %1904 = vmatpush2.msra.mxu0 %v450
    %1905 = vmatprep.subr.mxu0 0.0
    %1906 = vmatpush2.msra.mxu0 %v449
    %1907 = vmatprep.subr.mxu0 0.0
    %1908 = vmatpush2.msra.mxu0 %v448
    %1909 = vmatprep.subr.mxu0 0.0
    %1910 = vmatpush2.msra.mxu0 %v447
    %1911 = vmatprep.subr.mxu0 0.0
    %1912 = vmatpush2.msra.mxu0 %v446
    %1913 = vmatprep.subr.mxu0 0.0
    %1914 = vmatpush2.msra.mxu0 %v445
    %1915 = vmatprep.subr.mxu0 0.0
    %1916 = vmatpush2.msra.mxu0 %v444
    %1917 = vmatprep.subr.mxu0 0.0
    %1918 = vmatpush2.msra.mxu0 %v443
    %1919 = vmatprep.mubr.f32.mxu0 %v118
    %1920 = vmatmul.mubr.f32.gmra.mxu0 %v117
    %v1921 = vpop.f32.mrf.mxu0
    %v1922 = vadd.f32 %v1852, %v1921
    %v1923 = vpop.f32.mrf.mxu0
    %1924 = vdwg.mxu0
    %1925 = vmatprep.subr.mxu0 0.0
    %1926 = vmatpush1.msra.mxu0 %v474
    %1927 = vmatprep.subr.mxu0 0.0
    %1928 = vmatpush1.msra.mxu0 %v473
    %1929 = vmatprep.subr.mxu0 0.0
    %1930 = vmatpush1.msra.mxu0 %v472
    %1931 = vmatprep.subr.mxu0 0.0
    %1932 = vmatpush1.msra.mxu0 %v471
    %1933 = vmatprep.subr.mxu0 0.0
    %1934 = vmatpush1.msra.mxu0 %v470
    %1935 = vmatprep.subr.mxu0 0.0
    %1936 = vmatpush1.msra.mxu0 %v469
    %1937 = vmatprep.subr.mxu0 0.0
    %1938 = vmatpush1.msra.mxu0 %v468
    %1939 = vmatprep.subr.mxu0 0.0
    %1940 = vmatpush1.msra.mxu0 %v467
    %1941 = vmatprep.subr.mxu0 0.0
    %1942 = vmatpush1.msra.mxu0 %v466
    %1943 = vmatprep.subr.mxu0 0.0
    %1944 = vmatpush1.msra.mxu0 %v465
    %1945 = vmatprep.subr.mxu0 0.0
    %1946 = vmatpush1.msra.mxu0 %v464
    %1947 = vmatprep.subr.mxu0 0.0
    %1948 = vmatpush1.msra.mxu0 %v463
    %1949 = vmatprep.subr.mxu0 0.0
    %1950 = vmatpush1.msra.mxu0 %v462
    %1951 = vmatprep.subr.mxu0 0.0
    %1952 = vmatpush1.msra.mxu0 %v461
    %1953 = vmatprep.subr.mxu0 0.0
    %1954 = vmatpush1.msra.mxu0 %v460
    %1955 = vmatprep.subr.mxu0 0.0
    %1956 = vmatpush1.msra.mxu0 %v459
    %1957 = vmatprep.subr.mxu0 0.0
    %1958 = vmatpush2.msra.mxu0 %v490
    %1959 = vmatprep.subr.mxu0 0.0
    %1960 = vmatpush2.msra.mxu0 %v489
    %1961 = vmatprep.subr.mxu0 0.0
    %1962 = vmatpush2.msra.mxu0 %v488
    %1963 = vmatprep.subr.mxu0 0.0
    %1964 = vmatpush2.msra.mxu0 %v487
    %1965 = vmatprep.subr.mxu0 0.0
    %1966 = vmatpush2.msra.mxu0 %v486
    %1967 = vmatprep.subr.mxu0 0.0
    %1968 = vmatpush2.msra.mxu0 %v485
    %1969 = vmatprep.subr.mxu0 0.0
    %1970 = vmatpush2.msra.mxu0 %v484
    %1971 = vmatprep.subr.mxu0 0.0
    %1972 = vmatpush2.msra.mxu0 %v483
    %1973 = vmatprep.subr.mxu0 0.0
    %1974 = vmatpush2.msra.mxu0 %v482
    %1975 = vmatprep.subr.mxu0 0.0
    %1976 = vmatpush2.msra.mxu0 %v481
    %1977 = vmatprep.subr.mxu0 0.0
    %1978 = vmatpush2.msra.mxu0 %v480
    %1979 = vmatprep.subr.mxu0 0.0
    %1980 = vmatpush2.msra.mxu0 %v479
    %1981 = vmatprep.subr.mxu0 0.0
    %1982 = vmatpush2.msra.mxu0 %v478
    %1983 = vmatprep.subr.mxu0 0.0
    %1984 = vmatpush2.msra.mxu0 %v477
    %1985 = vmatprep.subr.mxu0 0.0
    %1986 = vmatpush2.msra.mxu0 %v476
    %1987 = vmatprep.subr.mxu0 0.0
    %1988 = vmatpush2.msra.mxu0 %v475
    %1989 = vmatprep.mubr.f32.mxu0 %v120
    %1990 = vmatmul.mubr.f32.gmra.mxu0 %v119
    %v1991 = vpop.f32.mrf.mxu0
    %v1992 = vadd.f32 %v1922, %v1991
    %v1993 = vpop.f32.mrf.mxu0
    %1994 = vdwg.mxu0
    %1995 = vmatprep.subr.mxu0 0.0
    %1996 = vmatpush1.msra.mxu0 %v506
    %1997 = vmatprep.subr.mxu0 0.0
    %1998 = vmatpush1.msra.mxu0 %v505
    %1999 = vmatprep.subr.mxu0 0.0
    %2000 = vmatpush1.msra.mxu0 %v504
    %2001 = vmatprep.subr.mxu0 0.0
    %2002 = vmatpush1.msra.mxu0 %v503
    %2003 = vmatprep.subr.mxu0 0.0
    %2004 = vmatpush1.msra.mxu0 %v502
    %2005 = vmatprep.subr.mxu0 0.0
    %2006 = vmatpush1.msra.mxu0 %v501
    %2007 = vmatprep.subr.mxu0 0.0
    %2008 = vmatpush1.msra.mxu0 %v500
    %2009 = vmatprep.subr.mxu0 0.0
    %2010 = vmatpush1.msra.mxu0 %v499
    %2011 = vmatprep.subr.mxu0 0.0
    %2012 = vmatpush1.msra.mxu0 %v498
    %2013 = vmatprep.subr.mxu0 0.0
    %2014 = vmatpush1.msra.mxu0 %v497
    %2015 = vmatprep.subr.mxu0 0.0
    %2016 = vmatpush1.msra.mxu0 %v496
    %2017 = vmatprep.subr.mxu0 0.0
    %2018 = vmatpush1.msra.mxu0 %v495
    %2019 = vmatprep.subr.mxu0 0.0
    %2020 = vmatpush1.msra.mxu0 %v494
    %2021 = vmatprep.subr.mxu0 0.0
    %2022 = vmatpush1.msra.mxu0 %v493
    %2023 = vmatprep.subr.mxu0 0.0
    %2024 = vmatpush1.msra.mxu0 %v492
    %2025 = vmatprep.subr.mxu0 0.0
    %2026 = vmatpush1.msra.mxu0 %v491
    %2027 = vmatprep.subr.mxu0 0.0
    %2028 = vmatpush2.msra.mxu0 %v522
    %2029 = vmatprep.subr.mxu0 0.0
    %2030 = vmatpush2.msra.mxu0 %v521
    %2031 = vmatprep.subr.mxu0 0.0
    %2032 = vmatpush2.msra.mxu0 %v520
    %2033 = vmatprep.subr.mxu0 0.0
    %2034 = vmatpush2.msra.mxu0 %v519
    %2035 = vmatprep.subr.mxu0 0.0
    %2036 = vmatpush2.msra.mxu0 %v518
    %2037 = vmatprep.subr.mxu0 0.0
    %2038 = vmatpush2.msra.mxu0 %v517
    %2039 = vmatprep.subr.mxu0 0.0
    %2040 = vmatpush2.msra.mxu0 %v516
    %2041 = vmatprep.subr.mxu0 0.0
    %2042 = vmatpush2.msra.mxu0 %v515
    %2043 = vmatprep.subr.mxu0 0.0
    %2044 = vmatpush2.msra.mxu0 %v514
    %2045 = vmatprep.subr.mxu0 0.0
    %2046 = vmatpush2.msra.mxu0 %v513
    %2047 = vmatprep.subr.mxu0 0.0
    %2048 = vmatpush2.msra.mxu0 %v512
    %2049 = vmatprep.subr.mxu0 0.0
    %2050 = vmatpush2.msra.mxu0 %v511
    %2051 = vmatprep.subr.mxu0 0.0
    %2052 = vmatpush2.msra.mxu0 %v510
    %2053 = vmatprep.subr.mxu0 0.0
    %2054 = vmatpush2.msra.mxu0 %v509
    %2055 = vmatprep.subr.mxu0 0.0
    %2056 = vmatpush2.msra.mxu0 %v508
    %2057 = vmatprep.subr.mxu0 0.0
    %2058 = vmatpush2.msra.mxu0 %v507
    %2059 = vmatprep.mubr.f32.mxu0 %v122
    %2060 = vmatmul.mubr.f32.gmra.mxu0 %v121
    %v2061 = vpop.f32.mrf.mxu0
    %v2062 = vadd.f32 %v1992, %v2061
    %v2063 = vpop.f32.mrf.mxu0
    %2064 = vdwg.mxu0
    %2065 = vmatprep.subr.mxu0 0.0
    %2066 = vmatpush1.msra.mxu0 %v538
    %2067 = vmatprep.subr.mxu0 0.0
    %2068 = vmatpush1.msra.mxu0 %v537
    %2069 = vmatprep.subr.mxu0 0.0
    %2070 = vmatpush1.msra.mxu0 %v536
    %2071 = vmatprep.subr.mxu0 0.0
    %2072 = vmatpush1.msra.mxu0 %v535
    %2073 = vmatprep.subr.mxu0 0.0
    %2074 = vmatpush1.msra.mxu0 %v534
    %2075 = vmatprep.subr.mxu0 0.0
    %2076 = vmatpush1.msra.mxu0 %v533
    %2077 = vmatprep.subr.mxu0 0.0
    %2078 = vmatpush1.msra.mxu0 %v532
    %2079 = vmatprep.subr.mxu0 0.0
    %2080 = vmatpush1.msra.mxu0 %v531
    %2081 = vmatprep.subr.mxu0 0.0
    %2082 = vmatpush1.msra.mxu0 %v530
    %2083 = vmatprep.subr.mxu0 0.0
    %2084 = vmatpush1.msra.mxu0 %v529
    %2085 = vmatprep.subr.mxu0 0.0
    %2086 = vmatpush1.msra.mxu0 %v528
    %2087 = vmatprep.subr.mxu0 0.0
    %2088 = vmatpush1.msra.mxu0 %v527
    %2089 = vmatprep.subr.mxu0 0.0
    %2090 = vmatpush1.msra.mxu0 %v526
    %2091 = vmatprep.subr.mxu0 0.0
    %2092 = vmatpush1.msra.mxu0 %v525
    %2093 = vmatprep.subr.mxu0 0.0
    %2094 = vmatpush1.msra.mxu0 %v524
    %2095 = vmatprep.subr.mxu0 0.0
    %2096 = vmatpush1.msra.mxu0 %v523
    %2097 = vmatprep.subr.mxu0 0.0
    %2098 = vmatpush2.msra.mxu0 %v554
    %2099 = vmatprep.subr.mxu0 0.0
    %2100 = vmatpush2.msra.mxu0 %v553
    %2101 = vmatprep.subr.mxu0 0.0
    %2102 = vmatpush2.msra.mxu0 %v552
    %2103 = vmatprep.subr.mxu0 0.0
    %2104 = vmatpush2.msra.mxu0 %v551
    %2105 = vmatprep.subr.mxu0 0.0
    %2106 = vmatpush2.msra.mxu0 %v550
    %2107 = vmatprep.subr.mxu0 0.0
    %2108 = vmatpush2.msra.mxu0 %v549
    %2109 = vmatprep.subr.mxu0 0.0
    %2110 = vmatpush2.msra.mxu0 %v548
    %2111 = vmatprep.subr.mxu0 0.0
    %2112 = vmatpush2.msra.mxu0 %v547
    %2113 = vmatprep.subr.mxu0 0.0
    %2114 = vmatpush2.msra.mxu0 %v546
    %2115 = vmatprep.subr.mxu0 0.0
    %2116 = vmatpush2.msra.mxu0 %v545
    %2117 = vmatprep.subr.mxu0 0.0
    %2118 = vmatpush2.msra.mxu0 %v544
    %2119 = vmatprep.subr.mxu0 0.0
    %2120 = vmatpush2.msra.mxu0 %v543
    %2121 = vmatprep.subr.mxu0 0.0
    %2122 = vmatpush2.msra.mxu0 %v542
    %2123 = vmatprep.subr.mxu0 0.0
    %2124 = vmatpush2.msra.mxu0 %v541
    %2125 = vmatprep.subr.mxu0 0.0
    %2126 = vmatpush2.msra.mxu0 %v540
    %2127 = vmatprep.subr.mxu0 0.0
    %2128 = vmatpush2.msra.mxu0 %v539
    %2129 = vmatprep.mubr.f32.mxu0 %v124
    %2130 = vmatmul.mubr.f32.gmra.mxu0 %v123
    %v2131 = vpop.f32.mrf.mxu0
    %v2132 = vadd.f32 %v2062, %v2131
    %v2133 = vpop.f32.mrf.mxu0
    %2134 = vdwg.mxu0
    %2135 = vmatprep.subr.mxu0 0.0
    %2136 = vmatpush1.msra.mxu0 %v570
    %2137 = vmatprep.subr.mxu0 0.0
    %2138 = vmatpush1.msra.mxu0 %v569
    %2139 = vmatprep.subr.mxu0 0.0
    %2140 = vmatpush1.msra.mxu0 %v568
    %2141 = vmatprep.subr.mxu0 0.0
    %2142 = vmatpush1.msra.mxu0 %v567
    %2143 = vmatprep.subr.mxu0 0.0
    %2144 = vmatpush1.msra.mxu0 %v566
    %2145 = vmatprep.subr.mxu0 0.0
    %2146 = vmatpush1.msra.mxu0 %v565
    %2147 = vmatprep.subr.mxu0 0.0
    %2148 = vmatpush1.msra.mxu0 %v564
    %2149 = vmatprep.subr.mxu0 0.0
    %2150 = vmatpush1.msra.mxu0 %v563
    %2151 = vmatprep.subr.mxu0 0.0
    %2152 = vmatpush1.msra.mxu0 %v562
    %2153 = vmatprep.subr.mxu0 0.0
    %2154 = vmatpush1.msra.mxu0 %v561
    %2155 = vmatprep.subr.mxu0 0.0
    %2156 = vmatpush1.msra.mxu0 %v560
    %2157 = vmatprep.subr.mxu0 0.0
    %2158 = vmatpush1.msra.mxu0 %v559
    %2159 = vmatprep.subr.mxu0 0.0
    %2160 = vmatpush1.msra.mxu0 %v558
    %2161 = vmatprep.subr.mxu0 0.0
    %2162 = vmatpush1.msra.mxu0 %v557
    %2163 = vmatprep.subr.mxu0 0.0
    %2164 = vmatpush1.msra.mxu0 %v556
    %2165 = vmatprep.subr.mxu0 0.0
    %2166 = vmatpush1.msra.mxu0 %v555
    %2167 = vmatprep.subr.mxu0 0.0
    %2168 = vmatpush2.msra.mxu0 %v586
    %2169 = vmatprep.subr.mxu0 0.0
    %2170 = vmatpush2.msra.mxu0 %v585
    %2171 = vmatprep.subr.mxu0 0.0
    %2172 = vmatpush2.msra.mxu0 %v584
    %2173 = vmatprep.subr.mxu0 0.0
    %2174 = vmatpush2.msra.mxu0 %v583
    %2175 = vmatprep.subr.mxu0 0.0
    %2176 = vmatpush2.msra.mxu0 %v582
    %2177 = vmatprep.subr.mxu0 0.0
    %2178 = vmatpush2.msra.mxu0 %v581
    %2179 = vmatprep.subr.mxu0 0.0
    %2180 = vmatpush2.msra.mxu0 %v580
    %2181 = vmatprep.subr.mxu0 0.0
    %2182 = vmatpush2.msra.mxu0 %v579
    %2183 = vmatprep.subr.mxu0 0.0
    %2184 = vmatpush2.msra.mxu0 %v578
    %2185 = vmatprep.subr.mxu0 0.0
    %2186 = vmatpush2.msra.mxu0 %v577
    %2187 = vmatprep.subr.mxu0 0.0
    %2188 = vmatpush2.msra.mxu0 %v576
    %2189 = vmatprep.subr.mxu0 0.0
    %2190 = vmatpush2.msra.mxu0 %v575
    %2191 = vmatprep.subr.mxu0 0.0
    %2192 = vmatpush2.msra.mxu0 %v574
    %2193 = vmatprep.subr.mxu0 0.0
    %2194 = vmatpush2.msra.mxu0 %v573
    %2195 = vmatprep.subr.mxu0 0.0
    %2196 = vmatpush2.msra.mxu0 %v572
    %2197 = vmatprep.subr.mxu0 0.0
    %2198 = vmatpush2.msra.mxu0 %v571
    %2199 = vmatprep.mubr.f32.mxu0 %v126
    %2200 = vmatmul.mubr.f32.gmra.mxu0 %v125
    %v2201 = vpop.f32.mrf.mxu0
    %v2202 = vadd.f32 %v2132, %v2201
    %v2203 = vpop.f32.mrf.mxu0
    %2204 = vdwg.mxu0
    %2205 = vmatprep.subr.mxu0 0.0
    %2206 = vmatpush1.msra.mxu0 %v602
    %2207 = vmatprep.subr.mxu0 0.0
    %2208 = vmatpush1.msra.mxu0 %v601
    %2209 = vmatprep.subr.mxu0 0.0
    %2210 = vmatpush1.msra.mxu0 %v600
    %2211 = vmatprep.subr.mxu0 0.0
    %2212 = vmatpush1.msra.mxu0 %v599
    %2213 = vmatprep.subr.mxu0 0.0
    %2214 = vmatpush1.msra.mxu0 %v598
    %2215 = vmatprep.subr.mxu0 0.0
    %2216 = vmatpush1.msra.mxu0 %v597
    %2217 = vmatprep.subr.mxu0 0.0
    %2218 = vmatpush1.msra.mxu0 %v596
    %2219 = vmatprep.subr.mxu0 0.0
    %2220 = vmatpush1.msra.mxu0 %v595
    %2221 = vmatprep.subr.mxu0 0.0
    %2222 = vmatpush1.msra.mxu0 %v594
    %2223 = vmatprep.subr.mxu0 0.0
    %2224 = vmatpush1.msra.mxu0 %v593
    %2225 = vmatprep.subr.mxu0 0.0
    %2226 = vmatpush1.msra.mxu0 %v592
    %2227 = vmatprep.subr.mxu0 0.0
    %2228 = vmatpush1.msra.mxu0 %v591
    %2229 = vmatprep.subr.mxu0 0.0
    %2230 = vmatpush1.msra.mxu0 %v590
    %2231 = vmatprep.subr.mxu0 0.0
    %2232 = vmatpush1.msra.mxu0 %v589
    %2233 = vmatprep.subr.mxu0 0.0
    %2234 = vmatpush1.msra.mxu0 %v588
    %2235 = vmatprep.subr.mxu0 0.0
    %2236 = vmatpush1.msra.mxu0 %v587
    %2237 = vmatprep.subr.mxu0 0.0
    %2238 = vmatpush2.msra.mxu0 %v618
    %2239 = vmatprep.subr.mxu0 0.0
    %2240 = vmatpush2.msra.mxu0 %v617
    %2241 = vmatprep.subr.mxu0 0.0
    %2242 = vmatpush2.msra.mxu0 %v616
    %2243 = vmatprep.subr.mxu0 0.0
    %2244 = vmatpush2.msra.mxu0 %v615
    %2245 = vmatprep.subr.mxu0 0.0
    %2246 = vmatpush2.msra.mxu0 %v614
    %2247 = vmatprep.subr.mxu0 0.0
    %2248 = vmatpush2.msra.mxu0 %v613
    %2249 = vmatprep.subr.mxu0 0.0
    %2250 = vmatpush2.msra.mxu0 %v612
    %2251 = vmatprep.subr.mxu0 0.0
    %2252 = vmatpush2.msra.mxu0 %v611
    %2253 = vmatprep.subr.mxu0 0.0
    %2254 = vmatpush2.msra.mxu0 %v610
    %2255 = vmatprep.subr.mxu0 0.0
    %2256 = vmatpush2.msra.mxu0 %v609
    %2257 = vmatprep.subr.mxu0 0.0
    %2258 = vmatpush2.msra.mxu0 %v608
    %2259 = vmatprep.subr.mxu0 0.0
    %2260 = vmatpush2.msra.mxu0 %v607
    %2261 = vmatprep.subr.mxu0 0.0
    %2262 = vmatpush2.msra.mxu0 %v606
    %2263 = vmatprep.subr.mxu0 0.0
    %2264 = vmatpush2.msra.mxu0 %v605
    %2265 = vmatprep.subr.mxu0 0.0
    %2266 = vmatpush2.msra.mxu0 %v604
    %2267 = vmatprep.subr.mxu0 0.0
    %2268 = vmatpush2.msra.mxu0 %v603
    %2269 = vmatprep.mubr.f32.mxu0 %v128
    %2270 = vmatmul.mubr.f32.gmra.mxu0 %v127
    %v2271 = vpop.f32.mrf.mxu0
    %v2272 = vadd.f32 %v2202, %v2271
    %v2273 = vpop.f32.mrf.mxu0
    %2274 = vdwg.mxu0
    %2275 = vmatprep.subr.mxu0 0.0
    %2276 = vmatpush1.msra.mxu0 %v634
    %2277 = vmatprep.subr.mxu0 0.0
    %2278 = vmatpush1.msra.mxu0 %v633
    %2279 = vmatprep.subr.mxu0 0.0
    %2280 = vmatpush1.msra.mxu0 %v632
    %2281 = vmatprep.subr.mxu0 0.0
    %2282 = vmatpush1.msra.mxu0 %v631
    %2283 = vmatprep.subr.mxu0 0.0
    %2284 = vmatpush1.msra.mxu0 %v630
    %2285 = vmatprep.subr.mxu0 0.0
    %2286 = vmatpush1.msra.mxu0 %v629
    %2287 = vmatprep.subr.mxu0 0.0
    %2288 = vmatpush1.msra.mxu0 %v628
    %2289 = vmatprep.subr.mxu0 0.0
    %2290 = vmatpush1.msra.mxu0 %v627
    %2291 = vmatprep.subr.mxu0 0.0
    %2292 = vmatpush1.msra.mxu0 %v626
    %2293 = vmatprep.subr.mxu0 0.0
    %2294 = vmatpush1.msra.mxu0 %v625
    %2295 = vmatprep.subr.mxu0 0.0
    %2296 = vmatpush1.msra.mxu0 %v624
    %2297 = vmatprep.subr.mxu0 0.0
    %2298 = vmatpush1.msra.mxu0 %v623
    %2299 = vmatprep.subr.mxu0 0.0
    %2300 = vmatpush1.msra.mxu0 %v622
    %2301 = vmatprep.subr.mxu0 0.0
    %2302 = vmatpush1.msra.mxu0 %v621
    %2303 = vmatprep.subr.mxu0 0.0
    %2304 = vmatpush1.msra.mxu0 %v620
    %2305 = vmatprep.subr.mxu0 0.0
    %2306 = vmatpush1.msra.mxu0 %v619
    %2307 = vmatprep.subr.mxu0 0.0
    %2308 = vmatpush2.msra.mxu0 %v650
    %2309 = vmatprep.subr.mxu0 0.0
    %2310 = vmatpush2.msra.mxu0 %v649
    %2311 = vmatprep.subr.mxu0 0.0
    %2312 = vmatpush2.msra.mxu0 %v648
    %2313 = vmatprep.subr.mxu0 0.0
    %2314 = vmatpush2.msra.mxu0 %v647
    %2315 = vmatprep.subr.mxu0 0.0
    %2316 = vmatpush2.msra.mxu0 %v646
    %2317 = vmatprep.subr.mxu0 0.0
    %2318 = vmatpush2.msra.mxu0 %v645
    %2319 = vmatprep.subr.mxu0 0.0
    %2320 = vmatpush2.msra.mxu0 %v644
    %2321 = vmatprep.subr.mxu0 0.0
    %2322 = vmatpush2.msra.mxu0 %v643
    %2323 = vmatprep.subr.mxu0 0.0
    %2324 = vmatpush2.msra.mxu0 %v642
    %2325 = vmatprep.subr.mxu0 0.0
    %2326 = vmatpush2.msra.mxu0 %v641
    %2327 = vmatprep.subr.mxu0 0.0
    %2328 = vmatpush2.msra.mxu0 %v640
    %2329 = vmatprep.subr.mxu0 0.0
    %2330 = vmatpush2.msra.mxu0 %v639
    %2331 = vmatprep.subr.mxu0 0.0
    %2332 = vmatpush2.msra.mxu0 %v638
    %2333 = vmatprep.subr.mxu0 0.0
    %2334 = vmatpush2.msra.mxu0 %v637
    %2335 = vmatprep.subr.mxu0 0.0
    %2336 = vmatpush2.msra.mxu0 %v636
    %2337 = vmatprep.subr.mxu0 0.0
    %2338 = vmatpush2.msra.mxu0 %v635
    %2339 = vmatprep.mubr.f32.mxu0 %v130
    %2340 = vmatmul.mubr.f32.gmra.mxu0 %v129
    %v2341 = vpop.f32.mrf.mxu0
    %v2342 = vadd.f32 %v2272, %v2341
    %v2343 = vpop.f32.mrf.mxu0
    %2344 = vdwg.mxu0
    %2345 = vmatprep.subr.mxu0 0.0
    %2346 = vmatpush1.msra.mxu0 %v666
    %2347 = vmatprep.subr.mxu0 0.0
    %2348 = vmatpush1.msra.mxu0 %v665
    %2349 = vmatprep.subr.mxu0 0.0
    %2350 = vmatpush1.msra.mxu0 %v664
    %2351 = vmatprep.subr.mxu0 0.0
    %2352 = vmatpush1.msra.mxu0 %v663
    %2353 = vmatprep.subr.mxu0 0.0
    %2354 = vmatpush1.msra.mxu0 %v662
    %2355 = vmatprep.subr.mxu0 0.0
    %2356 = vmatpush1.msra.mxu0 %v661
    %2357 = vmatprep.subr.mxu0 0.0
    %2358 = vmatpush1.msra.mxu0 %v660
    %2359 = vmatprep.subr.mxu0 0.0
    %2360 = vmatpush1.msra.mxu0 %v659
    %2361 = vmatprep.subr.mxu0 0.0
    %2362 = vmatpush1.msra.mxu0 %v658
    %2363 = vmatprep.subr.mxu0 0.0
    %2364 = vmatpush1.msra.mxu0 %v657
    %2365 = vmatprep.subr.mxu0 0.0
    %2366 = vmatpush1.msra.mxu0 %v656
    %2367 = vmatprep.subr.mxu0 0.0
    %2368 = vmatpush1.msra.mxu0 %v655
    %2369 = vmatprep.subr.mxu0 0.0
    %2370 = vmatpush1.msra.mxu0 %v654
    %2371 = vmatprep.subr.mxu0 0.0
    %2372 = vmatpush1.msra.mxu0 %v653
    %2373 = vmatprep.subr.mxu0 0.0
    %2374 = vmatpush1.msra.mxu0 %v652
    %2375 = vmatprep.subr.mxu0 0.0
    %2376 = vmatpush1.msra.mxu0 %v651
    %2377 = vmatprep.subr.mxu0 0.0
    %2378 = vmatpush2.msra.mxu0 %v682
    %2379 = vmatprep.subr.mxu0 0.0
    %2380 = vmatpush2.msra.mxu0 %v681
    %2381 = vmatprep.subr.mxu0 0.0
    %2382 = vmatpush2.msra.mxu0 %v680
    %2383 = vmatprep.subr.mxu0 0.0
    %2384 = vmatpush2.msra.mxu0 %v679
    %2385 = vmatprep.subr.mxu0 0.0
    %2386 = vmatpush2.msra.mxu0 %v678
    %2387 = vmatprep.subr.mxu0 0.0
    %2388 = vmatpush2.msra.mxu0 %v677
    %2389 = vmatprep.subr.mxu0 0.0
    %2390 = vmatpush2.msra.mxu0 %v676
    %2391 = vmatprep.subr.mxu0 0.0
    %2392 = vmatpush2.msra.mxu0 %v675
    %2393 = vmatprep.subr.mxu0 0.0
    %2394 = vmatpush2.msra.mxu0 %v674
    %2395 = vmatprep.subr.mxu0 0.0
    %2396 = vmatpush2.msra.mxu0 %v673
    %2397 = vmatprep.subr.mxu0 0.0
    %2398 = vmatpush2.msra.mxu0 %v672
    %2399 = vmatprep.subr.mxu0 0.0
    %2400 = vmatpush2.msra.mxu0 %v671
    %2401 = vmatprep.subr.mxu0 0.0
    %2402 = vmatpush2.msra.mxu0 %v670
    %2403 = vmatprep.subr.mxu0 0.0
    %2404 = vmatpush2.msra.mxu0 %v669
    %2405 = vmatprep.subr.mxu0 0.0
    %2406 = vmatpush2.msra.mxu0 %v668
    %2407 = vmatprep.subr.mxu0 0.0
    %2408 = vmatpush2.msra.mxu0 %v667
    %2409 = vmatprep.mubr.f32.mxu0 %v132
    %2410 = vmatmul.mubr.f32.gmra.mxu0 %v131
    %v2411 = vpop.f32.mrf.mxu0
    %v2412 = vadd.f32 %v2342, %v2411
    %v2413 = vpop.f32.mrf.mxu0
    %2414 = vdwg.mxu0
    %2415 = vmatprep.subr.mxu0 0.0
    %2416 = vmatpush1.msra.mxu0 %v698
    %2417 = vmatprep.subr.mxu0 0.0
    %2418 = vmatpush1.msra.mxu0 %v697
    %2419 = vmatprep.subr.mxu0 0.0
    %2420 = vmatpush1.msra.mxu0 %v696
    %2421 = vmatprep.subr.mxu0 0.0
    %2422 = vmatpush1.msra.mxu0 %v695
    %2423 = vmatprep.subr.mxu0 0.0
    %2424 = vmatpush1.msra.mxu0 %v694
    %2425 = vmatprep.subr.mxu0 0.0
    %2426 = vmatpush1.msra.mxu0 %v693
    %2427 = vmatprep.subr.mxu0 0.0
    %2428 = vmatpush1.msra.mxu0 %v692
    %2429 = vmatprep.subr.mxu0 0.0
    %2430 = vmatpush1.msra.mxu0 %v691
    %2431 = vmatprep.subr.mxu0 0.0
    %2432 = vmatpush1.msra.mxu0 %v690
    %2433 = vmatprep.subr.mxu0 0.0
    %2434 = vmatpush1.msra.mxu0 %v689
    %2435 = vmatprep.subr.mxu0 0.0
    %2436 = vmatpush1.msra.mxu0 %v688
    %2437 = vmatprep.subr.mxu0 0.0
    %2438 = vmatpush1.msra.mxu0 %v687
    %2439 = vmatprep.subr.mxu0 0.0
    %2440 = vmatpush1.msra.mxu0 %v686
    %2441 = vmatprep.subr.mxu0 0.0
    %2442 = vmatpush1.msra.mxu0 %v685
    %2443 = vmatprep.subr.mxu0 0.0
    %2444 = vmatpush1.msra.mxu0 %v684
    %2445 = vmatprep.subr.mxu0 0.0
    %2446 = vmatpush1.msra.mxu0 %v683
    %2447 = vmatprep.subr.mxu0 0.0
    %2448 = vmatpush2.msra.mxu0 %v714
    %2449 = vmatprep.subr.mxu0 0.0
    %2450 = vmatpush2.msra.mxu0 %v713
    %2451 = vmatprep.subr.mxu0 0.0
    %2452 = vmatpush2.msra.mxu0 %v712
    %2453 = vmatprep.subr.mxu0 0.0
    %2454 = vmatpush2.msra.mxu0 %v711
    %2455 = vmatprep.subr.mxu0 0.0
    %2456 = vmatpush2.msra.mxu0 %v710
    %2457 = vmatprep.subr.mxu0 0.0
    %2458 = vmatpush2.msra.mxu0 %v709
    %2459 = vmatprep.subr.mxu0 0.0
    %2460 = vmatpush2.msra.mxu0 %v708
    %2461 = vmatprep.subr.mxu0 0.0
    %2462 = vmatpush2.msra.mxu0 %v707
    %2463 = vmatprep.subr.mxu0 0.0
    %2464 = vmatpush2.msra.mxu0 %v706
    %2465 = vmatprep.subr.mxu0 0.0
    %2466 = vmatpush2.msra.mxu0 %v705
    %2467 = vmatprep.subr.mxu0 0.0
    %2468 = vmatpush2.msra.mxu0 %v704
    %2469 = vmatprep.subr.mxu0 0.0
    %2470 = vmatpush2.msra.mxu0 %v703
    %2471 = vmatprep.subr.mxu0 0.0
    %2472 = vmatpush2.msra.mxu0 %v702
    %2473 = vmatprep.subr.mxu0 0.0
    %2474 = vmatpush2.msra.mxu0 %v701
    %2475 = vmatprep.subr.mxu0 0.0
    %2476 = vmatpush2.msra.mxu0 %v700
    %2477 = vmatprep.subr.mxu0 0.0
    %2478 = vmatpush2.msra.mxu0 %v699
    %2479 = vmatprep.mubr.f32.mxu0 %v134
    %2480 = vmatmul.mubr.f32.gmra.mxu0 %v133
    %v2481 = vpop.f32.mrf.mxu0
    %v2482 = vadd.f32 %v2412, %v2481
    %v2483 = vpop.f32.mrf.mxu0
    %2484 = vdwg.mxu0
    %2485 = vmatprep.subr.mxu0 0.0
    %2486 = vmatpush1.msra.mxu0 %v730
    %2487 = vmatprep.subr.mxu0 0.0
    %2488 = vmatpush1.msra.mxu0 %v729
    %2489 = vmatprep.subr.mxu0 0.0
    %2490 = vmatpush1.msra.mxu0 %v728
    %2491 = vmatprep.subr.mxu0 0.0
    %2492 = vmatpush1.msra.mxu0 %v727
    %2493 = vmatprep.subr.mxu0 0.0
    %2494 = vmatpush1.msra.mxu0 %v726
    %2495 = vmatprep.subr.mxu0 0.0
    %2496 = vmatpush1.msra.mxu0 %v725
    %2497 = vmatprep.subr.mxu0 0.0
    %2498 = vmatpush1.msra.mxu0 %v724
    %2499 = vmatprep.subr.mxu0 0.0
    %2500 = vmatpush1.msra.mxu0 %v723
    %2501 = vmatprep.subr.mxu0 0.0
    %2502 = vmatpush1.msra.mxu0 %v722
    %2503 = vmatprep.subr.mxu0 0.0
    %2504 = vmatpush1.msra.mxu0 %v721
    %2505 = vmatprep.subr.mxu0 0.0
    %2506 = vmatpush1.msra.mxu0 %v720
    %2507 = vmatprep.subr.mxu0 0.0
    %2508 = vmatpush1.msra.mxu0 %v719
    %2509 = vmatprep.subr.mxu0 0.0
    %2510 = vmatpush1.msra.mxu0 %v718
    %2511 = vmatprep.subr.mxu0 0.0
    %2512 = vmatpush1.msra.mxu0 %v717
    %2513 = vmatprep.subr.mxu0 0.0
    %2514 = vmatpush1.msra.mxu0 %v716
    %2515 = vmatprep.subr.mxu0 0.0
    %2516 = vmatpush1.msra.mxu0 %v715
    %2517 = vmatprep.subr.mxu0 0.0
    %2518 = vmatpush2.msra.mxu0 %v746
    %2519 = vmatprep.subr.mxu0 0.0
    %2520 = vmatpush2.msra.mxu0 %v745
    %2521 = vmatprep.subr.mxu0 0.0
    %2522 = vmatpush2.msra.mxu0 %v744
    %2523 = vmatprep.subr.mxu0 0.0
    %2524 = vmatpush2.msra.mxu0 %v743
    %2525 = vmatprep.subr.mxu0 0.0
    %2526 = vmatpush2.msra.mxu0 %v742
    %2527 = vmatprep.subr.mxu0 0.0
    %2528 = vmatpush2.msra.mxu0 %v741
    %2529 = vmatprep.subr.mxu0 0.0
    %2530 = vmatpush2.msra.mxu0 %v740
    %2531 = vmatprep.subr.mxu0 0.0
    %2532 = vmatpush2.msra.mxu0 %v739
    %2533 = vmatprep.subr.mxu0 0.0
    %2534 = vmatpush2.msra.mxu0 %v738
    %2535 = vmatprep.subr.mxu0 0.0
    %2536 = vmatpush2.msra.mxu0 %v737
    %2537 = vmatprep.subr.mxu0 0.0
    %2538 = vmatpush2.msra.mxu0 %v736
    %2539 = vmatprep.subr.mxu0 0.0
    %2540 = vmatpush2.msra.mxu0 %v735
    %2541 = vmatprep.subr.mxu0 0.0
    %2542 = vmatpush2.msra.mxu0 %v734
    %2543 = vmatprep.subr.mxu0 0.0
    %2544 = vmatpush2.msra.mxu0 %v733
    %2545 = vmatprep.subr.mxu0 0.0
    %2546 = vmatpush2.msra.mxu0 %v732
    %2547 = vmatprep.subr.mxu0 0.0
    %2548 = vmatpush2.msra.mxu0 %v731
    %2549 = vmatprep.mubr.f32.mxu0 %v136
    %2550 = vmatmul.mubr.f32.gmra.mxu0 %v135
    %v2551 = vpop.f32.mrf.mxu0
    %v2552 = vadd.f32 %v2482, %v2551
    %v2553 = vpop.f32.mrf.mxu0
    %2554 = vdwg.mxu0
    %2555 = vmatprep.subr.mxu0 0.0
    %2556 = vmatpush1.msra.mxu0 %v762
    %2557 = vmatprep.subr.mxu0 0.0
    %2558 = vmatpush1.msra.mxu0 %v761
    %2559 = vmatprep.subr.mxu0 0.0
    %2560 = vmatpush1.msra.mxu0 %v760
    %2561 = vmatprep.subr.mxu0 0.0
    %2562 = vmatpush1.msra.mxu0 %v759
    %2563 = vmatprep.subr.mxu0 0.0
    %2564 = vmatpush1.msra.mxu0 %v758
    %2565 = vmatprep.subr.mxu0 0.0
    %2566 = vmatpush1.msra.mxu0 %v757
    %2567 = vmatprep.subr.mxu0 0.0
    %2568 = vmatpush1.msra.mxu0 %v756
    %2569 = vmatprep.subr.mxu0 0.0
    %2570 = vmatpush1.msra.mxu0 %v755
    %2571 = vmatprep.subr.mxu0 0.0
    %2572 = vmatpush1.msra.mxu0 %v754
    %2573 = vmatprep.subr.mxu0 0.0
    %2574 = vmatpush1.msra.mxu0 %v753
    %2575 = vmatprep.subr.mxu0 0.0
    %2576 = vmatpush1.msra.mxu0 %v752
    %2577 = vmatprep.subr.mxu0 0.0
    %2578 = vmatpush1.msra.mxu0 %v751
    %2579 = vmatprep.subr.mxu0 0.0
    %2580 = vmatpush1.msra.mxu0 %v750
    %2581 = vmatprep.subr.mxu0 0.0
    %2582 = vmatpush1.msra.mxu0 %v749
    %2583 = vmatprep.subr.mxu0 0.0
    %2584 = vmatpush1.msra.mxu0 %v748
    %2585 = vmatprep.subr.mxu0 0.0
    %2586 = vmatpush1.msra.mxu0 %v747
    %2587 = vmatprep.subr.mxu0 0.0
    %2588 = vmatpush2.msra.mxu0 %v778
    %2589 = vmatprep.subr.mxu0 0.0
    %2590 = vmatpush2.msra.mxu0 %v777
    %2591 = vmatprep.subr.mxu0 0.0
    %2592 = vmatpush2.msra.mxu0 %v776
    %2593 = vmatprep.subr.mxu0 0.0
    %2594 = vmatpush2.msra.mxu0 %v775
    %2595 = vmatprep.subr.mxu0 0.0
    %2596 = vmatpush2.msra.mxu0 %v774
    %2597 = vmatprep.subr.mxu0 0.0
    %2598 = vmatpush2.msra.mxu0 %v773
    %2599 = vmatprep.subr.mxu0 0.0
    %2600 = vmatpush2.msra.mxu0 %v772
    %2601 = vmatprep.subr.mxu0 0.0
    %2602 = vmatpush2.msra.mxu0 %v771
    %2603 = vmatprep.subr.mxu0 0.0
    %2604 = vmatpush2.msra.mxu0 %v770
    %2605 = vmatprep.subr.mxu0 0.0
    %2606 = vmatpush2.msra.mxu0 %v769
    %2607 = vmatprep.subr.mxu0 0.0
    %2608 = vmatpush2.msra.mxu0 %v768
    %2609 = vmatprep.subr.mxu0 0.0
    %2610 = vmatpush2.msra.mxu0 %v767
    %2611 = vmatprep.subr.mxu0 0.0
    %2612 = vmatpush2.msra.mxu0 %v766
    %2613 = vmatprep.subr.mxu0 0.0
    %2614 = vmatpush2.msra.mxu0 %v765
    %2615 = vmatprep.subr.mxu0 0.0
    %2616 = vmatpush2.msra.mxu0 %v764
    %2617 = vmatprep.subr.mxu0 0.0
    %2618 = vmatpush2.msra.mxu0 %v763
    %2619 = vmatprep.mubr.f32.mxu0 %v138
    %2620 = vmatmul.mubr.f32.gmra.mxu0 %v137
    %v2621 = vpop.f32.mrf.mxu0
    %v2622 = vadd.f32 %v2552, %v2621
    %v2623 = vpop.f32.mrf.mxu0
    %2624 = vdwg.mxu0
    %2625 = vmatprep.subr.mxu0 0.0
    %2626 = vmatpush1.msra.mxu0 %v794
    %2627 = vmatprep.subr.mxu0 0.0
    %2628 = vmatpush1.msra.mxu0 %v793
    %2629 = vmatprep.subr.mxu0 0.0
    %2630 = vmatpush1.msra.mxu0 %v792
    %2631 = vmatprep.subr.mxu0 0.0
    %2632 = vmatpush1.msra.mxu0 %v791
    %2633 = vmatprep.subr.mxu0 0.0
    %2634 = vmatpush1.msra.mxu0 %v790
    %2635 = vmatprep.subr.mxu0 0.0
    %2636 = vmatpush1.msra.mxu0 %v789
    %2637 = vmatprep.subr.mxu0 0.0
    %2638 = vmatpush1.msra.mxu0 %v788
    %2639 = vmatprep.subr.mxu0 0.0
    %2640 = vmatpush1.msra.mxu0 %v787
    %2641 = vmatprep.subr.mxu0 0.0
    %2642 = vmatpush1.msra.mxu0 %v786
    %2643 = vmatprep.subr.mxu0 0.0
    %2644 = vmatpush1.msra.mxu0 %v785
    %2645 = vmatprep.subr.mxu0 0.0
    %2646 = vmatpush1.msra.mxu0 %v784
    %2647 = vmatprep.subr.mxu0 0.0
    %2648 = vmatpush1.msra.mxu0 %v783
    %2649 = vmatprep.subr.mxu0 0.0
    %2650 = vmatpush1.msra.mxu0 %v782
    %2651 = vmatprep.subr.mxu0 0.0
    %2652 = vmatpush1.msra.mxu0 %v781
    %2653 = vmatprep.subr.mxu0 0.0
    %2654 = vmatpush1.msra.mxu0 %v780
    %2655 = vmatprep.subr.mxu0 0.0
    %2656 = vmatpush1.msra.mxu0 %v779
    %2657 = vmatprep.subr.mxu0 0.0
    %2658 = vmatpush2.msra.mxu0 %v810
    %2659 = vmatprep.subr.mxu0 0.0
    %2660 = vmatpush2.msra.mxu0 %v809
    %2661 = vmatprep.subr.mxu0 0.0
    %2662 = vmatpush2.msra.mxu0 %v808
    %2663 = vmatprep.subr.mxu0 0.0
    %2664 = vmatpush2.msra.mxu0 %v807
    %2665 = vmatprep.subr.mxu0 0.0
    %2666 = vmatpush2.msra.mxu0 %v806
    %2667 = vmatprep.subr.mxu0 0.0
    %2668 = vmatpush2.msra.mxu0 %v805
    %2669 = vmatprep.subr.mxu0 0.0
    %2670 = vmatpush2.msra.mxu0 %v804
    %2671 = vmatprep.subr.mxu0 0.0
    %2672 = vmatpush2.msra.mxu0 %v803
    %2673 = vmatprep.subr.mxu0 0.0
    %2674 = vmatpush2.msra.mxu0 %v802
    %2675 = vmatprep.subr.mxu0 0.0
    %2676 = vmatpush2.msra.mxu0 %v801
    %2677 = vmatprep.subr.mxu0 0.0
    %2678 = vmatpush2.msra.mxu0 %v800
    %2679 = vmatprep.subr.mxu0 0.0
    %2680 = vmatpush2.msra.mxu0 %v799
    %2681 = vmatprep.subr.mxu0 0.0
    %2682 = vmatpush2.msra.mxu0 %v798
    %2683 = vmatprep.subr.mxu0 0.0
    %2684 = vmatpush2.msra.mxu0 %v797
    %2685 = vmatprep.subr.mxu0 0.0
    %2686 = vmatpush2.msra.mxu0 %v796
    %2687 = vmatprep.subr.mxu0 0.0
    %2688 = vmatpush2.msra.mxu0 %v795
    %2689 = vmatprep.mubr.f32.mxu0 %v140
    %2690 = vmatmul.mubr.f32.gmra.mxu0 %v139
    %v2691 = vpop.f32.mrf.mxu0
    %v2692 = vadd.f32 %v2622, %v2691
    %v2693 = vpop.f32.mrf.mxu0
    %2694 = vdwg.mxu0
    %2695 = vmatprep.subr.mxu0 0.0
    %2696 = vmatpush1.msra.mxu0 %v826
    %2697 = vmatprep.subr.mxu0 0.0
    %2698 = vmatpush1.msra.mxu0 %v825
    %2699 = vmatprep.subr.mxu0 0.0
    %2700 = vmatpush1.msra.mxu0 %v824
    %2701 = vmatprep.subr.mxu0 0.0
    %2702 = vmatpush1.msra.mxu0 %v823
    %2703 = vmatprep.subr.mxu0 0.0
    %2704 = vmatpush1.msra.mxu0 %v822
    %2705 = vmatprep.subr.mxu0 0.0
    %2706 = vmatpush1.msra.mxu0 %v821
    %2707 = vmatprep.subr.mxu0 0.0
    %2708 = vmatpush1.msra.mxu0 %v820
    %2709 = vmatprep.subr.mxu0 0.0
    %2710 = vmatpush1.msra.mxu0 %v819
    %2711 = vmatprep.subr.mxu0 0.0
    %2712 = vmatpush1.msra.mxu0 %v818
    %2713 = vmatprep.subr.mxu0 0.0
    %2714 = vmatpush1.msra.mxu0 %v817
    %2715 = vmatprep.subr.mxu0 0.0
    %2716 = vmatpush1.msra.mxu0 %v816
    %2717 = vmatprep.subr.mxu0 0.0
    %2718 = vmatpush1.msra.mxu0 %v815
    %2719 = vmatprep.subr.mxu0 0.0
    %2720 = vmatpush1.msra.mxu0 %v814
    %2721 = vmatprep.subr.mxu0 0.0
    %2722 = vmatpush1.msra.mxu0 %v813
    %2723 = vmatprep.subr.mxu0 0.0
    %2724 = vmatpush1.msra.mxu0 %v812
    %2725 = vmatprep.subr.mxu0 0.0
    %2726 = vmatpush1.msra.mxu0 %v811
    %2727 = vmatprep.subr.mxu0 0.0
    %2728 = vmatpush2.msra.mxu0 %v842
    %2729 = vmatprep.subr.mxu0 0.0
    %2730 = vmatpush2.msra.mxu0 %v841
    %2731 = vmatprep.subr.mxu0 0.0
    %2732 = vmatpush2.msra.mxu0 %v840
    %2733 = vmatprep.subr.mxu0 0.0
    %2734 = vmatpush2.msra.mxu0 %v839
    %2735 = vmatprep.subr.mxu0 0.0
    %2736 = vmatpush2.msra.mxu0 %v838
    %2737 = vmatprep.subr.mxu0 0.0
    %2738 = vmatpush2.msra.mxu0 %v837
    %2739 = vmatprep.subr.mxu0 0.0
    %2740 = vmatpush2.msra.mxu0 %v836
    %2741 = vmatprep.subr.mxu0 0.0
    %2742 = vmatpush2.msra.mxu0 %v835
    %2743 = vmatprep.subr.mxu0 0.0
    %2744 = vmatpush2.msra.mxu0 %v834
    %2745 = vmatprep.subr.mxu0 0.0
    %2746 = vmatpush2.msra.mxu0 %v833
    %2747 = vmatprep.subr.mxu0 0.0
    %2748 = vmatpush2.msra.mxu0 %v832
    %2749 = vmatprep.subr.mxu0 0.0
    %2750 = vmatpush2.msra.mxu0 %v831
    %2751 = vmatprep.subr.mxu0 0.0
    %2752 = vmatpush2.msra.mxu0 %v830
    %2753 = vmatprep.subr.mxu0 0.0
    %2754 = vmatpush2.msra.mxu0 %v829
    %2755 = vmatprep.subr.mxu0 0.0
    %2756 = vmatpush2.msra.mxu0 %v828
    %2757 = vmatprep.subr.mxu0 0.0
    %2758 = vmatpush2.msra.mxu0 %v827
    %2759 = vmatprep.mubr.f32.mxu0 %v142
    %2760 = vmatmul.mubr.f32.gmra.mxu0 %v141
    %v2761 = vpop.f32.mrf.mxu0
    %v2762 = vadd.f32 %v2692, %v2761
    %v2763 = vpop.f32.mrf.mxu0
    %2764 = vdwg.mxu0
    %2765 = vmatprep.subr.mxu0 0.0
    %2766 = vmatpush1.msra.mxu0 %v858
    %2767 = vmatprep.subr.mxu0 0.0
    %2768 = vmatpush1.msra.mxu0 %v857
    %2769 = vmatprep.subr.mxu0 0.0
    %2770 = vmatpush1.msra.mxu0 %v856
    %2771 = vmatprep.subr.mxu0 0.0
    %2772 = vmatpush1.msra.mxu0 %v855
    %2773 = vmatprep.subr.mxu0 0.0
    %2774 = vmatpush1.msra.mxu0 %v854
    %2775 = vmatprep.subr.mxu0 0.0
    %2776 = vmatpush1.msra.mxu0 %v853
    %2777 = vmatprep.subr.mxu0 0.0
    %2778 = vmatpush1.msra.mxu0 %v852
    %2779 = vmatprep.subr.mxu0 0.0
    %2780 = vmatpush1.msra.mxu0 %v851
    %2781 = vmatprep.subr.mxu0 0.0
    %2782 = vmatpush1.msra.mxu0 %v850
    %2783 = vmatprep.subr.mxu0 0.0
    %2784 = vmatpush1.msra.mxu0 %v849
    %2785 = vmatprep.subr.mxu0 0.0
    %2786 = vmatpush1.msra.mxu0 %v848
    %2787 = vmatprep.subr.mxu0 0.0
    %2788 = vmatpush1.msra.mxu0 %v847
    %2789 = vmatprep.subr.mxu0 0.0
    %2790 = vmatpush1.msra.mxu0 %v846
    %2791 = vmatprep.subr.mxu0 0.0
    %2792 = vmatpush1.msra.mxu0 %v845
    %2793 = vmatprep.subr.mxu0 0.0
    %2794 = vmatpush1.msra.mxu0 %v844
    %2795 = vmatprep.subr.mxu0 0.0
    %2796 = vmatpush1.msra.mxu0 %v843
    %2797 = vmatprep.subr.mxu0 0.0
    %2798 = vmatpush2.msra.mxu0 %v874
    %2799 = vmatprep.subr.mxu0 0.0
    %2800 = vmatpush2.msra.mxu0 %v873
    %2801 = vmatprep.subr.mxu0 0.0
    %2802 = vmatpush2.msra.mxu0 %v872
    %2803 = vmatprep.subr.mxu0 0.0
    %2804 = vmatpush2.msra.mxu0 %v871
    %2805 = vmatprep.subr.mxu0 0.0
    %2806 = vmatpush2.msra.mxu0 %v870
    %2807 = vmatprep.subr.mxu0 0.0
    %2808 = vmatpush2.msra.mxu0 %v869
    %2809 = vmatprep.subr.mxu0 0.0
    %2810 = vmatpush2.msra.mxu0 %v868
    %2811 = vmatprep.subr.mxu0 0.0
    %2812 = vmatpush2.msra.mxu0 %v867
    %2813 = vmatprep.subr.mxu0 0.0
    %2814 = vmatpush2.msra.mxu0 %v866
    %2815 = vmatprep.subr.mxu0 0.0
    %2816 = vmatpush2.msra.mxu0 %v865
    %2817 = vmatprep.subr.mxu0 0.0
    %2818 = vmatpush2.msra.mxu0 %v864
    %2819 = vmatprep.subr.mxu0 0.0
    %2820 = vmatpush2.msra.mxu0 %v863
    %2821 = vmatprep.subr.mxu0 0.0
    %2822 = vmatpush2.msra.mxu0 %v862
    %2823 = vmatprep.subr.mxu0 0.0
    %2824 = vmatpush2.msra.mxu0 %v861
    %2825 = vmatprep.subr.mxu0 0.0
    %2826 = vmatpush2.msra.mxu0 %v860
    %2827 = vmatprep.subr.mxu0 0.0
    %2828 = vmatpush2.msra.mxu0 %v859
    %2829 = vmatprep.mubr.f32.mxu0 %v144
    %2830 = vmatmul.mubr.f32.gmra.mxu0 %v143
    %v2831 = vpop.f32.mrf.mxu0
    %v2832 = vadd.f32 %v2762, %v2831
    %v2833 = vpop.f32.mrf.mxu0
    %2834 = vdwg.mxu0
    %2835 = vmatprep.subr.mxu0 0.0
    %2836 = vmatpush1.msra.mxu0 %v890
    %2837 = vmatprep.subr.mxu0 0.0
    %2838 = vmatpush1.msra.mxu0 %v889
    %2839 = vmatprep.subr.mxu0 0.0
    %2840 = vmatpush1.msra.mxu0 %v888
    %2841 = vmatprep.subr.mxu0 0.0
    %2842 = vmatpush1.msra.mxu0 %v887
    %2843 = vmatprep.subr.mxu0 0.0
    %2844 = vmatpush1.msra.mxu0 %v886
    %2845 = vmatprep.subr.mxu0 0.0
    %2846 = vmatpush1.msra.mxu0 %v885
    %2847 = vmatprep.subr.mxu0 0.0
    %2848 = vmatpush1.msra.mxu0 %v884
    %2849 = vmatprep.subr.mxu0 0.0
    %2850 = vmatpush1.msra.mxu0 %v883
    %2851 = vmatprep.subr.mxu0 0.0
    %2852 = vmatpush1.msra.mxu0 %v882
    %2853 = vmatprep.subr.mxu0 0.0
    %2854 = vmatpush1.msra.mxu0 %v881
    %2855 = vmatprep.subr.mxu0 0.0
    %2856 = vmatpush1.msra.mxu0 %v880
    %2857 = vmatprep.subr.mxu0 0.0
    %2858 = vmatpush1.msra.mxu0 %v879
    %2859 = vmatprep.subr.mxu0 0.0
    %2860 = vmatpush1.msra.mxu0 %v878
    %2861 = vmatprep.subr.mxu0 0.0
    %2862 = vmatpush1.msra.mxu0 %v877
    %2863 = vmatprep.subr.mxu0 0.0
    %2864 = vmatpush1.msra.mxu0 %v876
    %2865 = vmatprep.subr.mxu0 0.0
    %2866 = vmatpush1.msra.mxu0 %v875
    %2867 = vmatprep.subr.mxu0 0.0
    %2868 = vmatpush2.msra.mxu0 %v906
    %2869 = vmatprep.subr.mxu0 0.0
    %2870 = vmatpush2.msra.mxu0 %v905
    %2871 = vmatprep.subr.mxu0 0.0
    %2872 = vmatpush2.msra.mxu0 %v904
    %2873 = vmatprep.subr.mxu0 0.0
    %2874 = vmatpush2.msra.mxu0 %v903
    %2875 = vmatprep.subr.mxu0 0.0
    %2876 = vmatpush2.msra.mxu0 %v902
    %2877 = vmatprep.subr.mxu0 0.0
    %2878 = vmatpush2.msra.mxu0 %v901
    %2879 = vmatprep.subr.mxu0 0.0
    %2880 = vmatpush2.msra.mxu0 %v900
    %2881 = vmatprep.subr.mxu0 0.0
    %2882 = vmatpush2.msra.mxu0 %v899
    %2883 = vmatprep.subr.mxu0 0.0
    %2884 = vmatpush2.msra.mxu0 %v898
    %2885 = vmatprep.subr.mxu0 0.0
    %2886 = vmatpush2.msra.mxu0 %v897
    %2887 = vmatprep.subr.mxu0 0.0
    %2888 = vmatpush2.msra.mxu0 %v896
    %2889 = vmatprep.subr.mxu0 0.0
    %2890 = vmatpush2.msra.mxu0 %v895
    %2891 = vmatprep.subr.mxu0 0.0
    %2892 = vmatpush2.msra.mxu0 %v894
    %2893 = vmatprep.subr.mxu0 0.0
    %2894 = vmatpush2.msra.mxu0 %v893
    %2895 = vmatprep.subr.mxu0 0.0
    %2896 = vmatpush2.msra.mxu0 %v892
    %2897 = vmatprep.subr.mxu0 0.0
    %2898 = vmatpush2.msra.mxu0 %v891
    %2899 = vmatprep.mubr.f32.mxu0 %v146
    %2900 = vmatmul.mubr.f32.gmra.mxu0 %v145
    %v2901 = vpop.f32.mrf.mxu0
    %v2902 = vadd.f32 %v2832, %v2901
    %v2903 = vpop.f32.mrf.mxu0
    %2904 = vdwg.mxu0
    %2905 = vmatprep.subr.mxu0 0.0
    %2906 = vmatpush1.msra.mxu0 %v922
    %2907 = vmatprep.subr.mxu0 0.0
    %2908 = vmatpush1.msra.mxu0 %v921
    %2909 = vmatprep.subr.mxu0 0.0
    %2910 = vmatpush1.msra.mxu0 %v920
    %2911 = vmatprep.subr.mxu0 0.0
    %2912 = vmatpush1.msra.mxu0 %v919
    %2913 = vmatprep.subr.mxu0 0.0
    %2914 = vmatpush1.msra.mxu0 %v918
    %2915 = vmatprep.subr.mxu0 0.0
    %2916 = vmatpush1.msra.mxu0 %v917
    %2917 = vmatprep.subr.mxu0 0.0
    %2918 = vmatpush1.msra.mxu0 %v916
    %2919 = vmatprep.subr.mxu0 0.0
    %2920 = vmatpush1.msra.mxu0 %v915
    %2921 = vmatprep.subr.mxu0 0.0
    %2922 = vmatpush1.msra.mxu0 %v914
    %2923 = vmatprep.subr.mxu0 0.0
    %2924 = vmatpush1.msra.mxu0 %v913
    %2925 = vmatprep.subr.mxu0 0.0
    %2926 = vmatpush1.msra.mxu0 %v912
    %2927 = vmatprep.subr.mxu0 0.0
    %2928 = vmatpush1.msra.mxu0 %v911
    %2929 = vmatprep.subr.mxu0 0.0
    %2930 = vmatpush1.msra.mxu0 %v910
    %2931 = vmatprep.subr.mxu0 0.0
    %2932 = vmatpush1.msra.mxu0 %v909
    %2933 = vmatprep.subr.mxu0 0.0
    %2934 = vmatpush1.msra.mxu0 %v908
    %2935 = vmatprep.subr.mxu0 0.0
    %2936 = vmatpush1.msra.mxu0 %v907
    %2937 = vmatprep.subr.mxu0 0.0
    %2938 = vmatpush2.msra.mxu0 %v938
    %2939 = vmatprep.subr.mxu0 0.0
    %2940 = vmatpush2.msra.mxu0 %v937
    %2941 = vmatprep.subr.mxu0 0.0
    %2942 = vmatpush2.msra.mxu0 %v936
    %2943 = vmatprep.subr.mxu0 0.0
    %2944 = vmatpush2.msra.mxu0 %v935
    %2945 = vmatprep.subr.mxu0 0.0
    %2946 = vmatpush2.msra.mxu0 %v934
    %2947 = vmatprep.subr.mxu0 0.0
    %2948 = vmatpush2.msra.mxu0 %v933
    %2949 = vmatprep.subr.mxu0 0.0
    %2950 = vmatpush2.msra.mxu0 %v932
    %2951 = vmatprep.subr.mxu0 0.0
    %2952 = vmatpush2.msra.mxu0 %v931
    %2953 = vmatprep.subr.mxu0 0.0
    %2954 = vmatpush2.msra.mxu0 %v930
    %2955 = vmatprep.subr.mxu0 0.0
    %2956 = vmatpush2.msra.mxu0 %v929
    %2957 = vmatprep.subr.mxu0 0.0
    %2958 = vmatpush2.msra.mxu0 %v928
    %2959 = vmatprep.subr.mxu0 0.0
    %2960 = vmatpush2.msra.mxu0 %v927
    %2961 = vmatprep.subr.mxu0 0.0
    %2962 = vmatpush2.msra.mxu0 %v926
    %2963 = vmatprep.subr.mxu0 0.0
    %2964 = vmatpush2.msra.mxu0 %v925
    %2965 = vmatprep.subr.mxu0 0.0
    %2966 = vmatpush2.msra.mxu0 %v924
    %2967 = vmatprep.subr.mxu0 0.0
    %2968 = vmatpush2.msra.mxu0 %v923
    %2969 = vmatprep.mubr.f32.mxu0 %v148
    %2970 = vmatmul.mubr.f32.gmra.mxu0 %v147
    %v2971 = vpop.f32.mrf.mxu0
    %v2972 = vadd.f32 %v2902, %v2971
    %v2973 = vpop.f32.mrf.mxu0
    %2974 = vdwg.mxu0
    %2975 = vmatprep.subr.mxu0 0.0
    %2976 = vmatpush1.msra.mxu0 %v954
    %2977 = vmatprep.subr.mxu0 0.0
    %2978 = vmatpush1.msra.mxu0 %v953
    %2979 = vmatprep.subr.mxu0 0.0
    %2980 = vmatpush1.msra.mxu0 %v952
    %2981 = vmatprep.subr.mxu0 0.0
    %2982 = vmatpush1.msra.mxu0 %v951
    %2983 = vmatprep.subr.mxu0 0.0
    %2984 = vmatpush1.msra.mxu0 %v950
    %2985 = vmatprep.subr.mxu0 0.0
    %2986 = vmatpush1.msra.mxu0 %v949
    %2987 = vmatprep.subr.mxu0 0.0
    %2988 = vmatpush1.msra.mxu0 %v948
    %2989 = vmatprep.subr.mxu0 0.0
    %2990 = vmatpush1.msra.mxu0 %v947
    %2991 = vmatprep.subr.mxu0 0.0
    %2992 = vmatpush1.msra.mxu0 %v946
    %2993 = vmatprep.subr.mxu0 0.0
    %2994 = vmatpush1.msra.mxu0 %v945
    %2995 = vmatprep.subr.mxu0 0.0
    %2996 = vmatpush1.msra.mxu0 %v944
    %2997 = vmatprep.subr.mxu0 0.0
    %2998 = vmatpush1.msra.mxu0 %v943
    %2999 = vmatprep.subr.mxu0 0.0
    %3000 = vmatpush1.msra.mxu0 %v942
    %3001 = vmatprep.subr.mxu0 0.0
    %3002 = vmatpush1.msra.mxu0 %v941
    %3003 = vmatprep.subr.mxu0 0.0
    %3004 = vmatpush1.msra.mxu0 %v940
    %3005 = vmatprep.subr.mxu0 0.0
    %3006 = vmatpush1.msra.mxu0 %v939
    %3007 = vmatprep.subr.mxu0 0.0
    %3008 = vmatpush2.msra.mxu0 %v970
    %3009 = vmatprep.subr.mxu0 0.0
    %3010 = vmatpush2.msra.mxu0 %v969
    %3011 = vmatprep.subr.mxu0 0.0
    %3012 = vmatpush2.msra.mxu0 %v968
    %3013 = vmatprep.subr.mxu0 0.0
    %3014 = vmatpush2.msra.mxu0 %v967
    %3015 = vmatprep.subr.mxu0 0.0
    %3016 = vmatpush2.msra.mxu0 %v966
    %3017 = vmatprep.subr.mxu0 0.0
    %3018 = vmatpush2.msra.mxu0 %v965
    %3019 = vmatprep.subr.mxu0 0.0
    %3020 = vmatpush2.msra.mxu0 %v964
    %3021 = vmatprep.subr.mxu0 0.0
    %3022 = vmatpush2.msra.mxu0 %v963
    %3023 = vmatprep.subr.mxu0 0.0
    %3024 = vmatpush2.msra.mxu0 %v962
    %3025 = vmatprep.subr.mxu0 0.0
    %3026 = vmatpush2.msra.mxu0 %v961
    %3027 = vmatprep.subr.mxu0 0.0
    %3028 = vmatpush2.msra.mxu0 %v960
    %3029 = vmatprep.subr.mxu0 0.0
    %3030 = vmatpush2.msra.mxu0 %v959
    %3031 = vmatprep.subr.mxu0 0.0
    %3032 = vmatpush2.msra.mxu0 %v958
    %3033 = vmatprep.subr.mxu0 0.0
    %3034 = vmatpush2.msra.mxu0 %v957
    %3035 = vmatprep.subr.mxu0 0.0
    %3036 = vmatpush2.msra.mxu0 %v956
    %3037 = vmatprep.subr.mxu0 0.0
    %3038 = vmatpush2.msra.mxu0 %v955
    %3039 = vmatprep.mubr.f32.mxu0 %v150
    %3040 = vmatmul.mubr.f32.gmra.mxu0 %v149
    %v3041 = vpop.f32.mrf.mxu0
    %v3042 = vadd.f32 %v2972, %v3041
    %v3043 = vpop.f32.mrf.mxu0
    %3044 = vdwg.mxu0
    %3045 = vmatprep.subr.mxu0 0.0
    %3046 = vmatpush1.msra.mxu0 %v986
    %3047 = vmatprep.subr.mxu0 0.0
    %3048 = vmatpush1.msra.mxu0 %v985
    %3049 = vmatprep.subr.mxu0 0.0
    %3050 = vmatpush1.msra.mxu0 %v984
    %3051 = vmatprep.subr.mxu0 0.0
    %3052 = vmatpush1.msra.mxu0 %v983
    %3053 = vmatprep.subr.mxu0 0.0
    %3054 = vmatpush1.msra.mxu0 %v982
    %3055 = vmatprep.subr.mxu0 0.0
    %3056 = vmatpush1.msra.mxu0 %v981
    %3057 = vmatprep.subr.mxu0 0.0
    %3058 = vmatpush1.msra.mxu0 %v980
    %3059 = vmatprep.subr.mxu0 0.0
    %3060 = vmatpush1.msra.mxu0 %v979
    %3061 = vmatprep.subr.mxu0 0.0
    %3062 = vmatpush1.msra.mxu0 %v978
    %3063 = vmatprep.subr.mxu0 0.0
    %3064 = vmatpush1.msra.mxu0 %v977
    %3065 = vmatprep.subr.mxu0 0.0
    %3066 = vmatpush1.msra.mxu0 %v976
    %3067 = vmatprep.subr.mxu0 0.0
    %3068 = vmatpush1.msra.mxu0 %v975
    %3069 = vmatprep.subr.mxu0 0.0
    %3070 = vmatpush1.msra.mxu0 %v974
    %3071 = vmatprep.subr.mxu0 0.0
    %3072 = vmatpush1.msra.mxu0 %v973
    %3073 = vmatprep.subr.mxu0 0.0
    %3074 = vmatpush1.msra.mxu0 %v972
    %3075 = vmatprep.subr.mxu0 0.0
    %3076 = vmatpush1.msra.mxu0 %v971
    %3077 = vmatprep.subr.mxu0 0.0
    %3078 = vmatpush2.msra.mxu0 %v1002
    %3079 = vmatprep.subr.mxu0 0.0
    %3080 = vmatpush2.msra.mxu0 %v1001
    %3081 = vmatprep.subr.mxu0 0.0
    %3082 = vmatpush2.msra.mxu0 %v1000
    %3083 = vmatprep.subr.mxu0 0.0
    %3084 = vmatpush2.msra.mxu0 %v999
    %3085 = vmatprep.subr.mxu0 0.0
    %3086 = vmatpush2.msra.mxu0 %v998
    %3087 = vmatprep.subr.mxu0 0.0
    %3088 = vmatpush2.msra.mxu0 %v997
    %3089 = vmatprep.subr.mxu0 0.0
    %3090 = vmatpush2.msra.mxu0 %v996
    %3091 = vmatprep.subr.mxu0 0.0
    %3092 = vmatpush2.msra.mxu0 %v995
    %3093 = vmatprep.subr.mxu0 0.0
    %3094 = vmatpush2.msra.mxu0 %v994
    %3095 = vmatprep.subr.mxu0 0.0
    %3096 = vmatpush2.msra.mxu0 %v993
    %3097 = vmatprep.subr.mxu0 0.0
    %3098 = vmatpush2.msra.mxu0 %v992
    %3099 = vmatprep.subr.mxu0 0.0
    %3100 = vmatpush2.msra.mxu0 %v991
    %3101 = vmatprep.subr.mxu0 0.0
    %3102 = vmatpush2.msra.mxu0 %v990
    %3103 = vmatprep.subr.mxu0 0.0
    %3104 = vmatpush2.msra.mxu0 %v989
    %3105 = vmatprep.subr.mxu0 0.0
    %3106 = vmatpush2.msra.mxu0 %v988
    %3107 = vmatprep.subr.mxu0 0.0
    %3108 = vmatpush2.msra.mxu0 %v987
    %3109 = vmatprep.mubr.f32.mxu0 %v152
    %3110 = vmatmul.mubr.f32.gmra.mxu0 %v151
    %v3111 = vpop.f32.mrf.mxu0
    %v3112 = vadd.f32 %v3042, %v3111
    %v3113 = vpop.f32.mrf.mxu0
    %3114 = vdwg.mxu0
    %3115 = vmatprep.subr.mxu0 0.0
    %3116 = vmatpush1.msra.mxu0 %v1018
    %3117 = vmatprep.subr.mxu0 0.0
    %3118 = vmatpush1.msra.mxu0 %v1017
    %3119 = vmatprep.subr.mxu0 0.0
    %3120 = vmatpush1.msra.mxu0 %v1016
    %3121 = vmatprep.subr.mxu0 0.0
    %3122 = vmatpush1.msra.mxu0 %v1015
    %3123 = vmatprep.subr.mxu0 0.0
    %3124 = vmatpush1.msra.mxu0 %v1014
    %3125 = vmatprep.subr.mxu0 0.0
    %3126 = vmatpush1.msra.mxu0 %v1013
    %3127 = vmatprep.subr.mxu0 0.0
    %3128 = vmatpush1.msra.mxu0 %v1012
    %3129 = vmatprep.subr.mxu0 0.0
    %3130 = vmatpush1.msra.mxu0 %v1011
    %3131 = vmatprep.subr.mxu0 0.0
    %3132 = vmatpush1.msra.mxu0 %v1010
    %3133 = vmatprep.subr.mxu0 0.0
    %3134 = vmatpush1.msra.mxu0 %v1009
    %3135 = vmatprep.subr.mxu0 0.0
    %3136 = vmatpush1.msra.mxu0 %v1008
    %3137 = vmatprep.subr.mxu0 0.0
    %3138 = vmatpush1.msra.mxu0 %v1007
    %3139 = vmatprep.subr.mxu0 0.0
    %3140 = vmatpush1.msra.mxu0 %v1006
    %3141 = vmatprep.subr.mxu0 0.0
    %3142 = vmatpush1.msra.mxu0 %v1005
    %3143 = vmatprep.subr.mxu0 0.0
    %3144 = vmatpush1.msra.mxu0 %v1004
    %3145 = vmatprep.subr.mxu0 0.0
    %3146 = vmatpush1.msra.mxu0 %v1003
    %3147 = vmatprep.subr.mxu0 0.0
    %3148 = vmatpush2.msra.mxu0 %v1034
    %3149 = vmatprep.subr.mxu0 0.0
    %3150 = vmatpush2.msra.mxu0 %v1033
    %3151 = vmatprep.subr.mxu0 0.0
    %3152 = vmatpush2.msra.mxu0 %v1032
    %3153 = vmatprep.subr.mxu0 0.0
    %3154 = vmatpush2.msra.mxu0 %v1031
    %3155 = vmatprep.subr.mxu0 0.0
    %3156 = vmatpush2.msra.mxu0 %v1030
    %3157 = vmatprep.subr.mxu0 0.0
    %3158 = vmatpush2.msra.mxu0 %v1029
    %3159 = vmatprep.subr.mxu0 0.0
    %3160 = vmatpush2.msra.mxu0 %v1028
    %3161 = vmatprep.subr.mxu0 0.0
    %3162 = vmatpush2.msra.mxu0 %v1027
    %3163 = vmatprep.subr.mxu0 0.0
    %3164 = vmatpush2.msra.mxu0 %v1026
    %3165 = vmatprep.subr.mxu0 0.0
    %3166 = vmatpush2.msra.mxu0 %v1025
    %3167 = vmatprep.subr.mxu0 0.0
    %3168 = vmatpush2.msra.mxu0 %v1024
    %3169 = vmatprep.subr.mxu0 0.0
    %3170 = vmatpush2.msra.mxu0 %v1023
    %3171 = vmatprep.subr.mxu0 0.0
    %3172 = vmatpush2.msra.mxu0 %v1022
    %3173 = vmatprep.subr.mxu0 0.0
    %3174 = vmatpush2.msra.mxu0 %v1021
    %3175 = vmatprep.subr.mxu0 0.0
    %3176 = vmatpush2.msra.mxu0 %v1020
    %3177 = vmatprep.subr.mxu0 0.0
    %3178 = vmatpush2.msra.mxu0 %v1019
    %3179 = vmatprep.mubr.f32.mxu0 %v154
    %3180 = vmatmul.mubr.f32.gmra.mxu0 %v153
    %v3181 = vpop.f32.mrf.mxu0
    %v3182 = vadd.f32 %v3112, %v3181
    %v3183 = vpop.f32.mrf.mxu0
    %3184 = vdwg.mxu0
    %3185 = vmatprep.subr.mxu0 0.0
    %3186 = vmatpush1.msra.mxu0 %v1050
    %3187 = vmatprep.subr.mxu0 0.0
    %3188 = vmatpush1.msra.mxu0 %v1049
    %3189 = vmatprep.subr.mxu0 0.0
    %3190 = vmatpush1.msra.mxu0 %v1048
    %3191 = vmatprep.subr.mxu0 0.0
    %3192 = vmatpush1.msra.mxu0 %v1047
    %3193 = vmatprep.subr.mxu0 0.0
    %3194 = vmatpush1.msra.mxu0 %v1046
    %3195 = vmatprep.subr.mxu0 0.0
    %3196 = vmatpush1.msra.mxu0 %v1045
    %3197 = vmatprep.subr.mxu0 0.0
    %3198 = vmatpush1.msra.mxu0 %v1044
    %3199 = vmatprep.subr.mxu0 0.0
    %3200 = vmatpush1.msra.mxu0 %v1043
    %3201 = vmatprep.subr.mxu0 0.0
    %3202 = vmatpush1.msra.mxu0 %v1042
    %3203 = vmatprep.subr.mxu0 0.0
    %3204 = vmatpush1.msra.mxu0 %v1041
    %3205 = vmatprep.subr.mxu0 0.0
    %3206 = vmatpush1.msra.mxu0 %v1040
    %3207 = vmatprep.subr.mxu0 0.0
    %3208 = vmatpush1.msra.mxu0 %v1039
    %3209 = vmatprep.subr.mxu0 0.0
    %3210 = vmatpush1.msra.mxu0 %v1038
    %3211 = vmatprep.subr.mxu0 0.0
    %3212 = vmatpush1.msra.mxu0 %v1037
    %3213 = vmatprep.subr.mxu0 0.0
    %3214 = vmatpush1.msra.mxu0 %v1036
    %3215 = vmatprep.subr.mxu0 0.0
    %3216 = vmatpush1.msra.mxu0 %v1035
    %3217 = vmatprep.subr.mxu0 0.0
    %3218 = vmatpush2.msra.mxu0 %v1066
    %3219 = vmatprep.subr.mxu0 0.0
    %3220 = vmatpush2.msra.mxu0 %v1065
    %3221 = vmatprep.subr.mxu0 0.0
    %3222 = vmatpush2.msra.mxu0 %v1064
    %3223 = vmatprep.subr.mxu0 0.0
    %3224 = vmatpush2.msra.mxu0 %v1063
    %3225 = vmatprep.subr.mxu0 0.0
    %3226 = vmatpush2.msra.mxu0 %v1062
    %3227 = vmatprep.subr.mxu0 0.0
    %3228 = vmatpush2.msra.mxu0 %v1061
    %3229 = vmatprep.subr.mxu0 0.0
    %3230 = vmatpush2.msra.mxu0 %v1060
    %3231 = vmatprep.subr.mxu0 0.0
    %3232 = vmatpush2.msra.mxu0 %v1059
    %3233 = vmatprep.subr.mxu0 0.0
    %3234 = vmatpush2.msra.mxu0 %v1058
    %3235 = vmatprep.subr.mxu0 0.0
    %3236 = vmatpush2.msra.mxu0 %v1057
    %3237 = vmatprep.subr.mxu0 0.0
    %3238 = vmatpush2.msra.mxu0 %v1056
    %3239 = vmatprep.subr.mxu0 0.0
    %3240 = vmatpush2.msra.mxu0 %v1055
    %3241 = vmatprep.subr.mxu0 0.0
    %3242 = vmatpush2.msra.mxu0 %v1054
    %3243 = vmatprep.subr.mxu0 0.0
    %3244 = vmatpush2.msra.mxu0 %v1053
    %3245 = vmatprep.subr.mxu0 0.0
    %3246 = vmatpush2.msra.mxu0 %v1052
    %3247 = vmatprep.subr.mxu0 0.0
    %3248 = vmatpush2.msra.mxu0 %v1051
    %3249 = vmatprep.mubr.f32.mxu0 %v156
    %3250 = vmatmul.mubr.f32.gmra.mxu0 %v155
    %v3251 = vpop.f32.mrf.mxu0
    %v3252 = vadd.f32 %v3182, %v3251
    %v3253 = vpop.f32.mrf.mxu0
    %3254 = vdwg.mxu0
    %3255 = vmatprep.subr.mxu0 0.0
    %3256 = vmatpush1.msra.mxu0 %v1082
    %3257 = vmatprep.subr.mxu0 0.0
    %3258 = vmatpush1.msra.mxu0 %v1081
    %3259 = vmatprep.subr.mxu0 0.0
    %3260 = vmatpush1.msra.mxu0 %v1080
    %3261 = vmatprep.subr.mxu0 0.0
    %3262 = vmatpush1.msra.mxu0 %v1079
    %3263 = vmatprep.subr.mxu0 0.0
    %3264 = vmatpush1.msra.mxu0 %v1078
    %3265 = vmatprep.subr.mxu0 0.0
    %3266 = vmatpush1.msra.mxu0 %v1077
    %3267 = vmatprep.subr.mxu0 0.0
    %3268 = vmatpush1.msra.mxu0 %v1076
    %3269 = vmatprep.subr.mxu0 0.0
    %3270 = vmatpush1.msra.mxu0 %v1075
    %3271 = vmatprep.subr.mxu0 0.0
    %3272 = vmatpush1.msra.mxu0 %v1074
    %3273 = vmatprep.subr.mxu0 0.0
    %3274 = vmatpush1.msra.mxu0 %v1073
    %3275 = vmatprep.subr.mxu0 0.0
    %3276 = vmatpush1.msra.mxu0 %v1072
    %3277 = vmatprep.subr.mxu0 0.0
    %3278 = vmatpush1.msra.mxu0 %v1071
    %3279 = vmatprep.subr.mxu0 0.0
    %3280 = vmatpush1.msra.mxu0 %v1070
    %3281 = vmatprep.subr.mxu0 0.0
    %3282 = vmatpush1.msra.mxu0 %v1069
    %3283 = vmatprep.subr.mxu0 0.0
    %3284 = vmatpush1.msra.mxu0 %v1068
    %3285 = vmatprep.subr.mxu0 0.0
    %3286 = vmatpush1.msra.mxu0 %v1067
    %3287 = vmatprep.subr.mxu0 0.0
    %3288 = vmatpush2.msra.mxu0 %v1098
    %3289 = vmatprep.subr.mxu0 0.0
    %3290 = vmatpush2.msra.mxu0 %v1097
    %3291 = vmatprep.subr.mxu0 0.0
    %3292 = vmatpush2.msra.mxu0 %v1096
    %3293 = vmatprep.subr.mxu0 0.0
    %3294 = vmatpush2.msra.mxu0 %v1095
    %3295 = vmatprep.subr.mxu0 0.0
    %3296 = vmatpush2.msra.mxu0 %v1094
    %3297 = vmatprep.subr.mxu0 0.0
    %3298 = vmatpush2.msra.mxu0 %v1093
    %3299 = vmatprep.subr.mxu0 0.0
    %3300 = vmatpush2.msra.mxu0 %v1092
    %3301 = vmatprep.subr.mxu0 0.0
    %3302 = vmatpush2.msra.mxu0 %v1091
    %3303 = vmatprep.subr.mxu0 0.0
    %3304 = vmatpush2.msra.mxu0 %v1090
    %3305 = vmatprep.subr.mxu0 0.0
    %3306 = vmatpush2.msra.mxu0 %v1089
    %3307 = vmatprep.subr.mxu0 0.0
    %3308 = vmatpush2.msra.mxu0 %v1088
    %3309 = vmatprep.subr.mxu0 0.0
    %3310 = vmatpush2.msra.mxu0 %v1087
    %3311 = vmatprep.subr.mxu0 0.0
    %3312 = vmatpush2.msra.mxu0 %v1086
    %3313 = vmatprep.subr.mxu0 0.0
    %3314 = vmatpush2.msra.mxu0 %v1085
    %3315 = vmatprep.subr.mxu0 0.0
    %3316 = vmatpush2.msra.mxu0 %v1084
    %3317 = vmatprep.subr.mxu0 0.0
    %3318 = vmatpush2.msra.mxu0 %v1083
    %3319 = vmatprep.mubr.f32.mxu0 %v158
    %3320 = vmatmul.mubr.f32.gmra.mxu0 %v157
    %v3321 = vpop.f32.mrf.mxu0
    %v3322 = vadd.f32 %v3252, %v3321
    %v3323 = vpop.f32.mrf.mxu0
    %3324 = vdwg.mxu0
    %3325 = vmatprep.subr.mxu0 0.0
    %3326 = vmatpush1.msra.mxu0 %v1114
    %3327 = vmatprep.subr.mxu0 0.0
    %3328 = vmatpush1.msra.mxu0 %v1113
    %3329 = vmatprep.subr.mxu0 0.0
    %3330 = vmatpush1.msra.mxu0 %v1112
    %3331 = vmatprep.subr.mxu0 0.0
    %3332 = vmatpush1.msra.mxu0 %v1111
    %3333 = vmatprep.subr.mxu0 0.0
    %3334 = vmatpush1.msra.mxu0 %v1110
    %3335 = vmatprep.subr.mxu0 0.0
    %3336 = vmatpush1.msra.mxu0 %v1109
    %3337 = vmatprep.subr.mxu0 0.0
    %3338 = vmatpush1.msra.mxu0 %v1108
    %3339 = vmatprep.subr.mxu0 0.0
    %3340 = vmatpush1.msra.mxu0 %v1107
    %3341 = vmatprep.subr.mxu0 0.0
    %3342 = vmatpush1.msra.mxu0 %v1106
    %3343 = vmatprep.subr.mxu0 0.0
    %3344 = vmatpush1.msra.mxu0 %v1105
    %3345 = vmatprep.subr.mxu0 0.0
    %3346 = vmatpush1.msra.mxu0 %v1104
    %3347 = vmatprep.subr.mxu0 0.0
    %3348 = vmatpush1.msra.mxu0 %v1103
    %3349 = vmatprep.subr.mxu0 0.0
    %3350 = vmatpush1.msra.mxu0 %v1102
    %3351 = vmatprep.subr.mxu0 0.0
    %3352 = vmatpush1.msra.mxu0 %v1101
    %3353 = vmatprep.subr.mxu0 0.0
    %3354 = vmatpush1.msra.mxu0 %v1100
    %3355 = vmatprep.subr.mxu0 0.0
    %3356 = vmatpush1.msra.mxu0 %v1099
    %3357 = vmatprep.subr.mxu0 0.0
    %3358 = vmatpush2.msra.mxu0 %v1130
    %3359 = vmatprep.subr.mxu0 0.0
    %3360 = vmatpush2.msra.mxu0 %v1129
    %3361 = vmatprep.subr.mxu0 0.0
    %3362 = vmatpush2.msra.mxu0 %v1128
    %3363 = vmatprep.subr.mxu0 0.0
    %3364 = vmatpush2.msra.mxu0 %v1127
    %3365 = vmatprep.subr.mxu0 0.0
    %3366 = vmatpush2.msra.mxu0 %v1126
    %3367 = vmatprep.subr.mxu0 0.0
    %3368 = vmatpush2.msra.mxu0 %v1125
    %3369 = vmatprep.subr.mxu0 0.0
    %3370 = vmatpush2.msra.mxu0 %v1124
    %3371 = vmatprep.subr.mxu0 0.0
    %3372 = vmatpush2.msra.mxu0 %v1123
    %3373 = vmatprep.subr.mxu0 0.0
    %3374 = vmatpush2.msra.mxu0 %v1122
    %3375 = vmatprep.subr.mxu0 0.0
    %3376 = vmatpush2.msra.mxu0 %v1121
    %3377 = vmatprep.subr.mxu0 0.0
    %3378 = vmatpush2.msra.mxu0 %v1120
    %3379 = vmatprep.subr.mxu0 0.0
    %3380 = vmatpush2.msra.mxu0 %v1119
    %3381 = vmatprep.subr.mxu0 0.0
    %3382 = vmatpush2.msra.mxu0 %v1118
    %3383 = vmatprep.subr.mxu0 0.0
    %3384 = vmatpush2.msra.mxu0 %v1117
    %3385 = vmatprep.subr.mxu0 0.0
    %3386 = vmatpush2.msra.mxu0 %v1116
    %3387 = vmatprep.subr.mxu0 0.0
    %3388 = vmatpush2.msra.mxu0 %v1115
    %3389 = vmatprep.mubr.f32.mxu0 %v160
    %3390 = vmatmul.mubr.f32.gmra.mxu0 %v159
    %v3391 = vpop.f32.mrf.mxu0
    %v3392 = vadd.f32 %v3322, %v3391
    %v3393 = vpop.f32.mrf.mxu0
    %3394 = vdwg.mxu0
    %3395 = vmatprep.subr.mxu0 0.0
    %3396 = vmatpush1.msra.mxu0 %v1146
    %3397 = vmatprep.subr.mxu0 0.0
    %3398 = vmatpush1.msra.mxu0 %v1145
    %3399 = vmatprep.subr.mxu0 0.0
    %3400 = vmatpush1.msra.mxu0 %v1144
    %3401 = vmatprep.subr.mxu0 0.0
    %3402 = vmatpush1.msra.mxu0 %v1143
    %3403 = vmatprep.subr.mxu0 0.0
    %3404 = vmatpush1.msra.mxu0 %v1142
    %3405 = vmatprep.subr.mxu0 0.0
    %3406 = vmatpush1.msra.mxu0 %v1141
    %3407 = vmatprep.subr.mxu0 0.0
    %3408 = vmatpush1.msra.mxu0 %v1140
    %3409 = vmatprep.subr.mxu0 0.0
    %3410 = vmatpush1.msra.mxu0 %v1139
    %3411 = vmatprep.subr.mxu0 0.0
    %3412 = vmatpush1.msra.mxu0 %v1138
    %3413 = vmatprep.subr.mxu0 0.0
    %3414 = vmatpush1.msra.mxu0 %v1137
    %3415 = vmatprep.subr.mxu0 0.0
    %3416 = vmatpush1.msra.mxu0 %v1136
    %3417 = vmatprep.subr.mxu0 0.0
    %3418 = vmatpush1.msra.mxu0 %v1135
    %3419 = vmatprep.subr.mxu0 0.0
    %3420 = vmatpush1.msra.mxu0 %v1134
    %3421 = vmatprep.subr.mxu0 0.0
    %3422 = vmatpush1.msra.mxu0 %v1133
    %3423 = vmatprep.subr.mxu0 0.0
    %3424 = vmatpush1.msra.mxu0 %v1132
    %3425 = vmatprep.subr.mxu0 0.0
    %3426 = vmatpush1.msra.mxu0 %v1131
    %3427 = vmatprep.subr.mxu0 0.0
    %3428 = vmatpush2.msra.mxu0 %v1162
    %3429 = vmatprep.subr.mxu0 0.0
    %3430 = vmatpush2.msra.mxu0 %v1161
    %3431 = vmatprep.subr.mxu0 0.0
    %3432 = vmatpush2.msra.mxu0 %v1160
    %3433 = vmatprep.subr.mxu0 0.0
    %3434 = vmatpush2.msra.mxu0 %v1159
    %3435 = vmatprep.subr.mxu0 0.0
    %3436 = vmatpush2.msra.mxu0 %v1158
    %3437 = vmatprep.subr.mxu0 0.0
    %3438 = vmatpush2.msra.mxu0 %v1157
    %3439 = vmatprep.subr.mxu0 0.0
    %3440 = vmatpush2.msra.mxu0 %v1156
    %3441 = vmatprep.subr.mxu0 0.0
    %3442 = vmatpush2.msra.mxu0 %v1155
    %3443 = vmatprep.subr.mxu0 0.0
    %3444 = vmatpush2.msra.mxu0 %v1154
    %3445 = vmatprep.subr.mxu0 0.0
    %3446 = vmatpush2.msra.mxu0 %v1153
    %3447 = vmatprep.subr.mxu0 0.0
    %3448 = vmatpush2.msra.mxu0 %v1152
    %3449 = vmatprep.subr.mxu0 0.0
    %3450 = vmatpush2.msra.mxu0 %v1151
    %3451 = vmatprep.subr.mxu0 0.0
    %3452 = vmatpush2.msra.mxu0 %v1150
    %3453 = vmatprep.subr.mxu0 0.0
    %3454 = vmatpush2.msra.mxu0 %v1149
    %3455 = vmatprep.subr.mxu0 0.0
    %3456 = vmatpush2.msra.mxu0 %v1148
    %3457 = vmatprep.subr.mxu0 0.0
    %3458 = vmatpush2.msra.mxu0 %v1147
    %3459 = vmatprep.mubr.f32.mxu0 %v162
    %3460 = vmatmul.mubr.f32.gmra.mxu0 %v161
    %v3461 = vpop.f32.mrf.mxu0
    %v3462 = vadd.f32 %v3392, %v3461
    %v3463 = vpop.f32.mrf.mxu0
    %3464 = vdwg.mxu0
    %3465 = vmatprep.subr.mxu0 0.0
    %3466 = vmatpush1.msra.mxu0 %v1178
    %3467 = vmatprep.subr.mxu0 0.0
    %3468 = vmatpush1.msra.mxu0 %v1177
    %3469 = vmatprep.subr.mxu0 0.0
    %3470 = vmatpush1.msra.mxu0 %v1176
    %3471 = vmatprep.subr.mxu0 0.0
    %3472 = vmatpush1.msra.mxu0 %v1175
    %3473 = vmatprep.subr.mxu0 0.0
    %3474 = vmatpush1.msra.mxu0 %v1174
    %3475 = vmatprep.subr.mxu0 0.0
    %3476 = vmatpush1.msra.mxu0 %v1173
    %3477 = vmatprep.subr.mxu0 0.0
    %3478 = vmatpush1.msra.mxu0 %v1172
    %3479 = vmatprep.subr.mxu0 0.0
    %3480 = vmatpush1.msra.mxu0 %v1171
    %3481 = vmatprep.subr.mxu0 0.0
    %3482 = vmatpush1.msra.mxu0 %v1170
    %3483 = vmatprep.subr.mxu0 0.0
    %3484 = vmatpush1.msra.mxu0 %v1169
    %3485 = vmatprep.subr.mxu0 0.0
    %3486 = vmatpush1.msra.mxu0 %v1168
    %3487 = vmatprep.subr.mxu0 0.0
    %3488 = vmatpush1.msra.mxu0 %v1167
    %3489 = vmatprep.subr.mxu0 0.0
    %3490 = vmatpush1.msra.mxu0 %v1166
    %3491 = vmatprep.subr.mxu0 0.0
    %3492 = vmatpush1.msra.mxu0 %v1165
    %3493 = vmatprep.subr.mxu0 0.0
    %3494 = vmatpush1.msra.mxu0 %v1164
    %3495 = vmatprep.subr.mxu0 0.0
    %3496 = vmatpush1.msra.mxu0 %v1163
    %3497 = vmatprep.subr.mxu0 0.0
    %3498 = vmatpush2.msra.mxu0 %v1194
    %3499 = vmatprep.subr.mxu0 0.0
    %3500 = vmatpush2.msra.mxu0 %v1193
    %3501 = vmatprep.subr.mxu0 0.0
    %3502 = vmatpush2.msra.mxu0 %v1192
    %3503 = vmatprep.subr.mxu0 0.0
    %3504 = vmatpush2.msra.mxu0 %v1191
    %3505 = vmatprep.subr.mxu0 0.0
    %3506 = vmatpush2.msra.mxu0 %v1190
    %3507 = vmatprep.subr.mxu0 0.0
    %3508 = vmatpush2.msra.mxu0 %v1189
    %3509 = vmatprep.subr.mxu0 0.0
    %3510 = vmatpush2.msra.mxu0 %v1188
    %3511 = vmatprep.subr.mxu0 0.0
    %3512 = vmatpush2.msra.mxu0 %v1187
    %3513 = vmatprep.subr.mxu0 0.0
    %3514 = vmatpush2.msra.mxu0 %v1186
    %3515 = vmatprep.subr.mxu0 0.0
    %3516 = vmatpush2.msra.mxu0 %v1185
    %3517 = vmatprep.subr.mxu0 0.0
    %3518 = vmatpush2.msra.mxu0 %v1184
    %3519 = vmatprep.subr.mxu0 0.0
    %3520 = vmatpush2.msra.mxu0 %v1183
    %3521 = vmatprep.subr.mxu0 0.0
    %3522 = vmatpush2.msra.mxu0 %v1182
    %3523 = vmatprep.subr.mxu0 0.0
    %3524 = vmatpush2.msra.mxu0 %v1181
    %3525 = vmatprep.subr.mxu0 0.0
    %3526 = vmatpush2.msra.mxu0 %v1180
    %3527 = vmatprep.subr.mxu0 0.0
    %3528 = vmatpush2.msra.mxu0 %v1179
    %3529 = vmatprep.mubr.f32.mxu0 %v164
    %3530 = vmatmul.mubr.f32.gmra.mxu0 %v163
    %v3531 = vpop.f32.mrf.mxu0
    %v3532 = vadd.f32 %v3462, %v3531
    %v3533 = vpop.f32.mrf.mxu0
    %3534 = vdwg.mxu0
    %3535 = vmatprep.subr.mxu0 0.0
    %3536 = vmatpush1.msra.mxu0 %v1210
    %3537 = vmatprep.subr.mxu0 0.0
    %3538 = vmatpush1.msra.mxu0 %v1209
    %3539 = vmatprep.subr.mxu0 0.0
    %3540 = vmatpush1.msra.mxu0 %v1208
    %3541 = vmatprep.subr.mxu0 0.0
    %3542 = vmatpush1.msra.mxu0 %v1207
    %3543 = vmatprep.subr.mxu0 0.0
    %3544 = vmatpush1.msra.mxu0 %v1206
    %3545 = vmatprep.subr.mxu0 0.0
    %3546 = vmatpush1.msra.mxu0 %v1205
    %3547 = vmatprep.subr.mxu0 0.0
    %3548 = vmatpush1.msra.mxu0 %v1204
    %3549 = vmatprep.subr.mxu0 0.0
    %3550 = vmatpush1.msra.mxu0 %v1203
    %3551 = vmatprep.subr.mxu0 0.0
    %3552 = vmatpush1.msra.mxu0 %v1202
    %3553 = vmatprep.subr.mxu0 0.0
    %3554 = vmatpush1.msra.mxu0 %v1201
    %3555 = vmatprep.subr.mxu0 0.0
    %3556 = vmatpush1.msra.mxu0 %v1200
    %3557 = vmatprep.subr.mxu0 0.0
    %3558 = vmatpush1.msra.mxu0 %v1199
    %3559 = vmatprep.subr.mxu0 0.0
    %3560 = vmatpush1.msra.mxu0 %v1198
    %3561 = vmatprep.subr.mxu0 0.0
    %3562 = vmatpush1.msra.mxu0 %v1197
    %3563 = vmatprep.subr.mxu0 0.0
    %3564 = vmatpush1.msra.mxu0 %v1196
    %3565 = vmatprep.subr.mxu0 0.0
    %3566 = vmatpush1.msra.mxu0 %v1195
    %3567 = vmatprep.subr.mxu0 0.0
    %3568 = vmatpush2.msra.mxu0 %v1226
    %3569 = vmatprep.subr.mxu0 0.0
    %3570 = vmatpush2.msra.mxu0 %v1225
    %3571 = vmatprep.subr.mxu0 0.0
    %3572 = vmatpush2.msra.mxu0 %v1224
    %3573 = vmatprep.subr.mxu0 0.0
    %3574 = vmatpush2.msra.mxu0 %v1223
    %3575 = vmatprep.subr.mxu0 0.0
    %3576 = vmatpush2.msra.mxu0 %v1222
    %3577 = vmatprep.subr.mxu0 0.0
    %3578 = vmatpush2.msra.mxu0 %v1221
    %3579 = vmatprep.subr.mxu0 0.0
    %3580 = vmatpush2.msra.mxu0 %v1220
    %3581 = vmatprep.subr.mxu0 0.0
    %3582 = vmatpush2.msra.mxu0 %v1219
    %3583 = vmatprep.subr.mxu0 0.0
    %3584 = vmatpush2.msra.mxu0 %v1218
    %3585 = vmatprep.subr.mxu0 0.0
    %3586 = vmatpush2.msra.mxu0 %v1217
    %3587 = vmatprep.subr.mxu0 0.0
    %3588 = vmatpush2.msra.mxu0 %v1216
    %3589 = vmatprep.subr.mxu0 0.0
    %3590 = vmatpush2.msra.mxu0 %v1215
    %3591 = vmatprep.subr.mxu0 0.0
    %3592 = vmatpush2.msra.mxu0 %v1214
    %3593 = vmatprep.subr.mxu0 0.0
    %3594 = vmatpush2.msra.mxu0 %v1213
    %3595 = vmatprep.subr.mxu0 0.0
    %3596 = vmatpush2.msra.mxu0 %v1212
    %3597 = vmatprep.subr.mxu0 0.0
    %3598 = vmatpush2.msra.mxu0 %v1211
    %3599 = vmatprep.mubr.f32.mxu0 %v166
    %3600 = vmatmul.mubr.f32.gmra.mxu0 %v165
    %v3601 = vpop.f32.mrf.mxu0
    %v3602 = vadd.f32 %v3532, %v3601
    %v3603 = vpop.f32.mrf.mxu0
    %3604 = vdwg.mxu0
    %3605 = vmatprep.subr.mxu0 0.0
    %3606 = vmatpush1.msra.mxu0 %v1242
    %3607 = vmatprep.subr.mxu0 0.0
    %3608 = vmatpush1.msra.mxu0 %v1241
    %3609 = vmatprep.subr.mxu0 0.0
    %3610 = vmatpush1.msra.mxu0 %v1240
    %3611 = vmatprep.subr.mxu0 0.0
    %3612 = vmatpush1.msra.mxu0 %v1239
    %3613 = vmatprep.subr.mxu0 0.0
    %3614 = vmatpush1.msra.mxu0 %v1238
    %3615 = vmatprep.subr.mxu0 0.0
    %3616 = vmatpush1.msra.mxu0 %v1237
    %3617 = vmatprep.subr.mxu0 0.0
    %3618 = vmatpush1.msra.mxu0 %v1236
    %3619 = vmatprep.subr.mxu0 0.0
    %3620 = vmatpush1.msra.mxu0 %v1235
    %3621 = vmatprep.subr.mxu0 0.0
    %3622 = vmatpush1.msra.mxu0 %v1234
    %3623 = vmatprep.subr.mxu0 0.0
    %3624 = vmatpush1.msra.mxu0 %v1233
    %3625 = vmatprep.subr.mxu0 0.0
    %3626 = vmatpush1.msra.mxu0 %v1232
    %3627 = vmatprep.subr.mxu0 0.0
    %3628 = vmatpush1.msra.mxu0 %v1231
    %3629 = vmatprep.subr.mxu0 0.0
    %3630 = vmatpush1.msra.mxu0 %v1230
    %3631 = vmatprep.subr.mxu0 0.0
    %3632 = vmatpush1.msra.mxu0 %v1229
    %3633 = vmatprep.subr.mxu0 0.0
    %3634 = vmatpush1.msra.mxu0 %v1228
    %3635 = vmatprep.subr.mxu0 0.0
    %3636 = vmatpush1.msra.mxu0 %v1227
    %3637 = vmatprep.subr.mxu0 0.0
    %3638 = vmatpush2.msra.mxu0 %v1258
    %3639 = vmatprep.subr.mxu0 0.0
    %3640 = vmatpush2.msra.mxu0 %v1257
    %3641 = vmatprep.subr.mxu0 0.0
    %3642 = vmatpush2.msra.mxu0 %v1256
    %3643 = vmatprep.subr.mxu0 0.0
    %3644 = vmatpush2.msra.mxu0 %v1255
    %3645 = vmatprep.subr.mxu0 0.0
    %3646 = vmatpush2.msra.mxu0 %v1254
    %3647 = vmatprep.subr.mxu0 0.0
    %3648 = vmatpush2.msra.mxu0 %v1253
    %3649 = vmatprep.subr.mxu0 0.0
    %3650 = vmatpush2.msra.mxu0 %v1252
    %3651 = vmatprep.subr.mxu0 0.0
    %3652 = vmatpush2.msra.mxu0 %v1251
    %3653 = vmatprep.subr.mxu0 0.0
    %3654 = vmatpush2.msra.mxu0 %v1250
    %3655 = vmatprep.subr.mxu0 0.0
    %3656 = vmatpush2.msra.mxu0 %v1249
    %3657 = vmatprep.subr.mxu0 0.0
    %3658 = vmatpush2.msra.mxu0 %v1248
    %3659 = vmatprep.subr.mxu0 0.0
    %3660 = vmatpush2.msra.mxu0 %v1247
    %3661 = vmatprep.subr.mxu0 0.0
    %3662 = vmatpush2.msra.mxu0 %v1246
    %3663 = vmatprep.subr.mxu0 0.0
    %3664 = vmatpush2.msra.mxu0 %v1245
    %3665 = vmatprep.subr.mxu0 0.0
    %3666 = vmatpush2.msra.mxu0 %v1244
    %3667 = vmatprep.subr.mxu0 0.0
    %3668 = vmatpush2.msra.mxu0 %v1243
    %3669 = vmatprep.mubr.f32.mxu0 %v168
    %3670 = vmatmul.mubr.f32.gmra.mxu0 %v167
    %v3671 = vpop.f32.mrf.mxu0
    %v3672 = vadd.f32 %v3602, %v3671
    %v3673 = vpop.f32.mrf.mxu0
    %3674 = vdwg.mxu0
    %3675 = vmatprep.subr.mxu0 0.0
    %3676 = vmatpush1.msra.mxu0 %v1274
    %3677 = vmatprep.subr.mxu0 0.0
    %3678 = vmatpush1.msra.mxu0 %v1273
    %3679 = vmatprep.subr.mxu0 0.0
    %3680 = vmatpush1.msra.mxu0 %v1272
    %3681 = vmatprep.subr.mxu0 0.0
    %3682 = vmatpush1.msra.mxu0 %v1271
    %3683 = vmatprep.subr.mxu0 0.0
    %3684 = vmatpush1.msra.mxu0 %v1270
    %3685 = vmatprep.subr.mxu0 0.0
    %3686 = vmatpush1.msra.mxu0 %v1269
    %3687 = vmatprep.subr.mxu0 0.0
    %3688 = vmatpush1.msra.mxu0 %v1268
    %3689 = vmatprep.subr.mxu0 0.0
    %3690 = vmatpush1.msra.mxu0 %v1267
    %3691 = vmatprep.subr.mxu0 0.0
    %3692 = vmatpush1.msra.mxu0 %v1266
    %3693 = vmatprep.subr.mxu0 0.0
    %3694 = vmatpush1.msra.mxu0 %v1265
    %3695 = vmatprep.subr.mxu0 0.0
    %3696 = vmatpush1.msra.mxu0 %v1264
    %3697 = vmatprep.subr.mxu0 0.0
    %3698 = vmatpush1.msra.mxu0 %v1263
    %3699 = vmatprep.subr.mxu0 0.0
    %3700 = vmatpush1.msra.mxu0 %v1262
    %3701 = vmatprep.subr.mxu0 0.0
    %3702 = vmatpush1.msra.mxu0 %v1261
    %3703 = vmatprep.subr.mxu0 0.0
    %3704 = vmatpush1.msra.mxu0 %v1260
    %3705 = vmatprep.subr.mxu0 0.0
    %3706 = vmatpush1.msra.mxu0 %v1259
    %3707 = vmatprep.subr.mxu0 0.0
    %3708 = vmatpush2.msra.mxu0 0.0
    %3709 = vmatprep.subr.mxu0 0.0
    %3710 = vmatpush2.msra.mxu0 0.0
    %3711 = vmatprep.subr.mxu0 0.0
    %3712 = vmatpush2.msra.mxu0 0.0
    %3713 = vmatprep.subr.mxu0 0.0
    %3714 = vmatpush2.msra.mxu0 0.0
    %3715 = vmatprep.subr.mxu0 0.0
    %3716 = vmatpush2.msra.mxu0 0.0
    %3717 = vmatprep.subr.mxu0 0.0
    %3718 = vmatpush2.msra.mxu0 0.0
    %3719 = vmatprep.subr.mxu0 0.0
    %3720 = vmatpush2.msra.mxu0 0.0
    %3721 = vmatprep.subr.mxu0 0.0
    %3722 = vmatpush2.msra.mxu0 0.0
    %3723 = vmatprep.subr.mxu0 0.0
    %3724 = vmatpush2.msra.mxu0 0.0
    %3725 = vmatprep.subr.mxu0 0.0
    %3726 = vmatpush2.msra.mxu0 0.0
    %3727 = vmatprep.subr.mxu0 0.0
    %3728 = vmatpush2.msra.mxu0 0.0
    %3729 = vmatprep.subr.mxu0 0.0
    %3730 = vmatpush2.msra.mxu0 %v1293
    %3731 = vmatprep.subr.mxu0 0.0
    %3732 = vmatpush2.msra.mxu0 %v1278
    %3733 = vmatprep.subr.mxu0 0.0
    %3734 = vmatpush2.msra.mxu0 %v1277
    %3735 = vmatprep.subr.mxu0 0.0
    %3736 = vmatpush2.msra.mxu0 %v1276
    %3737 = vmatprep.subr.mxu0 0.0
    %3738 = vmatpush2.msra.mxu0 %v1275
    %3739 = vmatprep.mubr.f32.mxu0 %v1289
    %3740 = vmatmul.mubr.f32.gmra.mxu0 %v169
    %v3741 = vpop.f32.mrf.mxu0
    %v3742 = vadd.f32 %v3672, %v3741
    %v3743 = vpop.f32.mrf.mxu0
    %3744 = vdwg.mxu0
    %v3745 = vmax.f32 %v3742, 0.0
    %v3746 = vld [vmem:[%s3] sm:$0xff]
    %v3747 = vld [vmem:[%s3 + $0x8] sm:$0xff]
    %v3748 = vld [vmem:[%s3 + $0x10] sm:$0xff]
    %v3749 = vld [vmem:[%s3 + $0x18] sm:$0xff]
    %v3750 = vld [vmem:[%s3 + $0x20] sm:$0xff]
    %v3751 = vld [vmem:[%s3 + $0x28] sm:$0xff]
    %v3752 = vld [vmem:[%s3 + $0x30] sm:$0xff]
    %v3753 = vld [vmem:[%s3 + $0x38] sm:$0xff]
    %v3754 = vld [vmem:[%s3 + $0x40] sm:$0xff]
    %v3755 = vld [vmem:[%s3 + $0x48] sm:$0xff]
    %v3756 = vld [vmem:[%s3 + $0x50] sm:$0xff]
    %v3757 = vld [vmem:[%s3 + $0x58] sm:$0xff]
    %v3758 = vld [vmem:[%s3 + $0x60] sm:$0xff]
    %v3759 = vld [vmem:[%s3 + $0x68] sm:$0xff]
    %v3760 = vld [vmem:[%s3 + $0x70] sm:$0xff]
    %v3761 = vld [vmem:[%s3 + $0x78] sm:$0xff]
    %v3762 = vld [vmem:[#allocation8] sm:$0x1]
    %v3764 = vlaneseq
    %v3765 = vshrl.u32 %v3764, 7
    %v3766 = vsub.s32 0, %v3765
    %v3767 = vrot.slane %v3762, %v3766
    %3769 = vmatprep.subr.mxu0 0.0
    %3770 = vmatpush1.msra.mxu0 %v3761
    %3771 = vmatprep.subr.mxu0 0.0
    %3772 = vmatpush1.msra.mxu0 %v3760
    %3773 = vmatprep.subr.mxu0 0.0
    %3774 = vmatpush1.msra.mxu0 %v3759
    %3775 = vmatprep.subr.mxu0 0.0
    %3776 = vmatpush1.msra.mxu0 %v3758
    %3777 = vmatprep.subr.mxu0 0.0
    %3778 = vmatpush1.msra.mxu0 %v3757
    %3779 = vmatprep.subr.mxu0 0.0
    %3780 = vmatpush1.msra.mxu0 %v3756
    %3781 = vmatprep.subr.mxu0 0.0
    %3782 = vmatpush1.msra.mxu0 %v3755
    %3783 = vmatprep.subr.mxu0 0.0
    %3784 = vmatpush1.msra.mxu0 %v3754
    %3785 = vmatprep.subr.mxu0 0.0
    %3786 = vmatpush1.msra.mxu0 %v3753
    %3787 = vmatprep.subr.mxu0 0.0
    %3788 = vmatpush1.msra.mxu0 %v3752
    %3789 = vmatprep.subr.mxu0 0.0
    %3790 = vmatpush1.msra.mxu0 %v3751
    %3791 = vmatprep.subr.mxu0 0.0
    %3792 = vmatpush1.msra.mxu0 %v3750
    %3793 = vmatprep.subr.mxu0 0.0
    %3794 = vmatpush1.msra.mxu0 %v3749
    %3795 = vmatprep.subr.mxu0 0.0
    %3796 = vmatpush1.msra.mxu0 %v3748
    %3797 = vmatprep.subr.mxu0 0.0
    %3798 = vmatpush1.msra.mxu0 %v3747
    %3799 = vmatprep.subr.mxu0 0.0
    %3800 = vmatpush1.msra.mxu0 %v3746
    %3801 = vmatprep.subr.mxu0 0.0
    %3802 = vmatpush2.msra.mxu0 0.0
    %3803 = vmatprep.subr.mxu0 0.0
    %3804 = vmatpush2.msra.mxu0 0.0
    %3805 = vmatprep.subr.mxu0 0.0
    %3806 = vmatpush2.msra.mxu0 0.0
    %3807 = vmatprep.subr.mxu0 0.0
    %3808 = vmatpush2.msra.mxu0 0.0
    %3809 = vmatprep.subr.mxu0 0.0
    %3810 = vmatpush2.msra.mxu0 0.0
    %3811 = vmatprep.subr.mxu0 0.0
    %3812 = vmatpush2.msra.mxu0 0.0
    %3813 = vmatprep.subr.mxu0 0.0
    %3814 = vmatpush2.msra.mxu0 0.0
    %3815 = vmatprep.subr.mxu0 0.0
    %3816 = vmatpush2.msra.mxu0 0.0
    %3817 = vmatprep.subr.mxu0 0.0
    %3818 = vmatpush2.msra.mxu0 0.0
    %3819 = vmatprep.subr.mxu0 0.0
    %3820 = vmatpush2.msra.mxu0 0.0
    %3821 = vmatprep.subr.mxu0 0.0
    %3822 = vmatpush2.msra.mxu0 0.0
    %3823 = vmatprep.subr.mxu0 0.0
    %3824 = vmatpush2.msra.mxu0 0.0
    %3825 = vmatprep.subr.mxu0 0.0
    %3826 = vmatpush2.msra.mxu0 0.0
    %3827 = vmatprep.subr.mxu0 0.0
    %3828 = vmatpush2.msra.mxu0 0.0
    %3829 = vmatprep.subr.mxu0 0.0
    %3830 = vmatpush2.msra.mxu0 0.0
    %3831 = vmatprep.subr.mxu0 0.0
    %3832 = vmatpush2.msra.mxu0 0.0
    %3833 = vmatprep.mubr.f32.mxu0 0.0
    %3834 = vmatmul.mubr.f32.gmra.mxu0 %v3745
    %v3835 = vpop.f32.mrf.mxu0
    %v3836 = vadd.f32 %v3767, %v3835
    %v3837 = vpop.f32.mrf.mxu0
    %3838 = vdwg.mxu0
    %v3839 = vmax.f32 %v3836, 0.0
    %v3840 = vld [vmem:[#allocation10] sm:$0xff]
    %v3841 = vld [vmem:[#allocation10 + $0x8] sm:$0xff]
    %v3842 = vld [vmem:[#allocation10 + $0x10] sm:$0xff]
    %v3843 = vld [vmem:[#allocation10 + $0x18] sm:$0xff]
    %v3844 = vld [vmem:[#allocation10 + $0x20] sm:$0xff]
    %v3845 = vld [vmem:[#allocation10 + $0x28] sm:$0xff]
    %v3846 = vld [vmem:[#allocation10 + $0x30] sm:$0xff]
    %v3847 = vld [vmem:[#allocation10 + $0x38] sm:$0xff]
    %v3848 = vld [vmem:[#allocation11] sm:$0x1]
    %v3850 = vlaneseq
    %v3851 = vshrl.u32 %v3850, 7
    %v3852 = vsub.s32 0, %v3851
    %v3853 = vrot.slane %v3848, %v3852
    %vm3855 = vcmask 523264
    %v3857 = vsel %vm3855, %v3839, 0
    %3859 = vmatprep.subr.mxu0 0.0
    %3860 = vmatpush1.msra.mxu0 0.0
    %3861 = vmatprep.subr.mxu0 0.0
    %3862 = vmatpush1.msra.mxu0 0.0
    %3863 = vmatprep.subr.mxu0 0.0
    %3864 = vmatpush1.msra.mxu0 0.0
    %3865 = vmatprep.subr.mxu0 0.0
    %3866 = vmatpush1.msra.mxu0 0.0
    %3867 = vmatprep.subr.mxu0 0.0
    %3868 = vmatpush1.msra.mxu0 0.0
    %3869 = vmatprep.subr.mxu0 0.0
    %3870 = vmatpush1.msra.mxu0 0.0
    %3871 = vmatprep.subr.mxu0 0.0
    %3872 = vmatpush1.msra.mxu0 0.0
    %3873 = vmatprep.subr.mxu0 0.0
    %3874 = vmatpush1.msra.mxu0 0.0
    %3875 = vmatprep.subr.mxu0 0.0
    %3876 = vmatpush1.msra.mxu0 %v3847
    %3877 = vmatprep.subr.mxu0 0.0
    %3878 = vmatpush1.msra.mxu0 %v3846
    %3879 = vmatprep.subr.mxu0 0.0
    %3880 = vmatpush1.msra.mxu0 %v3845
    %3881 = vmatprep.subr.mxu0 0.0
    %3882 = vmatpush1.msra.mxu0 %v3844
    %3883 = vmatprep.subr.mxu0 0.0
    %3884 = vmatpush1.msra.mxu0 %v3843
    %3885 = vmatprep.subr.mxu0 0.0
    %3886 = vmatpush1.msra.mxu0 %v3842
    %3887 = vmatprep.subr.mxu0 0.0
    %3888 = vmatpush1.msra.mxu0 %v3841
    %3889 = vmatprep.subr.mxu0 0.0
    %3890 = vmatpush1.msra.mxu0 %v3840
    %3891 = vmatprep.subr.mxu0 0.0
    %3892 = vmatpush2.msra.mxu0 0.0
    %3893 = vmatprep.subr.mxu0 0.0
    %3894 = vmatpush2.msra.mxu0 0.0
    %3895 = vmatprep.subr.mxu0 0.0
    %3896 = vmatpush2.msra.mxu0 0.0
    %3897 = vmatprep.subr.mxu0 0.0
    %3898 = vmatpush2.msra.mxu0 0.0
    %3899 = vmatprep.subr.mxu0 0.0
    %3900 = vmatpush2.msra.mxu0 0.0
    %3901 = vmatprep.subr.mxu0 0.0
    %3902 = vmatpush2.msra.mxu0 0.0
    %3903 = vmatprep.subr.mxu0 0.0
    %3904 = vmatpush2.msra.mxu0 0.0
    %3905 = vmatprep.subr.mxu0 0.0
    %3906 = vmatpush2.msra.mxu0 0.0
    %3907 = vmatprep.subr.mxu0 0.0
    %3908 = vmatpush2.msra.mxu0 0.0
    %3909 = vmatprep.subr.mxu0 0.0
    %3910 = vmatpush2.msra.mxu0 0.0
    %3911 = vmatprep.subr.mxu0 0.0
    %3912 = vmatpush2.msra.mxu0 0.0
    %3913 = vmatprep.subr.mxu0 0.0
    %3914 = vmatpush2.msra.mxu0 0.0
    %3915 = vmatprep.subr.mxu0 0.0
    %3916 = vmatpush2.msra.mxu0 0.0
    %3917 = vmatprep.subr.mxu0 0.0
    %3918 = vmatpush2.msra.mxu0 0.0
    %3919 = vmatprep.subr.mxu0 0.0
    %3920 = vmatpush2.msra.mxu0 0.0
    %3921 = vmatprep.subr.mxu0 0.0
    %3922 = vmatpush2.msra.mxu0 0.0
    %3923 = vmatprep.mubr.f32.mxu0 0.0
    %3924 = vmatmul.mubr.f32.gmra.mxu0 %v3857
    %v3925 = vpop.f32.mrf.mxu0
    %v3926 = vadd.f32 %v3853, %v3925
    %v3927 = vpop.f32.mrf.mxu0
    %3928 = vdwg.mxu0
    %3929 = vst [vmem:[#allocation13] sm:$0xff] %v3926
    // Predicated region
    $region54: #{tpu_custom_call.1} parent=1 // pred_check
      _
    $region55: #{tpu_custom_call.1} parent=1 // pred_check_branch
      %3931 = sbr.rel (0) target = $region57
    $region56: #{tpu_custom_call.1} parent=1 // pred_region
      %s3933 = ssub.s32 128, 128
      %3934 = vsyncadd [#allocation4], %s3933
      %s3936 = sshll.u32 [#allocation13], 4
      %s3937 = int_to_ptr.vmem [resolvable:$true] %s3936
      %3939 = dma.vmem_to_hbm [thread:$0]  %s3937, 128, %s7, [#allocation4]
    $region57: #{tpu_custom_call.1} parent=1 // pred_fallthru
      _
    // Predicated region
    $region58: #{tpu_custom_call.1} parent=1 // pred_check
      _
    $region59: #{tpu_custom_call.1} parent=1 // pred_check_branch
      %3941 = sbr.rel (0) target = $region61
    $region60: #{tpu_custom_call.1} parent=1 // pred_region
      %3942 = dma.done [#allocation4], 128
    $region61: #{tpu_custom_call.1} parent=1 // pred_fallthru
      _
    %3943 = vsyncpa [#allocation3], 1
    %3944 = vsyncpa [#allocation6], 1
    %3945 = vsyncpa [#allocation9], 1
    %3946 = vsyncpa [#allocation12], 1
    %3947 = vsyncpa [#allocation4], 1

</llo_original>
